<compile_context>
chip_gen: v7x
topology: tpu7x:2x2x1
jax: 0.10.0
libtpu: 0.0.40
codegen_flags: <defaults>
</compile_context>

<pallas_src>
import functools

import jax
import jax.numpy as jnp
import numpy as np
from jax.experimental import pallas as pl
from jax.experimental.pallas import tpu as pltpu

CHAR_EMBEDDING_SIZE = 50
MAX_WORD_LENGTH = 21
KERNEL_SIZE = 5
ROW_TILE = 256  # words processed per grid step (128-aligned; raise on v5e/v6e)


def _char_cnn_highway_kernel(idx_ref, cmask_ref, cval_ref, mtab_ref, bconv_ref,
                             whw_ref, bhw_ref, out_ref):
    """One grid step: R words, fused lookup+conv+pool+highway.

    idx_ref  : (T_out, R) int32   -- K windowed char ids bit-packed per entry
    cmask_ref: (1, K*V_pad) int32 -- per-lane bit-field mask ((V_pad-1) << band*bits)
    cval_ref : (1, K*V_pad) int32 -- per-lane match value (pos_in_band << band*bits)
    mtab_ref : (K*V_pad, D) bf16  -- fused (char table x conv weight), per tap band
    bconv_ref: (1, D) f32
    whw_ref  : (D, 2D) bf16       -- [w_proj | w_gate]
    bhw_ref  : (1, 2D) f32        -- [b_proj | b_gate]
    out_ref  : (R, D) f32
    """
    t_out, rows = idx_ref.shape
    kv, d = mtab_ref.shape

    # ---- fused embedding-lookup + Conv1d: one-hot(ids) @ (table (x) w_conv) ----
    # Per-band compare on packed ids: one AND + one CMP per (t, r, lane).
    packed = idx_ref[...][:, :, None]                          # (T, R, 1) int32
    cmask = cmask_ref[...].reshape(1, 1, kv)
    cval = cval_ref[...].reshape(1, 1, kv)
    onehot = ((packed & cmask) == cval).astype(jnp.bfloat16)   # (T, R, KV)
    onehot = onehot.reshape(t_out * rows, kv)

    conv = jnp.dot(onehot, mtab_ref[...],
                   preferred_element_type=jnp.float32)         # (T*R, D)

    # Max-pool FIRST, then bias + ReLU (both monotone => identical result,
    # 17x less VPU work than applying them pre-pool).
    pooled = jnp.max(conv.reshape(t_out, rows, d), axis=0)     # (R, D)
    pooled = jnp.maximum(pooled + bconv_ref[...], 0.0)

    # ---- highway: fused proj/gate matmul ----
    hw = jnp.dot(pooled.astype(jnp.bfloat16), whw_ref[...],
                 preferred_element_type=jnp.float32) + bhw_ref[...]  # (R, 2D)
    proj = jnp.maximum(hw[:, :d], 0.0)
    gate = jax.nn.sigmoid(hw[:, d:])
    out_ref[...] = (gate * proj + (1.0 - gate) * pooled).astype(out_ref.dtype)


def prepare_model_embeddings_params(emb_table, w_conv, b_conv,
                                    w_proj, b_proj, w_gate, b_gate):
    """One-time weight-only precompute (hoisted out of the per-call forward)."""
    V, E = emb_table.shape
    D, E2, K = w_conv.shape
    assert E2 == E and K == KERNEL_SIZE
    V_pad = max(8, 1 << max(0, (V - 1).bit_length()))   # next power of two >= V
    assert V_pad >= V
    bits = V_pad.bit_length() - 1                        # log2(V_pad)
    assert K * bits <= 31, "packed char-id path requires K*log2(V_pad) <= 31"

    # Fused (char-embedding x conv-weight): M[j*V_pad+v, d] = sum_e tab[v,e]*w[d,e,j]
    m = jnp.einsum('ve,dek->kvd', emb_table, w_conv)     # (K, V, D) f32
    m = jnp.pad(m, ((0, 0), (0, V_pad - V), (0, 0)))
    mtab = m.reshape(K * V_pad, D).astype(jnp.bfloat16)

    whw = jnp.concatenate([w_proj, w_gate], axis=1).astype(jnp.bfloat16)  # (D, 2D)
    bhw = jnp.concatenate([b_proj, b_gate]).reshape(1, 2 * D).astype(jnp.float32)
    bcv = b_conv.reshape(1, D).astype(jnp.float32)

    # Per-lane bit-field constants for the in-kernel one-hot compare.
    lane = np.arange(K * V_pad, dtype=np.int64)
    band, sub = lane // V_pad, lane % V_pad
    cmask = jnp.asarray(((V_pad - 1) << (band * bits)).astype(np.int32)[None, :])
    cval = jnp.asarray((sub << (band * bits)).astype(np.int32)[None, :])
    return (mtab, bcv, whw, bhw, cmask, cval)


def _round_up(x, m):
    return ((x + m - 1) // m) * m


@functools.partial(jax.jit, static_argnames=("row_tile",))
def model_embeddings_forward(ids, params, *, row_tile=ROW_TILE):
    """ids: (S, B, L) int32 char indices.  Returns (S, B, D) float32 (eval mode)."""
    mtab, bcv, whw, bhw, cmask, cval = params
    S, B, L = ids.shape
    KV, D = mtab.shape
    K = KERNEL_SIZE
    V_pad = KV // K
    bits = V_pad.bit_length() - 1
    T_out = L - K + 1
    N = S * B

    # Tile choice: lane-aligned (multiple of 128); cap so there are >=2 grid
    # steps when N allows (keeps both v7x TensorCores busy via "parallel").
    rt = _round_up(max(row_tile, 128), 128)
    rt = min(rt, max(128, _round_up(pl.cdiv(N, 2), 128)))
    num_blocks = pl.cdiv(N, rt)
    n_total = num_blocks * rt

    # int32-only id prep (no f32 embeddings / im2col ever touch HBM).
    ids_flat = ids.reshape(N, L).astype(jnp.int32)
    if n_total != N:
        ids_flat = jnp.pad(ids_flat, ((0, n_total - N), (0, 0)))
    # Pack the K windowed char ids of word n at conv position t into one int32:
    # packed[t, n] = OR_j ids[n, t+j] << (j*bits)
    packed = ids_flat[:, 0:T_out]
    for j in range(1, K):
        packed = packed | (ids_flat[:, j:j + T_out] << (j * bits))
    packed = packed.T                                     # (T_out, n_total)

    out = pl.pallas_call(
        _char_cnn_highway_kernel,
        out_shape=jax.ShapeDtypeStruct((n_total, D), jnp.float32),
        grid_spec=pltpu.PrefetchScalarGridSpec(
            num_scalar_prefetch=0,
            grid=(num_blocks,),
            in_specs=[
                pl.BlockSpec((T_out, rt), lambda i: (0, i)),
                pl.BlockSpec((1, KV), lambda i: (0, 0)),
                pl.BlockSpec((1, KV), lambda i: (0, 0)),
                pl.BlockSpec((KV, D), lambda i: (0, 0)),
                pl.BlockSpec((1, D), lambda i: (0, 0)),
                pl.BlockSpec((D, 2 * D), lambda i: (0, 0)),
                pl.BlockSpec((1, 2 * D), lambda i: (0, 0)),
            ],
            out_specs=pl.BlockSpec((rt, D), lambda i: (i, 0)),
        ),
        compiler_params=pltpu.CompilerParams(
            dimension_semantics=("parallel",),
            vmem_limit_bytes=(32 if rt <= 256 else 64) * 1024 * 1024),
    )(packed, cmask, cval, mtab, bcv, whw, bhw)

    return out[:N].reshape(S, B, D)


def _reference_forward(ids, emb_table, w_conv, b_conv,
                       w_proj, b_proj, w_gate, b_gate):
    """Pure-JAX f32 reference mirroring the PyTorch forward (eval mode)."""
    S, B, L = ids.shape
    D, E, K = w_conv.shape
    T_out = L - K + 1
    emb = jnp.take(emb_table, ids.reshape(-1, L), axis=0)            # (N, L, E)
    windows = jnp.stack([emb[:, t:t + K, :] for t in range(T_out)], axis=1)
    conv = jnp.einsum('ntke,dek->ndt', windows, w_conv) + b_conv[None, :, None]
    pooled = jnp.max(jax.nn.relu(conv), axis=-1)                     # (N, D)
    proj = jax.nn.relu(pooled @ w_proj + b_proj)
    gate = jax.nn.sigmoid(pooled @ w_gate + b_gate)
    out = gate * proj + (1.0 - gate) * pooled
    return out.reshape(S, B, D)


if __name__ == "__main__":
    L = MAX_WORD_LENGTH            # 21
    E = CHAR_EMBEDDING_SIZE        # 50
    K = KERNEL_SIZE                # 5
    D = 32                         # embed_size
    V = 30                         # char vocab size; pad index = 0

    key = jax.random.PRNGKey(0)
    (k_emb, k_wc, k_bc, k_wp, k_bp, k_wg, k_bg,
     k_ids, k_ids2) = jax.random.split(key, 9)

    emb_table = 0.1 * jax.random.normal(k_emb, (V, E), dtype=jnp.float32)
    emb_table = emb_table.at[0].set(0.0)   # padding_idx embedding is zero

    w_conv = 0.1 * jax.random.normal(k_wc, (D, E, K), dtype=jnp.float32)
    b_conv = 0.1 * jax.random.normal(k_bc, (D,), dtype=jnp.float32)
    w_proj = 0.1 * jax.random.normal(k_wp, (D, D), dtype=jnp.float32)
    b_proj = 0.1 * jax.random.normal(k_bp, (D,), dtype=jnp.float32)
    w_gate = 0.1 * jax.random.normal(k_wg, (D, D), dtype=jnp.float32)
    b_gate = 0.1 * jax.random.normal(k_bg, (D,), dtype=jnp.float32)

    raw_params = (emb_table, w_conv, b_conv, w_proj, b_proj, w_gate, b_gate)
    # One-time, weight-only precompute (hoisted out of the per-call forward).
    params = prepare_model_embeddings_params(*raw_params)

    # 1) Small sentence batch: single tile (exercises word-row padding).
    S, B = 6, 3
    ids = jax.random.randint(k_ids, (S, B, L), 0, V, dtype=jnp.int32)
    out = model_embeddings_forward(ids, params)
    out = jax.block_until_ready(out)
    ref = _reference_forward(ids, *raw_params)
    np.testing.assert_allclose(np.asarray(out), np.asarray(ref),
                               rtol=2e-2, atol=2e-2)
    assert out.shape == (S, B, D)

    # 2) Larger batch: N=160 -> two 128-word blocks (multi-block grid indexing).
    S2, B2 = 40, 4
    ids2 = jax.random.randint(k_ids2, (S2, B2, L), 0, V, dtype=jnp.int32)
    out2 = model_embeddings_forward(ids2, params)
    out2 = jax.block_until_ready(out2)
    ref2 = _reference_forward(ids2, *raw_params)
    np.testing.assert_allclose(np.asarray(out2), np.asarray(ref2),
                               rtol=2e-2, atol=2e-2)

    print("KERNEL_OK")
</pallas_src>

<mosaic_0001>
module attributes {stable_mosaic.version = 11 : i64} {
  func.func @_char_cnn_highway_kernel(%arg0: i32, %arg1: memref<17x128xi32, #tpu.memory_space<vmem>>, %arg2: memref<1x160xi32, #tpu.memory_space<vmem>>, %arg3: memref<1x160xi32, #tpu.memory_space<vmem>>, %arg4: memref<160x32xbf16, #tpu.memory_space<vmem>>, %arg5: memref<1x32xf32, #tpu.memory_space<vmem>>, %arg6: memref<32x64xbf16, #tpu.memory_space<vmem>>, %arg7: memref<1x64xf32, #tpu.memory_space<vmem>>, %arg8: memref<128x32xf32, #tpu.memory_space<vmem>>) attributes {dimension_semantics = [#tpu.dimension_semantics<parallel>], iteration_bounds = array<i64: 1>, scalar_prefetch = 0 : i64, scratch_operands = 0 : i64, tpu.core_type = #tpu.core_type<tc>, window_params = [{transform_indices = @transform_0, window_bounds = array<i64: 17, 128>}, {pipeline_mode = #tpu.pipeline_mode<synchronous>, transform_indices = @transform_1, window_bounds = array<i64: 1, 160>}, {pipeline_mode = #tpu.pipeline_mode<synchronous>, transform_indices = @transform_2, window_bounds = array<i64: 1, 160>}, {pipeline_mode = #tpu.pipeline_mode<synchronous>, transform_indices = @transform_3, window_bounds = array<i64: 160, 32>}, {pipeline_mode = #tpu.pipeline_mode<synchronous>, transform_indices = @transform_4, window_bounds = array<i64: 1, 32>}, {pipeline_mode = #tpu.pipeline_mode<synchronous>, transform_indices = @transform_5, window_bounds = array<i64: 32, 64>}, {pipeline_mode = #tpu.pipeline_mode<synchronous>, transform_indices = @transform_6, window_bounds = array<i64: 1, 64>}, {transform_indices = @transform_7, window_bounds = array<i64: 128, 32>}]} {
    %c0 = arith.constant 0 : index
    %c0_0 = arith.constant 0 : index
    %0 = vector.load %arg1[%c0, %c0_0] : memref<17x128xi32, #tpu.memory_space<vmem>>, vector<17x128xi32>
    %1 = vector.shape_cast %0 : vector<17x128xi32> to vector<17x128x1xi32>
    %c0_1 = arith.constant 0 : index
    %c0_2 = arith.constant 0 : index
    %2 = vector.load %arg2[%c0_1, %c0_2] : memref<1x160xi32, #tpu.memory_space<vmem>>, vector<1x160xi32>
    %3 = vector.shape_cast %2 : vector<1x160xi32> to vector<1x1x160xi32>
    %c0_3 = arith.constant 0 : index
    %c0_4 = arith.constant 0 : index
    %4 = vector.load %arg3[%c0_3, %c0_4] : memref<1x160xi32, #tpu.memory_space<vmem>>, vector<1x160xi32>
    %5 = vector.shape_cast %4 : vector<1x160xi32> to vector<1x1x160xi32>
    %6 = vector.broadcast %1 : vector<17x128x1xi32> to vector<17x128x160xi32>
    %7 = vector.broadcast %3 : vector<1x1x160xi32> to vector<17x128x160xi32>
    %8 = arith.andi %6, %7 : vector<17x128x160xi32>
    %9 = vector.broadcast %5 : vector<1x1x160xi32> to vector<17x128x160xi32>
    %10 = arith.cmpi eq, %8, %9 : vector<17x128x160xi32>
    %11 = arith.extui %10 : vector<17x128x160xi1> to vector<17x128x160xi32>
    %12 = arith.sitofp %11 : vector<17x128x160xi32> to vector<17x128x160xf32>
    %13 = arith.truncf %12 : vector<17x128x160xf32> to vector<17x128x160xbf16>
    %14 = vector.shape_cast %13 : vector<17x128x160xbf16> to vector<2176x160xbf16>
    %c0_5 = arith.constant 0 : index
    %c0_6 = arith.constant 0 : index
    %15 = vector.load %arg4[%c0_5, %c0_6] : memref<160x32xbf16, #tpu.memory_space<vmem>>, vector<160x32xbf16>
    %cst = arith.constant dense<0.000000e+00> : vector<2176x32xf32>
    %16 = tpu.matmul %14, %15, %cst {dimension_numbers = #tpu.dot_dimension_numbers<[1], [0], [0], [1], [0, 0, 1, 1], [], []>} : vector<2176x160xbf16>, vector<160x32xbf16>, vector<2176x32xf32> -> vector<2176x32xf32>
    %17 = vector.shape_cast %16 : vector<2176x32xf32> to vector<17x128x32xf32>
    %cst_7 = arith.constant dense<0xFF800000> : vector<128x32xf32>
    %18 = vector.multi_reduction <maximumf>, %17, %cst_7 [0] : vector<17x128x32xf32> to vector<128x32xf32>
    %c0_8 = arith.constant 0 : index
    %c0_9 = arith.constant 0 : index
    %19 = vector.load %arg5[%c0_8, %c0_9] : memref<1x32xf32, #tpu.memory_space<vmem>>, vector<1x32xf32>
    %20 = vector.broadcast %19 : vector<1x32xf32> to vector<128x32xf32>
    %21 = arith.addf %18, %20 : vector<128x32xf32>
    %cst_10 = arith.constant 0.000000e+00 : f32
    %22 = vector.broadcast %cst_10 : f32 to vector<128x32xf32>
    %23 = arith.maximumf %21, %22 : vector<128x32xf32>
    %24 = arith.truncf %23 : vector<128x32xf32> to vector<128x32xbf16>
    %c0_11 = arith.constant 0 : index
    %c0_12 = arith.constant 0 : index
    %25 = vector.load %arg6[%c0_11, %c0_12] : memref<32x64xbf16, #tpu.memory_space<vmem>>, vector<32x64xbf16>
    %cst_13 = arith.constant dense<0.000000e+00> : vector<128x64xf32>
    %26 = tpu.matmul %24, %25, %cst_13 {dimension_numbers = #tpu.dot_dimension_numbers<[1], [0], [0], [1], [0, 0, 1, 1], [], []>} : vector<128x32xbf16>, vector<32x64xbf16>, vector<128x64xf32> -> vector<128x64xf32>
    %c0_14 = arith.constant 0 : index
    %c0_15 = arith.constant 0 : index
    %27 = vector.load %arg7[%c0_14, %c0_15] : memref<1x64xf32, #tpu.memory_space<vmem>>, vector<1x64xf32>
    %28 = vector.broadcast %27 : vector<1x64xf32> to vector<128x64xf32>
    %29 = arith.addf %26, %28 : vector<128x64xf32>
    %30 = vector.extract_strided_slice %29 {offsets = [0, 0], sizes = [128, 32], strides = [1, 1]} : vector<128x64xf32> to vector<128x32xf32>
    %cst_16 = arith.constant 0.000000e+00 : f32
    %31 = vector.broadcast %cst_16 : f32 to vector<128x32xf32>
    %32 = arith.maximumf %30, %31 : vector<128x32xf32>
    %33 = vector.extract_strided_slice %29 {offsets = [0, 32], sizes = [128, 32], strides = [1, 1]} : vector<128x64xf32> to vector<128x32xf32>
    %34 = arith.negf %33 : vector<128x32xf32>
    %35 = math.exp %34 : vector<128x32xf32>
    %cst_17 = arith.constant 1.000000e+00 : f32
    %36 = vector.broadcast %cst_17 : f32 to vector<128x32xf32>
    %37 = arith.addf %36, %35 : vector<128x32xf32>
    %38 = arith.divf %36, %37 : vector<128x32xf32>
    %39 = arith.mulf %38, %32 : vector<128x32xf32>
    %cst_18 = arith.constant 1.000000e+00 : f32
    %40 = vector.broadcast %cst_18 : f32 to vector<128x32xf32>
    %41 = arith.subf %40, %38 : vector<128x32xf32>
    %42 = arith.mulf %41, %23 : vector<128x32xf32>
    %43 = arith.addf %39, %42 : vector<128x32xf32>
    %c0_19 = arith.constant 0 : index
    %c0_20 = arith.constant 0 : index
    %44 = vector.load %arg8[%c0_19, %c0_20] : memref<128x32xf32, #tpu.memory_space<vmem>>, vector<128x32xf32>
    tpu.vector_store %arg8[%c0_19, %c0_20], %43 {strides = array<i32>} : memref<128x32xf32, #tpu.memory_space<vmem>>, vector<128x32xf32>,
    return
  }
  func.func @transform_0(%arg0: i32) -> (i32, i32) {
    %c0_i32 = arith.constant 0 : i32
    %c0_i32_0 = arith.constant 0 : i32
    return %c0_i32, %arg0 : i32, i32
  }
  func.func @transform_1(%arg0: i32) -> (i32, i32) {
    %c0_i32 = arith.constant 0 : i32
    %c0_i32_0 = arith.constant 0 : i32
    %c0_i32_1 = arith.constant 0 : i32
    return %c0_i32, %c0_i32_0 : i32, i32
  }
  func.func @transform_2(%arg0: i32) -> (i32, i32) {
    %c0_i32 = arith.constant 0 : i32
    %c0_i32_0 = arith.constant 0 : i32
    %c0_i32_1 = arith.constant 0 : i32
    return %c0_i32, %c0_i32_0 : i32, i32
  }
  func.func @transform_3(%arg0: i32) -> (i32, i32) {
    %c0_i32 = arith.constant 0 : i32
    %c0_i32_0 = arith.constant 0 : i32
    %c0_i32_1 = arith.constant 0 : i32
    return %c0_i32, %c0_i32_0 : i32, i32
  }
  func.func @transform_4(%arg0: i32) -> (i32, i32) {
    %c0_i32 = arith.constant 0 : i32
    %c0_i32_0 = arith.constant 0 : i32
    %c0_i32_1 = arith.constant 0 : i32
    return %c0_i32, %c0_i32_0 : i32, i32
  }
  func.func @transform_5(%arg0: i32) -> (i32, i32) {
    %c0_i32 = arith.constant 0 : i32
    %c0_i32_0 = arith.constant 0 : i32
    %c0_i32_1 = arith.constant 0 : i32
    return %c0_i32, %c0_i32_0 : i32, i32
  }
  func.func @transform_6(%arg0: i32) -> (i32, i32) {
    %c0_i32 = arith.constant 0 : i32
    %c0_i32_0 = arith.constant 0 : i32
    %c0_i32_1 = arith.constant 0 : i32
    return %c0_i32, %c0_i32_0 : i32, i32
  }
  func.func @transform_7(%arg0: i32) -> (i32, i32) {
    %c0_i32 = arith.constant 0 : i32
    %c0_i32_0 = arith.constant 0 : i32
    return %arg0, %c0_i32 : i32, i32
  }
}

</mosaic_0001>

<llo_original>
// kernel: model_embeddings_forward.1
$region0: #{model_embeddings_forward.1}
  #allocation0 [shape = 'u32[]', space=smem, size = 0x4, offset = 0x4, fixed_abs, tag = 'smem constant byte address 0x4 - core index']
  #allocation1 [shape = 'u32[144,128]{1,0:T(1,128)}', space=vmem, size = 0x12000, scoped, tag = 'internal scratch']
  %s0 = inlined_call_operand.vmem [shape: s32[17,128], index: 0, kind: input, shape index: {}]
  %s1 = inlined_call_operand.vmem [shape: s32[1,160], index: 1, kind: input, shape index: {}]
  %s2 = inlined_call_operand.vmem [shape: s32[1,160], index: 2, kind: input, shape index: {}]
  %s3 = inlined_call_operand.vmem [shape: bf16[160,32], index: 3, kind: input, shape index: {}]
  %s4 = inlined_call_operand.vmem [shape: f32[1,32], index: 4, kind: input, shape index: {}]
  %s5 = inlined_call_operand.vmem [shape: bf16[32,64], index: 5, kind: input, shape index: {}]
  %s6 = inlined_call_operand.vmem [shape: f32[1,64], index: 6, kind: input, shape index: {}]
  %s7 = inlined_call_operand.vmem [shape: f32[128,32], index: 7, kind: output, shape index: {}]
  %s8 = sld [smem:[#allocation0]]
  $region38: #{model_embeddings_forward.1} parent=0
    _
  %s10 = ssub.s32 1, %s8
  %s11 = scalar_select 0, %s10, %s8
  // Predicated region
  $region2: #{model_embeddings_forward.1} parent=0 // pred_check
    _
  $region3: #{model_embeddings_forward.1} parent=0 // pred_check_branch
    %13 = sbr.rel (0) target = $region5
  $region4: #{model_embeddings_forward.1} parent=0 // pred_region
    _
  $region5: #{model_embeddings_forward.1} parent=0 // pred_fallthru
    _
  // Predicated region
  $region6: #{model_embeddings_forward.1} parent=0 // pred_check
    _
  $region7: #{model_embeddings_forward.1} parent=0 // pred_check_branch
    %15 = sbr.rel (0) target = $region9
  $region8: #{model_embeddings_forward.1} parent=0 // pred_region
    _
  $region9: #{model_embeddings_forward.1} parent=0 // pred_fallthru
    _
  // Predicated region
  $region10: #{model_embeddings_forward.1} parent=0 // pred_check
    _
  $region11: #{model_embeddings_forward.1} parent=0 // pred_check_branch
    %17 = sbr.rel (0) target = $region13
  $region12: #{model_embeddings_forward.1} parent=0 // pred_region
    _
  $region13: #{model_embeddings_forward.1} parent=0 // pred_fallthru
    _
  // Predicated region
  $region14: #{model_embeddings_forward.1} parent=0 // pred_check
    _
  $region15: #{model_embeddings_forward.1} parent=0 // pred_check_branch
    %19 = sbr.rel (0) target = $region17
  $region16: #{model_embeddings_forward.1} parent=0 // pred_region
    _
  $region17: #{model_embeddings_forward.1} parent=0 // pred_fallthru
    _
  // Predicated region
  $region18: #{model_embeddings_forward.1} parent=0 // pred_check
    _
  $region19: #{model_embeddings_forward.1} parent=0 // pred_check_branch
    %21 = sbr.rel (0) target = $region21
  $region20: #{model_embeddings_forward.1} parent=0 // pred_region
    _
  $region21: #{model_embeddings_forward.1} parent=0 // pred_fallthru
    _
  // Predicated region
  $region22: #{model_embeddings_forward.1} parent=0 // pred_check
    _
  $region23: #{model_embeddings_forward.1} parent=0 // pred_check_branch
    %23 = sbr.rel (0) target = $region25
  $region24: #{model_embeddings_forward.1} parent=0 // pred_region
    _
  $region25: #{model_embeddings_forward.1} parent=0 // pred_fallthru
    _
  // Predicated region
  $region26: #{model_embeddings_forward.1} parent=0 // pred_check
    _
  $region27: #{model_embeddings_forward.1} parent=0 // pred_check_branch
    %25 = sbr.rel (0) target = $region29
  $region28: #{model_embeddings_forward.1} parent=0 // pred_region
    _
  $region29: #{model_embeddings_forward.1} parent=0 // pred_fallthru
    _
  %v27 = vld [vmem:[%s0] sm:$0xff]
  %v28 = vld [vmem:[%s0 + $0x8] sm:$0xff]
  %v29 = vld [vmem:[%s0 + $0x10] sm:$0x1]
  %v30 = vlaneseq
  %v31 = vshrl.u32 %v30, 7
  %v32 = vsub.s32 0, %v31
  %v33 = vrot.slane %v27, %v32
  %35 = vbcast.lane.b32.xlu0 %v33, 256
  %v36 = vpop.permute.xlu0 %35
  %s38 = sor.u32 256, 8
  %39 = vbcast.lane.b32.xlu0 %v33, %s38
  %v40 = vpop.permute.xlu0 %39
  %s42 = sor.u32 256, 16
  %43 = vbcast.lane.b32.xlu0 %v33, %s42
  %v44 = vpop.permute.xlu0 %43
  %s46 = sor.u32 256, 24
  %47 = vbcast.lane.b32.xlu0 %v33, %s46
  %v48 = vpop.permute.xlu0 %47
  %s50 = sor.u32 256, 32
  %51 = vbcast.lane.b32.xlu0 %v33, %s50
  %v52 = vpop.permute.xlu0 %51
  %s54 = sor.u32 256, 40
  %55 = vbcast.lane.b32.xlu0 %v33, %s54
  %v56 = vpop.permute.xlu0 %55
  %s58 = sor.u32 256, 48
  %59 = vbcast.lane.b32.xlu0 %v33, %s58
  %v60 = vpop.permute.xlu0 %59
  %s62 = sor.u32 256, 56
  %63 = vbcast.lane.b32.xlu0 %v33, %s62
  %v64 = vpop.permute.xlu0 %63
  %s66 = sor.u32 256, 64
  %67 = vbcast.lane.b32.xlu0 %v33, %s66
  %v68 = vpop.permute.xlu0 %67
  %s70 = sor.u32 256, 72
  %71 = vbcast.lane.b32.xlu0 %v33, %s70
  %v72 = vpop.permute.xlu0 %71
  %s74 = sor.u32 256, 80
  %75 = vbcast.lane.b32.xlu0 %v33, %s74
  %v76 = vpop.permute.xlu0 %75
  %s78 = sor.u32 256, 88
  %79 = vbcast.lane.b32.xlu0 %v33, %s78
  %v80 = vpop.permute.xlu0 %79
  %s82 = sor.u32 256, 96
  %83 = vbcast.lane.b32.xlu0 %v33, %s82
  %v84 = vpop.permute.xlu0 %83
  %s86 = sor.u32 256, 104
  %87 = vbcast.lane.b32.xlu0 %v33, %s86
  %v88 = vpop.permute.xlu0 %87
  %s90 = sor.u32 256, 112
  %91 = vbcast.lane.b32.xlu0 %v33, %s90
  %v92 = vpop.permute.xlu0 %91
  %s94 = sor.u32 256, 120
  %95 = vbcast.lane.b32.xlu0 %v33, %s94
  %v96 = vpop.permute.xlu0 %95
  %v97 = vlaneseq
  %v98 = vshrl.u32 %v97, 7
  %v99 = vsub.s32 1, %v98
  %v100 = vrot.slane %v27, %v99
  %102 = vbcast.lane.b32.xlu0 %v100, 256
  %v103 = vpop.permute.xlu0 %102
  %s105 = sor.u32 256, 8
  %106 = vbcast.lane.b32.xlu0 %v100, %s105
  %v107 = vpop.permute.xlu0 %106
  %s109 = sor.u32 256, 16
  %110 = vbcast.lane.b32.xlu0 %v100, %s109
  %v111 = vpop.permute.xlu0 %110
  %s113 = sor.u32 256, 24
  %114 = vbcast.lane.b32.xlu0 %v100, %s113
  %v115 = vpop.permute.xlu0 %114
  %s117 = sor.u32 256, 32
  %118 = vbcast.lane.b32.xlu0 %v100, %s117
  %v119 = vpop.permute.xlu0 %118
  %s121 = sor.u32 256, 40
  %122 = vbcast.lane.b32.xlu0 %v100, %s121
  %v123 = vpop.permute.xlu0 %122
  %s125 = sor.u32 256, 48
  %126 = vbcast.lane.b32.xlu0 %v100, %s125
  %v127 = vpop.permute.xlu0 %126
  %s129 = sor.u32 256, 56
  %130 = vbcast.lane.b32.xlu0 %v100, %s129
  %v131 = vpop.permute.xlu0 %130
  %s133 = sor.u32 256, 64
  %134 = vbcast.lane.b32.xlu0 %v100, %s133
  %v135 = vpop.permute.xlu0 %134
  %s137 = sor.u32 256, 72
  %138 = vbcast.lane.b32.xlu0 %v100, %s137
  %v139 = vpop.permute.xlu0 %138
  %s141 = sor.u32 256, 80
  %142 = vbcast.lane.b32.xlu0 %v100, %s141
  %v143 = vpop.permute.xlu0 %142
  %s145 = sor.u32 256, 88
  %146 = vbcast.lane.b32.xlu0 %v100, %s145
  %v147 = vpop.permute.xlu0 %146
  %s149 = sor.u32 256, 96
  %150 = vbcast.lane.b32.xlu0 %v100, %s149
  %v151 = vpop.permute.xlu0 %150
  %s153 = sor.u32 256, 104
  %154 = vbcast.lane.b32.xlu0 %v100, %s153
  %v155 = vpop.permute.xlu0 %154
  %s157 = sor.u32 256, 112
  %158 = vbcast.lane.b32.xlu0 %v100, %s157
  %v159 = vpop.permute.xlu0 %158
  %s161 = sor.u32 256, 120
  %162 = vbcast.lane.b32.xlu0 %v100, %s161
  %v163 = vpop.permute.xlu0 %162
  %v164 = vlaneseq
  %v165 = vshrl.u32 %v164, 7
  %v166 = vsub.s32 2, %v165
  %v167 = vrot.slane %v27, %v166
  %169 = vbcast.lane.b32.xlu0 %v167, 256
  %v170 = vpop.permute.xlu0 %169
  %s172 = sor.u32 256, 8
  %173 = vbcast.lane.b32.xlu0 %v167, %s172
  %v174 = vpop.permute.xlu0 %173
  %s176 = sor.u32 256, 16
  %177 = vbcast.lane.b32.xlu0 %v167, %s176
  %v178 = vpop.permute.xlu0 %177
  %s180 = sor.u32 256, 24
  %181 = vbcast.lane.b32.xlu0 %v167, %s180
  %v182 = vpop.permute.xlu0 %181
  %s184 = sor.u32 256, 32
  %185 = vbcast.lane.b32.xlu0 %v167, %s184
  %v186 = vpop.permute.xlu0 %185
  %s188 = sor.u32 256, 40
  %189 = vbcast.lane.b32.xlu0 %v167, %s188
  %v190 = vpop.permute.xlu0 %189
  %s192 = sor.u32 256, 48
  %193 = vbcast.lane.b32.xlu0 %v167, %s192
  %v194 = vpop.permute.xlu0 %193
  %s196 = sor.u32 256, 56
  %197 = vbcast.lane.b32.xlu0 %v167, %s196
  %v198 = vpop.permute.xlu0 %197
  %s200 = sor.u32 256, 64
  %201 = vbcast.lane.b32.xlu0 %v167, %s200
  %v202 = vpop.permute.xlu0 %201
  %s204 = sor.u32 256, 72
  %205 = vbcast.lane.b32.xlu0 %v167, %s204
  %v206 = vpop.permute.xlu0 %205
  %s208 = sor.u32 256, 80
  %209 = vbcast.lane.b32.xlu0 %v167, %s208
  %v210 = vpop.permute.xlu0 %209
  %s212 = sor.u32 256, 88
  %213 = vbcast.lane.b32.xlu0 %v167, %s212
  %v214 = vpop.permute.xlu0 %213
  %s216 = sor.u32 256, 96
  %217 = vbcast.lane.b32.xlu0 %v167, %s216
  %v218 = vpop.permute.xlu0 %217
  %s220 = sor.u32 256, 104
  %221 = vbcast.lane.b32.xlu0 %v167, %s220
  %v222 = vpop.permute.xlu0 %221
  %s224 = sor.u32 256, 112
  %225 = vbcast.lane.b32.xlu0 %v167, %s224
  %v226 = vpop.permute.xlu0 %225
  %s228 = sor.u32 256, 120
  %229 = vbcast.lane.b32.xlu0 %v167, %s228
  %v230 = vpop.permute.xlu0 %229
  %v231 = vlaneseq
  %v232 = vshrl.u32 %v231, 7
  %v233 = vsub.s32 3, %v232
  %v234 = vrot.slane %v27, %v233
  %236 = vbcast.lane.b32.xlu0 %v234, 256
  %v237 = vpop.permute.xlu0 %236
  %s239 = sor.u32 256, 8
  %240 = vbcast.lane.b32.xlu0 %v234, %s239
  %v241 = vpop.permute.xlu0 %240
  %s243 = sor.u32 256, 16
  %244 = vbcast.lane.b32.xlu0 %v234, %s243
  %v245 = vpop.permute.xlu0 %244
  %s247 = sor.u32 256, 24
  %248 = vbcast.lane.b32.xlu0 %v234, %s247
  %v249 = vpop.permute.xlu0 %248
  %s251 = sor.u32 256, 32
  %252 = vbcast.lane.b32.xlu0 %v234, %s251
  %v253 = vpop.permute.xlu0 %252
  %s255 = sor.u32 256, 40
  %256 = vbcast.lane.b32.xlu0 %v234, %s255
  %v257 = vpop.permute.xlu0 %256
  %s259 = sor.u32 256, 48
  %260 = vbcast.lane.b32.xlu0 %v234, %s259
  %v261 = vpop.permute.xlu0 %260
  %s263 = sor.u32 256, 56
  %264 = vbcast.lane.b32.xlu0 %v234, %s263
  %v265 = vpop.permute.xlu0 %264
  %s267 = sor.u32 256, 64
  %268 = vbcast.lane.b32.xlu0 %v234, %s267
  %v269 = vpop.permute.xlu0 %268
  %s271 = sor.u32 256, 72
  %272 = vbcast.lane.b32.xlu0 %v234, %s271
  %v273 = vpop.permute.xlu0 %272
  %s275 = sor.u32 256, 80
  %276 = vbcast.lane.b32.xlu0 %v234, %s275
  %v277 = vpop.permute.xlu0 %276
  %s279 = sor.u32 256, 88
  %280 = vbcast.lane.b32.xlu0 %v234, %s279
  %v281 = vpop.permute.xlu0 %280
  %s283 = sor.u32 256, 96
  %284 = vbcast.lane.b32.xlu0 %v234, %s283
  %v285 = vpop.permute.xlu0 %284
  %s287 = sor.u32 256, 104
  %288 = vbcast.lane.b32.xlu0 %v234, %s287
  %v289 = vpop.permute.xlu0 %288
  %s291 = sor.u32 256, 112
  %292 = vbcast.lane.b32.xlu0 %v234, %s291
  %v293 = vpop.permute.xlu0 %292
  %s295 = sor.u32 256, 120
  %296 = vbcast.lane.b32.xlu0 %v234, %s295
  %v297 = vpop.permute.xlu0 %296
  %v298 = vlaneseq
  %v299 = vshrl.u32 %v298, 7
  %v300 = vsub.s32 4, %v299
  %v301 = vrot.slane %v27, %v300
  %303 = vbcast.lane.b32.xlu0 %v301, 256
  %v304 = vpop.permute.xlu0 %303
  %s306 = sor.u32 256, 8
  %307 = vbcast.lane.b32.xlu0 %v301, %s306
  %v308 = vpop.permute.xlu0 %307
  %s310 = sor.u32 256, 16
  %311 = vbcast.lane.b32.xlu0 %v301, %s310
  %v312 = vpop.permute.xlu0 %311
  %s314 = sor.u32 256, 24
  %315 = vbcast.lane.b32.xlu0 %v301, %s314
  %v316 = vpop.permute.xlu0 %315
  %s318 = sor.u32 256, 32
  %319 = vbcast.lane.b32.xlu0 %v301, %s318
  %v320 = vpop.permute.xlu0 %319
  %s322 = sor.u32 256, 40
  %323 = vbcast.lane.b32.xlu0 %v301, %s322
  %v324 = vpop.permute.xlu0 %323
  %s326 = sor.u32 256, 48
  %327 = vbcast.lane.b32.xlu0 %v301, %s326
  %v328 = vpop.permute.xlu0 %327
  %s330 = sor.u32 256, 56
  %331 = vbcast.lane.b32.xlu0 %v301, %s330
  %v332 = vpop.permute.xlu0 %331
  %s334 = sor.u32 256, 64
  %335 = vbcast.lane.b32.xlu0 %v301, %s334
  %v336 = vpop.permute.xlu0 %335
  %s338 = sor.u32 256, 72
  %339 = vbcast.lane.b32.xlu0 %v301, %s338
  %v340 = vpop.permute.xlu0 %339
  %s342 = sor.u32 256, 80
  %343 = vbcast.lane.b32.xlu0 %v301, %s342
  %v344 = vpop.permute.xlu0 %343
  %s346 = sor.u32 256, 88
  %347 = vbcast.lane.b32.xlu0 %v301, %s346
  %v348 = vpop.permute.xlu0 %347
  %s350 = sor.u32 256, 96
  %351 = vbcast.lane.b32.xlu0 %v301, %s350
  %v352 = vpop.permute.xlu0 %351
  %s354 = sor.u32 256, 104
  %355 = vbcast.lane.b32.xlu0 %v301, %s354
  %v356 = vpop.permute.xlu0 %355
  %s358 = sor.u32 256, 112
  %359 = vbcast.lane.b32.xlu0 %v301, %s358
  %v360 = vpop.permute.xlu0 %359
  %s362 = sor.u32 256, 120
  %363 = vbcast.lane.b32.xlu0 %v301, %s362
  %v364 = vpop.permute.xlu0 %363
  %v365 = vlaneseq
  %v366 = vshrl.u32 %v365, 7
  %v367 = vsub.s32 5, %v366
  %v368 = vrot.slane %v27, %v367
  %370 = vbcast.lane.b32.xlu0 %v368, 256
  %v371 = vpop.permute.xlu0 %370
  %s373 = sor.u32 256, 8
  %374 = vbcast.lane.b32.xlu0 %v368, %s373
  %v375 = vpop.permute.xlu0 %374
  %s377 = sor.u32 256, 16
  %378 = vbcast.lane.b32.xlu0 %v368, %s377
  %v379 = vpop.permute.xlu0 %378
  %s381 = sor.u32 256, 24
  %382 = vbcast.lane.b32.xlu0 %v368, %s381
  %v383 = vpop.permute.xlu0 %382
  %s385 = sor.u32 256, 32
  %386 = vbcast.lane.b32.xlu0 %v368, %s385
  %v387 = vpop.permute.xlu0 %386
  %s389 = sor.u32 256, 40
  %390 = vbcast.lane.b32.xlu0 %v368, %s389
  %v391 = vpop.permute.xlu0 %390
  %s393 = sor.u32 256, 48
  %394 = vbcast.lane.b32.xlu0 %v368, %s393
  %v395 = vpop.permute.xlu0 %394
  %s397 = sor.u32 256, 56
  %398 = vbcast.lane.b32.xlu0 %v368, %s397
  %v399 = vpop.permute.xlu0 %398
  %s401 = sor.u32 256, 64
  %402 = vbcast.lane.b32.xlu0 %v368, %s401
  %v403 = vpop.permute.xlu0 %402
  %s405 = sor.u32 256, 72
  %406 = vbcast.lane.b32.xlu0 %v368, %s405
  %v407 = vpop.permute.xlu0 %406
  %s409 = sor.u32 256, 80
  %410 = vbcast.lane.b32.xlu0 %v368, %s409
  %v411 = vpop.permute.xlu0 %410
  %s413 = sor.u32 256, 88
  %414 = vbcast.lane.b32.xlu0 %v368, %s413
  %v415 = vpop.permute.xlu0 %414
  %s417 = sor.u32 256, 96
  %418 = vbcast.lane.b32.xlu0 %v368, %s417
  %v419 = vpop.permute.xlu0 %418
  %s421 = sor.u32 256, 104
  %422 = vbcast.lane.b32.xlu0 %v368, %s421
  %v423 = vpop.permute.xlu0 %422
  %s425 = sor.u32 256, 112
  %426 = vbcast.lane.b32.xlu0 %v368, %s425
  %v427 = vpop.permute.xlu0 %426
  %s429 = sor.u32 256, 120
  %430 = vbcast.lane.b32.xlu0 %v368, %s429
  %v431 = vpop.permute.xlu0 %430
  %v432 = vlaneseq
  %v433 = vshrl.u32 %v432, 7
  %v434 = vsub.s32 6, %v433
  %v435 = vrot.slane %v27, %v434
  %437 = vbcast.lane.b32.xlu0 %v435, 256
  %v438 = vpop.permute.xlu0 %437
  %s440 = sor.u32 256, 8
  %441 = vbcast.lane.b32.xlu0 %v435, %s440
  %v442 = vpop.permute.xlu0 %441
  %s444 = sor.u32 256, 16
  %445 = vbcast.lane.b32.xlu0 %v435, %s444
  %v446 = vpop.permute.xlu0 %445
  %s448 = sor.u32 256, 24
  %449 = vbcast.lane.b32.xlu0 %v435, %s448
  %v450 = vpop.permute.xlu0 %449
  %s452 = sor.u32 256, 32
  %453 = vbcast.lane.b32.xlu0 %v435, %s452
  %v454 = vpop.permute.xlu0 %453
  %s456 = sor.u32 256, 40
  %457 = vbcast.lane.b32.xlu0 %v435, %s456
  %v458 = vpop.permute.xlu0 %457
  %s460 = sor.u32 256, 48
  %461 = vbcast.lane.b32.xlu0 %v435, %s460
  %v462 = vpop.permute.xlu0 %461
  %s464 = sor.u32 256, 56
  %465 = vbcast.lane.b32.xlu0 %v435, %s464
  %v466 = vpop.permute.xlu0 %465
  %s468 = sor.u32 256, 64
  %469 = vbcast.lane.b32.xlu0 %v435, %s468
  %v470 = vpop.permute.xlu0 %469
  %s472 = sor.u32 256, 72
  %473 = vbcast.lane.b32.xlu0 %v435, %s472
  %v474 = vpop.permute.xlu0 %473
  %s476 = sor.u32 256, 80
  %477 = vbcast.lane.b32.xlu0 %v435, %s476
  %v478 = vpop.permute.xlu0 %477
  %s480 = sor.u32 256, 88
  %481 = vbcast.lane.b32.xlu0 %v435, %s480
  %v482 = vpop.permute.xlu0 %481
  %s484 = sor.u32 256, 96
  %485 = vbcast.lane.b32.xlu0 %v435, %s484
  %v486 = vpop.permute.xlu0 %485
  %s488 = sor.u32 256, 104
  %489 = vbcast.lane.b32.xlu0 %v435, %s488
  %v490 = vpop.permute.xlu0 %489
  %s492 = sor.u32 256, 112
  %493 = vbcast.lane.b32.xlu0 %v435, %s492
  %v494 = vpop.permute.xlu0 %493
  %s496 = sor.u32 256, 120
  %497 = vbcast.lane.b32.xlu0 %v435, %s496
  %v498 = vpop.permute.xlu0 %497
  %v499 = vlaneseq
  %v500 = vshrl.u32 %v499, 7
  %v501 = vsub.s32 7, %v500
  %v502 = vrot.slane %v27, %v501
  %504 = vbcast.lane.b32.xlu0 %v502, 256
  %v505 = vpop.permute.xlu0 %504
  %s507 = sor.u32 256, 8
  %508 = vbcast.lane.b32.xlu0 %v502, %s507
  %v509 = vpop.permute.xlu0 %508
  %s511 = sor.u32 256, 16
  %512 = vbcast.lane.b32.xlu0 %v502, %s511
  %v513 = vpop.permute.xlu0 %512
  %s515 = sor.u32 256, 24
  %516 = vbcast.lane.b32.xlu0 %v502, %s515
  %v517 = vpop.permute.xlu0 %516
  %s519 = sor.u32 256, 32
  %520 = vbcast.lane.b32.xlu0 %v502, %s519
  %v521 = vpop.permute.xlu0 %520
  %s523 = sor.u32 256, 40
  %524 = vbcast.lane.b32.xlu0 %v502, %s523
  %v525 = vpop.permute.xlu0 %524
  %s527 = sor.u32 256, 48
  %528 = vbcast.lane.b32.xlu0 %v502, %s527
  %v529 = vpop.permute.xlu0 %528
  %s531 = sor.u32 256, 56
  %532 = vbcast.lane.b32.xlu0 %v502, %s531
  %v533 = vpop.permute.xlu0 %532
  %s535 = sor.u32 256, 64
  %536 = vbcast.lane.b32.xlu0 %v502, %s535
  %v537 = vpop.permute.xlu0 %536
  %s539 = sor.u32 256, 72
  %540 = vbcast.lane.b32.xlu0 %v502, %s539
  %v541 = vpop.permute.xlu0 %540
  %s543 = sor.u32 256, 80
  %544 = vbcast.lane.b32.xlu0 %v502, %s543
  %v545 = vpop.permute.xlu0 %544
  %s547 = sor.u32 256, 88
  %548 = vbcast.lane.b32.xlu0 %v502, %s547
  %v549 = vpop.permute.xlu0 %548
  %s551 = sor.u32 256, 96
  %552 = vbcast.lane.b32.xlu0 %v502, %s551
  %v553 = vpop.permute.xlu0 %552
  %s555 = sor.u32 256, 104
  %556 = vbcast.lane.b32.xlu0 %v502, %s555
  %v557 = vpop.permute.xlu0 %556
  %s559 = sor.u32 256, 112
  %560 = vbcast.lane.b32.xlu0 %v502, %s559
  %v561 = vpop.permute.xlu0 %560
  %s563 = sor.u32 256, 120
  %564 = vbcast.lane.b32.xlu0 %v502, %s563
  %v565 = vpop.permute.xlu0 %564
  %v566 = vlaneseq
  %v567 = vshrl.u32 %v566, 7
  %v568 = vsub.s32 0, %v567
  %v569 = vrot.slane %v28, %v568
  %571 = vbcast.lane.b32.xlu0 %v569, 256
  %v572 = vpop.permute.xlu0 %571
  %s574 = sor.u32 256, 8
  %575 = vbcast.lane.b32.xlu0 %v569, %s574
  %v576 = vpop.permute.xlu0 %575
  %s578 = sor.u32 256, 16
  %579 = vbcast.lane.b32.xlu0 %v569, %s578
  %v580 = vpop.permute.xlu0 %579
  %s582 = sor.u32 256, 24
  %583 = vbcast.lane.b32.xlu0 %v569, %s582
  %v584 = vpop.permute.xlu0 %583
  %s586 = sor.u32 256, 32
  %587 = vbcast.lane.b32.xlu0 %v569, %s586
  %v588 = vpop.permute.xlu0 %587
  %s590 = sor.u32 256, 40
  %591 = vbcast.lane.b32.xlu0 %v569, %s590
  %v592 = vpop.permute.xlu0 %591
  %s594 = sor.u32 256, 48
  %595 = vbcast.lane.b32.xlu0 %v569, %s594
  %v596 = vpop.permute.xlu0 %595
  %s598 = sor.u32 256, 56
  %599 = vbcast.lane.b32.xlu0 %v569, %s598
  %v600 = vpop.permute.xlu0 %599
  %s602 = sor.u32 256, 64
  %603 = vbcast.lane.b32.xlu0 %v569, %s602
  %v604 = vpop.permute.xlu0 %603
  %s606 = sor.u32 256, 72
  %607 = vbcast.lane.b32.xlu0 %v569, %s606
  %v608 = vpop.permute.xlu0 %607
  %s610 = sor.u32 256, 80
  %611 = vbcast.lane.b32.xlu0 %v569, %s610
  %v612 = vpop.permute.xlu0 %611
  %s614 = sor.u32 256, 88
  %615 = vbcast.lane.b32.xlu0 %v569, %s614
  %v616 = vpop.permute.xlu0 %615
  %s618 = sor.u32 256, 96
  %619 = vbcast.lane.b32.xlu0 %v569, %s618
  %v620 = vpop.permute.xlu0 %619
  %s622 = sor.u32 256, 104
  %623 = vbcast.lane.b32.xlu0 %v569, %s622
  %v624 = vpop.permute.xlu0 %623
  %s626 = sor.u32 256, 112
  %627 = vbcast.lane.b32.xlu0 %v569, %s626
  %v628 = vpop.permute.xlu0 %627
  %s630 = sor.u32 256, 120
  %631 = vbcast.lane.b32.xlu0 %v569, %s630
  %v632 = vpop.permute.xlu0 %631
  %v633 = vlaneseq
  %v634 = vshrl.u32 %v633, 7
  %v635 = vsub.s32 1, %v634
  %v636 = vrot.slane %v28, %v635
  %638 = vbcast.lane.b32.xlu0 %v636, 256
  %v639 = vpop.permute.xlu0 %638
  %s641 = sor.u32 256, 8
  %642 = vbcast.lane.b32.xlu0 %v636, %s641
  %v643 = vpop.permute.xlu0 %642
  %s645 = sor.u32 256, 16
  %646 = vbcast.lane.b32.xlu0 %v636, %s645
  %v647 = vpop.permute.xlu0 %646
  %s649 = sor.u32 256, 24
  %650 = vbcast.lane.b32.xlu0 %v636, %s649
  %v651 = vpop.permute.xlu0 %650
  %s653 = sor.u32 256, 32
  %654 = vbcast.lane.b32.xlu0 %v636, %s653
  %v655 = vpop.permute.xlu0 %654
  %s657 = sor.u32 256, 40
  %658 = vbcast.lane.b32.xlu0 %v636, %s657
  %v659 = vpop.permute.xlu0 %658
  %s661 = sor.u32 256, 48
  %662 = vbcast.lane.b32.xlu0 %v636, %s661
  %v663 = vpop.permute.xlu0 %662
  %s665 = sor.u32 256, 56
  %666 = vbcast.lane.b32.xlu0 %v636, %s665
  %v667 = vpop.permute.xlu0 %666
  %s669 = sor.u32 256, 64
  %670 = vbcast.lane.b32.xlu0 %v636, %s669
  %v671 = vpop.permute.xlu0 %670
  %s673 = sor.u32 256, 72
  %674 = vbcast.lane.b32.xlu0 %v636, %s673
  %v675 = vpop.permute.xlu0 %674
  %s677 = sor.u32 256, 80
  %678 = vbcast.lane.b32.xlu0 %v636, %s677
  %v679 = vpop.permute.xlu0 %678
  %s681 = sor.u32 256, 88
  %682 = vbcast.lane.b32.xlu0 %v636, %s681
  %v683 = vpop.permute.xlu0 %682
  %s685 = sor.u32 256, 96
  %686 = vbcast.lane.b32.xlu0 %v636, %s685
  %v687 = vpop.permute.xlu0 %686
  %s689 = sor.u32 256, 104
  %690 = vbcast.lane.b32.xlu0 %v636, %s689
  %v691 = vpop.permute.xlu0 %690
  %s693 = sor.u32 256, 112
  %694 = vbcast.lane.b32.xlu0 %v636, %s693
  %v695 = vpop.permute.xlu0 %694
  %s697 = sor.u32 256, 120
  %698 = vbcast.lane.b32.xlu0 %v636, %s697
  %v699 = vpop.permute.xlu0 %698
  %v700 = vlaneseq
  %v701 = vshrl.u32 %v700, 7
  %v702 = vsub.s32 2, %v701
  %v703 = vrot.slane %v28, %v702
  %705 = vbcast.lane.b32.xlu0 %v703, 256
  %v706 = vpop.permute.xlu0 %705
  %s708 = sor.u32 256, 8
  %709 = vbcast.lane.b32.xlu0 %v703, %s708
  %v710 = vpop.permute.xlu0 %709
  %s712 = sor.u32 256, 16
  %713 = vbcast.lane.b32.xlu0 %v703, %s712
  %v714 = vpop.permute.xlu0 %713
  %s716 = sor.u32 256, 24
  %717 = vbcast.lane.b32.xlu0 %v703, %s716
  %v718 = vpop.permute.xlu0 %717
  %s720 = sor.u32 256, 32
  %721 = vbcast.lane.b32.xlu0 %v703, %s720
  %v722 = vpop.permute.xlu0 %721
  %s724 = sor.u32 256, 40
  %725 = vbcast.lane.b32.xlu0 %v703, %s724
  %v726 = vpop.permute.xlu0 %725
  %s728 = sor.u32 256, 48
  %729 = vbcast.lane.b32.xlu0 %v703, %s728
  %v730 = vpop.permute.xlu0 %729
  %s732 = sor.u32 256, 56
  %733 = vbcast.lane.b32.xlu0 %v703, %s732
  %v734 = vpop.permute.xlu0 %733
  %s736 = sor.u32 256, 64
  %737 = vbcast.lane.b32.xlu0 %v703, %s736
  %v738 = vpop.permute.xlu0 %737
  %s740 = sor.u32 256, 72
  %741 = vbcast.lane.b32.xlu0 %v703, %s740
  %v742 = vpop.permute.xlu0 %741
  %s744 = sor.u32 256, 80
  %745 = vbcast.lane.b32.xlu0 %v703, %s744
  %v746 = vpop.permute.xlu0 %745
  %s748 = sor.u32 256, 88
  %749 = vbcast.lane.b32.xlu0 %v703, %s748
  %v750 = vpop.permute.xlu0 %749
  %s752 = sor.u32 256, 96
  %753 = vbcast.lane.b32.xlu0 %v703, %s752
  %v754 = vpop.permute.xlu0 %753
  %s756 = sor.u32 256, 104
  %757 = vbcast.lane.b32.xlu0 %v703, %s756
  %v758 = vpop.permute.xlu0 %757
  %s760 = sor.u32 256, 112
  %761 = vbcast.lane.b32.xlu0 %v703, %s760
  %v762 = vpop.permute.xlu0 %761
  %s764 = sor.u32 256, 120
  %765 = vbcast.lane.b32.xlu0 %v703, %s764
  %v766 = vpop.permute.xlu0 %765
  %v767 = vlaneseq
  %v768 = vshrl.u32 %v767, 7
  %v769 = vsub.s32 3, %v768
  %v770 = vrot.slane %v28, %v769
  %772 = vbcast.lane.b32.xlu0 %v770, 256
  %v773 = vpop.permute.xlu0 %772
  %s775 = sor.u32 256, 8
  %776 = vbcast.lane.b32.xlu0 %v770, %s775
  %v777 = vpop.permute.xlu0 %776
  %s779 = sor.u32 256, 16
  %780 = vbcast.lane.b32.xlu0 %v770, %s779
  %v781 = vpop.permute.xlu0 %780
  %s783 = sor.u32 256, 24
  %784 = vbcast.lane.b32.xlu0 %v770, %s783
  %v785 = vpop.permute.xlu0 %784
  %s787 = sor.u32 256, 32
  %788 = vbcast.lane.b32.xlu0 %v770, %s787
  %v789 = vpop.permute.xlu0 %788
  %s791 = sor.u32 256, 40
  %792 = vbcast.lane.b32.xlu0 %v770, %s791
  %v793 = vpop.permute.xlu0 %792
  %s795 = sor.u32 256, 48
  %796 = vbcast.lane.b32.xlu0 %v770, %s795
  %v797 = vpop.permute.xlu0 %796
  %s799 = sor.u32 256, 56
  %800 = vbcast.lane.b32.xlu0 %v770, %s799
  %v801 = vpop.permute.xlu0 %800
  %s803 = sor.u32 256, 64
  %804 = vbcast.lane.b32.xlu0 %v770, %s803
  %v805 = vpop.permute.xlu0 %804
  %s807 = sor.u32 256, 72
  %808 = vbcast.lane.b32.xlu0 %v770, %s807
  %v809 = vpop.permute.xlu0 %808
  %s811 = sor.u32 256, 80
  %812 = vbcast.lane.b32.xlu0 %v770, %s811
  %v813 = vpop.permute.xlu0 %812
  %s815 = sor.u32 256, 88
  %816 = vbcast.lane.b32.xlu0 %v770, %s815
  %v817 = vpop.permute.xlu0 %816
  %s819 = sor.u32 256, 96
  %820 = vbcast.lane.b32.xlu0 %v770, %s819
  %v821 = vpop.permute.xlu0 %820
  %s823 = sor.u32 256, 104
  %824 = vbcast.lane.b32.xlu0 %v770, %s823
  %v825 = vpop.permute.xlu0 %824
  %s827 = sor.u32 256, 112
  %828 = vbcast.lane.b32.xlu0 %v770, %s827
  %v829 = vpop.permute.xlu0 %828
  %s831 = sor.u32 256, 120
  %832 = vbcast.lane.b32.xlu0 %v770, %s831
  %v833 = vpop.permute.xlu0 %832
  %v834 = vlaneseq
  %v835 = vshrl.u32 %v834, 7
  %v836 = vsub.s32 4, %v835
  %v837 = vrot.slane %v28, %v836
  %839 = vbcast.lane.b32.xlu0 %v837, 256
  %v840 = vpop.permute.xlu0 %839
  %s842 = sor.u32 256, 8
  %843 = vbcast.lane.b32.xlu0 %v837, %s842
  %v844 = vpop.permute.xlu0 %843
  %s846 = sor.u32 256, 16
  %847 = vbcast.lane.b32.xlu0 %v837, %s846
  %v848 = vpop.permute.xlu0 %847
  %s850 = sor.u32 256, 24
  %851 = vbcast.lane.b32.xlu0 %v837, %s850
  %v852 = vpop.permute.xlu0 %851
  %s854 = sor.u32 256, 32
  %855 = vbcast.lane.b32.xlu0 %v837, %s854
  %v856 = vpop.permute.xlu0 %855
  %s858 = sor.u32 256, 40
  %859 = vbcast.lane.b32.xlu0 %v837, %s858
  %v860 = vpop.permute.xlu0 %859
  %s862 = sor.u32 256, 48
  %863 = vbcast.lane.b32.xlu0 %v837, %s862
  %v864 = vpop.permute.xlu0 %863
  %s866 = sor.u32 256, 56
  %867 = vbcast.lane.b32.xlu0 %v837, %s866
  %v868 = vpop.permute.xlu0 %867
  %s870 = sor.u32 256, 64
  %871 = vbcast.lane.b32.xlu0 %v837, %s870
  %v872 = vpop.permute.xlu0 %871
  %s874 = sor.u32 256, 72
  %875 = vbcast.lane.b32.xlu0 %v837, %s874
  %v876 = vpop.permute.xlu0 %875
  %s878 = sor.u32 256, 80
  %879 = vbcast.lane.b32.xlu0 %v837, %s878
  %v880 = vpop.permute.xlu0 %879
  %s882 = sor.u32 256, 88
  %883 = vbcast.lane.b32.xlu0 %v837, %s882
  %v884 = vpop.permute.xlu0 %883
  %s886 = sor.u32 256, 96
  %887 = vbcast.lane.b32.xlu0 %v837, %s886
  %v888 = vpop.permute.xlu0 %887
  %s890 = sor.u32 256, 104
  %891 = vbcast.lane.b32.xlu0 %v837, %s890
  %v892 = vpop.permute.xlu0 %891
  %s894 = sor.u32 256, 112
  %895 = vbcast.lane.b32.xlu0 %v837, %s894
  %v896 = vpop.permute.xlu0 %895
  %s898 = sor.u32 256, 120
  %899 = vbcast.lane.b32.xlu0 %v837, %s898
  %v900 = vpop.permute.xlu0 %899
  %v901 = vlaneseq
  %v902 = vshrl.u32 %v901, 7
  %v903 = vsub.s32 5, %v902
  %v904 = vrot.slane %v28, %v903
  %906 = vbcast.lane.b32.xlu0 %v904, 256
  %v907 = vpop.permute.xlu0 %906
  %s909 = sor.u32 256, 8
  %910 = vbcast.lane.b32.xlu0 %v904, %s909
  %v911 = vpop.permute.xlu0 %910
  %s913 = sor.u32 256, 16
  %914 = vbcast.lane.b32.xlu0 %v904, %s913
  %v915 = vpop.permute.xlu0 %914
  %s917 = sor.u32 256, 24
  %918 = vbcast.lane.b32.xlu0 %v904, %s917
  %v919 = vpop.permute.xlu0 %918
  %s921 = sor.u32 256, 32
  %922 = vbcast.lane.b32.xlu0 %v904, %s921
  %v923 = vpop.permute.xlu0 %922
  %s925 = sor.u32 256, 40
  %926 = vbcast.lane.b32.xlu0 %v904, %s925
  %v927 = vpop.permute.xlu0 %926
  %s929 = sor.u32 256, 48
  %930 = vbcast.lane.b32.xlu0 %v904, %s929
  %v931 = vpop.permute.xlu0 %930
  %s933 = sor.u32 256, 56
  %934 = vbcast.lane.b32.xlu0 %v904, %s933
  %v935 = vpop.permute.xlu0 %934
  %s937 = sor.u32 256, 64
  %938 = vbcast.lane.b32.xlu0 %v904, %s937
  %v939 = vpop.permute.xlu0 %938
  %s941 = sor.u32 256, 72
  %942 = vbcast.lane.b32.xlu0 %v904, %s941
  %v943 = vpop.permute.xlu0 %942
  %s945 = sor.u32 256, 80
  %946 = vbcast.lane.b32.xlu0 %v904, %s945
  %v947 = vpop.permute.xlu0 %946
  %s949 = sor.u32 256, 88
  %950 = vbcast.lane.b32.xlu0 %v904, %s949
  %v951 = vpop.permute.xlu0 %950
  %s953 = sor.u32 256, 96
  %954 = vbcast.lane.b32.xlu0 %v904, %s953
  %v955 = vpop.permute.xlu0 %954
  %s957 = sor.u32 256, 104
  %958 = vbcast.lane.b32.xlu0 %v904, %s957
  %v959 = vpop.permute.xlu0 %958
  %s961 = sor.u32 256, 112
  %962 = vbcast.lane.b32.xlu0 %v904, %s961
  %v963 = vpop.permute.xlu0 %962
  %s965 = sor.u32 256, 120
  %966 = vbcast.lane.b32.xlu0 %v904, %s965
  %v967 = vpop.permute.xlu0 %966
  %v968 = vlaneseq
  %v969 = vshrl.u32 %v968, 7
  %v970 = vsub.s32 6, %v969
  %v971 = vrot.slane %v28, %v970
  %973 = vbcast.lane.b32.xlu0 %v971, 256
  %v974 = vpop.permute.xlu0 %973
  %s976 = sor.u32 256, 8
  %977 = vbcast.lane.b32.xlu0 %v971, %s976
  %v978 = vpop.permute.xlu0 %977
  %s980 = sor.u32 256, 16
  %981 = vbcast.lane.b32.xlu0 %v971, %s980
  %v982 = vpop.permute.xlu0 %981
  %s984 = sor.u32 256, 24
  %985 = vbcast.lane.b32.xlu0 %v971, %s984
  %v986 = vpop.permute.xlu0 %985
  %s988 = sor.u32 256, 32
  %989 = vbcast.lane.b32.xlu0 %v971, %s988
  %v990 = vpop.permute.xlu0 %989
  %s992 = sor.u32 256, 40
  %993 = vbcast.lane.b32.xlu0 %v971, %s992
  %v994 = vpop.permute.xlu0 %993
  %s996 = sor.u32 256, 48
  %997 = vbcast.lane.b32.xlu0 %v971, %s996
  %v998 = vpop.permute.xlu0 %997
  %s1000 = sor.u32 256, 56
  %1001 = vbcast.lane.b32.xlu0 %v971, %s1000
  %v1002 = vpop.permute.xlu0 %1001
  %s1004 = sor.u32 256, 64
  %1005 = vbcast.lane.b32.xlu0 %v971, %s1004
  %v1006 = vpop.permute.xlu0 %1005
  %s1008 = sor.u32 256, 72
  %1009 = vbcast.lane.b32.xlu0 %v971, %s1008
  %v1010 = vpop.permute.xlu0 %1009
  %s1012 = sor.u32 256, 80
  %1013 = vbcast.lane.b32.xlu0 %v971, %s1012
  %v1014 = vpop.permute.xlu0 %1013
  %s1016 = sor.u32 256, 88
  %1017 = vbcast.lane.b32.xlu0 %v971, %s1016
  %v1018 = vpop.permute.xlu0 %1017
  %s1020 = sor.u32 256, 96
  %1021 = vbcast.lane.b32.xlu0 %v971, %s1020
  %v1022 = vpop.permute.xlu0 %1021
  %s1024 = sor.u32 256, 104
  %1025 = vbcast.lane.b32.xlu0 %v971, %s1024
  %v1026 = vpop.permute.xlu0 %1025
  %s1028 = sor.u32 256, 112
  %1029 = vbcast.lane.b32.xlu0 %v971, %s1028
  %v1030 = vpop.permute.xlu0 %1029
  %s1032 = sor.u32 256, 120
  %1033 = vbcast.lane.b32.xlu0 %v971, %s1032
  %v1034 = vpop.permute.xlu0 %1033
  %v1035 = vlaneseq
  %v1036 = vshrl.u32 %v1035, 7
  %v1037 = vsub.s32 7, %v1036
  %v1038 = vrot.slane %v28, %v1037
  %1040 = vbcast.lane.b32.xlu0 %v1038, 256
  %v1041 = vpop.permute.xlu0 %1040
  %s1043 = sor.u32 256, 8
  %1044 = vbcast.lane.b32.xlu0 %v1038, %s1043
  %v1045 = vpop.permute.xlu0 %1044
  %s1047 = sor.u32 256, 16
  %1048 = vbcast.lane.b32.xlu0 %v1038, %s1047
  %v1049 = vpop.permute.xlu0 %1048
  %s1051 = sor.u32 256, 24
  %1052 = vbcast.lane.b32.xlu0 %v1038, %s1051
  %v1053 = vpop.permute.xlu0 %1052
  %s1055 = sor.u32 256, 32
  %1056 = vbcast.lane.b32.xlu0 %v1038, %s1055
  %v1057 = vpop.permute.xlu0 %1056
  %s1059 = sor.u32 256, 40
  %1060 = vbcast.lane.b32.xlu0 %v1038, %s1059
  %v1061 = vpop.permute.xlu0 %1060
  %s1063 = sor.u32 256, 48
  %1064 = vbcast.lane.b32.xlu0 %v1038, %s1063
  %v1065 = vpop.permute.xlu0 %1064
  %s1067 = sor.u32 256, 56
  %1068 = vbcast.lane.b32.xlu0 %v1038, %s1067
  %v1069 = vpop.permute.xlu0 %1068
  %s1071 = sor.u32 256, 64
  %1072 = vbcast.lane.b32.xlu0 %v1038, %s1071
  %v1073 = vpop.permute.xlu0 %1072
  %s1075 = sor.u32 256, 72
  %1076 = vbcast.lane.b32.xlu0 %v1038, %s1075
  %v1077 = vpop.permute.xlu0 %1076
  %s1079 = sor.u32 256, 80
  %1080 = vbcast.lane.b32.xlu0 %v1038, %s1079
  %v1081 = vpop.permute.xlu0 %1080
  %s1083 = sor.u32 256, 88
  %1084 = vbcast.lane.b32.xlu0 %v1038, %s1083
  %v1085 = vpop.permute.xlu0 %1084
  %s1087 = sor.u32 256, 96
  %1088 = vbcast.lane.b32.xlu0 %v1038, %s1087
  %v1089 = vpop.permute.xlu0 %1088
  %s1091 = sor.u32 256, 104
  %1092 = vbcast.lane.b32.xlu0 %v1038, %s1091
  %v1093 = vpop.permute.xlu0 %1092
  %s1095 = sor.u32 256, 112
  %1096 = vbcast.lane.b32.xlu0 %v1038, %s1095
  %v1097 = vpop.permute.xlu0 %1096
  %s1099 = sor.u32 256, 120
  %1100 = vbcast.lane.b32.xlu0 %v1038, %s1099
  %v1101 = vpop.permute.xlu0 %1100
  %v1102 = vlaneseq
  %v1103 = vshrl.u32 %v1102, 7
  %v1104 = vsub.s32 0, %v1103
  %v1105 = vrot.slane %v29, %v1104
  %1107 = vbcast.lane.b32.xlu0 %v1105, 256
  %v1108 = vpop.permute.xlu0 %1107
  %s1110 = sor.u32 256, 8
  %1111 = vbcast.lane.b32.xlu0 %v1105, %s1110
  %v1112 = vpop.permute.xlu0 %1111
  %s1114 = sor.u32 256, 16
  %1115 = vbcast.lane.b32.xlu0 %v1105, %s1114
  %v1116 = vpop.permute.xlu0 %1115
  %s1118 = sor.u32 256, 24
  %1119 = vbcast.lane.b32.xlu0 %v1105, %s1118
  %v1120 = vpop.permute.xlu0 %1119
  %s1122 = sor.u32 256, 32
  %1123 = vbcast.lane.b32.xlu0 %v1105, %s1122
  %v1124 = vpop.permute.xlu0 %1123
  %s1126 = sor.u32 256, 40
  %1127 = vbcast.lane.b32.xlu0 %v1105, %s1126
  %v1128 = vpop.permute.xlu0 %1127
  %s1130 = sor.u32 256, 48
  %1131 = vbcast.lane.b32.xlu0 %v1105, %s1130
  %v1132 = vpop.permute.xlu0 %1131
  %s1134 = sor.u32 256, 56
  %1135 = vbcast.lane.b32.xlu0 %v1105, %s1134
  %v1136 = vpop.permute.xlu0 %1135
  %s1138 = sor.u32 256, 64
  %1139 = vbcast.lane.b32.xlu0 %v1105, %s1138
  %v1140 = vpop.permute.xlu0 %1139
  %s1142 = sor.u32 256, 72
  %1143 = vbcast.lane.b32.xlu0 %v1105, %s1142
  %v1144 = vpop.permute.xlu0 %1143
  %s1146 = sor.u32 256, 80
  %1147 = vbcast.lane.b32.xlu0 %v1105, %s1146
  %v1148 = vpop.permute.xlu0 %1147
  %s1150 = sor.u32 256, 88
  %1151 = vbcast.lane.b32.xlu0 %v1105, %s1150
  %v1152 = vpop.permute.xlu0 %1151
  %s1154 = sor.u32 256, 96
  %1155 = vbcast.lane.b32.xlu0 %v1105, %s1154
  %v1156 = vpop.permute.xlu0 %1155
  %s1158 = sor.u32 256, 104
  %1159 = vbcast.lane.b32.xlu0 %v1105, %s1158
  %v1160 = vpop.permute.xlu0 %1159
  %s1162 = sor.u32 256, 112
  %1163 = vbcast.lane.b32.xlu0 %v1105, %s1162
  %v1164 = vpop.permute.xlu0 %1163
  %s1166 = sor.u32 256, 120
  %1167 = vbcast.lane.b32.xlu0 %v1105, %s1166
  %v1168 = vpop.permute.xlu0 %1167
  %v1169 = vld [vmem:[%s1] sm:$0x3]
  %v1170 = vld [vmem:[%s2] sm:$0x3]
  %v1171 = vlaneseq
  %v1172 = vshrl.u32 %v1171, 7
  %v1173 = vsub.s32 0, %v1172
  %v1174 = vrot.slane %v1169, %v1173
  %v1175 = vlaneseq
  %v1176 = vshrl.u32 %v1175, 7
  %v1177 = vsub.s32 1, %v1176
  %v1178 = vrot.slane %v1169, %v1177
  %v1179 = vand.u32 %v36, %v1174
  %v1180 = vand.u32 %v36, %v1178
  %v1181 = vand.u32 %v40, %v1174
  %v1182 = vand.u32 %v40, %v1178
  %v1183 = vand.u32 %v44, %v1174
  %v1184 = vand.u32 %v44, %v1178
  %v1185 = vand.u32 %v48, %v1174
  %v1186 = vand.u32 %v48, %v1178
  %v1187 = vand.u32 %v52, %v1174
  %v1188 = vand.u32 %v52, %v1178
  %v1189 = vand.u32 %v56, %v1174
  %v1190 = vand.u32 %v56, %v1178
  %v1191 = vand.u32 %v60, %v1174
  %v1192 = vand.u32 %v60, %v1178
  %v1193 = vand.u32 %v64, %v1174
  %v1194 = vand.u32 %v64, %v1178
  %v1195 = vand.u32 %v68, %v1174
  %v1196 = vand.u32 %v68, %v1178
  %v1197 = vand.u32 %v72, %v1174
  %v1198 = vand.u32 %v72, %v1178
  %v1199 = vand.u32 %v76, %v1174
  %v1200 = vand.u32 %v76, %v1178
  %v1201 = vand.u32 %v80, %v1174
  %v1202 = vand.u32 %v80, %v1178
  %v1203 = vand.u32 %v84, %v1174
  %v1204 = vand.u32 %v84, %v1178
  %v1205 = vand.u32 %v88, %v1174
  %v1206 = vand.u32 %v88, %v1178
  %v1207 = vand.u32 %v92, %v1174
  %v1208 = vand.u32 %v92, %v1178
  %v1209 = vand.u32 %v96, %v1174
  %v1210 = vand.u32 %v96, %v1178
  %v1211 = vand.u32 %v103, %v1174
  %v1212 = vand.u32 %v103, %v1178
  %v1213 = vand.u32 %v107, %v1174
  %v1214 = vand.u32 %v107, %v1178
  %v1215 = vand.u32 %v111, %v1174
  %v1216 = vand.u32 %v111, %v1178
  %v1217 = vand.u32 %v115, %v1174
  %v1218 = vand.u32 %v115, %v1178
  %v1219 = vand.u32 %v119, %v1174
  %v1220 = vand.u32 %v119, %v1178
  %v1221 = vand.u32 %v123, %v1174
  %v1222 = vand.u32 %v123, %v1178
  %v1223 = vand.u32 %v127, %v1174
  %v1224 = vand.u32 %v127, %v1178
  %v1225 = vand.u32 %v131, %v1174
  %v1226 = vand.u32 %v131, %v1178
  %v1227 = vand.u32 %v135, %v1174
  %v1228 = vand.u32 %v135, %v1178
  %v1229 = vand.u32 %v139, %v1174
  %v1230 = vand.u32 %v139, %v1178
  %v1231 = vand.u32 %v143, %v1174
  %v1232 = vand.u32 %v143, %v1178
  %v1233 = vand.u32 %v147, %v1174
  %v1234 = vand.u32 %v147, %v1178
  %v1235 = vand.u32 %v151, %v1174
  %v1236 = vand.u32 %v151, %v1178
  %v1237 = vand.u32 %v155, %v1174
  %v1238 = vand.u32 %v155, %v1178
  %v1239 = vand.u32 %v159, %v1174
  %v1240 = vand.u32 %v159, %v1178
  %v1241 = vand.u32 %v163, %v1174
  %v1242 = vand.u32 %v163, %v1178
  %v1243 = vand.u32 %v170, %v1174
  %v1244 = vand.u32 %v170, %v1178
  %v1245 = vand.u32 %v174, %v1174
  %v1246 = vand.u32 %v174, %v1178
  %v1247 = vand.u32 %v178, %v1174
  %v1248 = vand.u32 %v178, %v1178
  %v1249 = vand.u32 %v182, %v1174
  %v1250 = vand.u32 %v182, %v1178
  %v1251 = vand.u32 %v186, %v1174
  %v1252 = vand.u32 %v186, %v1178
  %v1253 = vand.u32 %v190, %v1174
  %v1254 = vand.u32 %v190, %v1178
  %v1255 = vand.u32 %v194, %v1174
  %v1256 = vand.u32 %v194, %v1178
  %v1257 = vand.u32 %v198, %v1174
  %v1258 = vand.u32 %v198, %v1178
  %v1259 = vand.u32 %v202, %v1174
  %v1260 = vand.u32 %v202, %v1178
  %v1261 = vand.u32 %v206, %v1174
  %v1262 = vand.u32 %v206, %v1178
  %v1263 = vand.u32 %v210, %v1174
  %v1264 = vand.u32 %v210, %v1178
  %v1265 = vand.u32 %v214, %v1174
  %v1266 = vand.u32 %v214, %v1178
  %v1267 = vand.u32 %v218, %v1174
  %v1268 = vand.u32 %v218, %v1178
  %v1269 = vand.u32 %v222, %v1174
  %v1270 = vand.u32 %v222, %v1178
  %v1271 = vand.u32 %v226, %v1174
  %v1272 = vand.u32 %v226, %v1178
  %v1273 = vand.u32 %v230, %v1174
  %v1274 = vand.u32 %v230, %v1178
  %v1275 = vand.u32 %v237, %v1174
  %v1276 = vand.u32 %v237, %v1178
  %v1277 = vand.u32 %v241, %v1174
  %v1278 = vand.u32 %v241, %v1178
  %v1279 = vand.u32 %v245, %v1174
  %v1280 = vand.u32 %v245, %v1178
  %v1281 = vand.u32 %v249, %v1174
  %v1282 = vand.u32 %v249, %v1178
  %v1283 = vand.u32 %v253, %v1174
  %v1284 = vand.u32 %v253, %v1178
  %v1285 = vand.u32 %v257, %v1174
  %v1286 = vand.u32 %v257, %v1178
  %v1287 = vand.u32 %v261, %v1174
  %v1288 = vand.u32 %v261, %v1178
  %v1289 = vand.u32 %v265, %v1174
  %v1290 = vand.u32 %v265, %v1178
  %v1291 = vand.u32 %v269, %v1174
  %v1292 = vand.u32 %v269, %v1178
  %v1293 = vand.u32 %v273, %v1174
  %v1294 = vand.u32 %v273, %v1178
  %v1295 = vand.u32 %v277, %v1174
  %v1296 = vand.u32 %v277, %v1178
  %v1297 = vand.u32 %v281, %v1174
  %v1298 = vand.u32 %v281, %v1178
  %v1299 = vand.u32 %v285, %v1174
  %v1300 = vand.u32 %v285, %v1178
  %v1301 = vand.u32 %v289, %v1174
  %v1302 = vand.u32 %v289, %v1178
  %v1303 = vand.u32 %v293, %v1174
  %v1304 = vand.u32 %v293, %v1178
  %v1305 = vand.u32 %v297, %v1174
  %v1306 = vand.u32 %v297, %v1178
  %v1307 = vand.u32 %v304, %v1174
  %v1308 = vand.u32 %v304, %v1178
  %v1309 = vand.u32 %v308, %v1174
  %v1310 = vand.u32 %v308, %v1178
  %v1311 = vand.u32 %v312, %v1174
  %v1312 = vand.u32 %v312, %v1178
  %v1313 = vand.u32 %v316, %v1174
  %v1314 = vand.u32 %v316, %v1178
  %v1315 = vand.u32 %v320, %v1174
  %v1316 = vand.u32 %v320, %v1178
  %v1317 = vand.u32 %v324, %v1174
  %v1318 = vand.u32 %v324, %v1178
  %v1319 = vand.u32 %v328, %v1174
  %v1320 = vand.u32 %v328, %v1178
  %v1321 = vand.u32 %v332, %v1174
  %v1322 = vand.u32 %v332, %v1178
  %v1323 = vand.u32 %v336, %v1174
  %v1324 = vand.u32 %v336, %v1178
  %v1325 = vand.u32 %v340, %v1174
  %v1326 = vand.u32 %v340, %v1178
  %v1327 = vand.u32 %v344, %v1174
  %v1328 = vand.u32 %v344, %v1178
  %v1329 = vand.u32 %v348, %v1174
  %v1330 = vand.u32 %v348, %v1178
  %v1331 = vand.u32 %v352, %v1174
  %v1332 = vand.u32 %v352, %v1178
  %v1333 = vand.u32 %v356, %v1174
  %v1334 = vand.u32 %v356, %v1178
  %v1335 = vand.u32 %v360, %v1174
  %v1336 = vand.u32 %v360, %v1178
  %v1337 = vand.u32 %v364, %v1174
  %v1338 = vand.u32 %v364, %v1178
  %v1339 = vand.u32 %v371, %v1174
  %v1340 = vand.u32 %v371, %v1178
  %v1341 = vand.u32 %v375, %v1174
  %v1342 = vand.u32 %v375, %v1178
  %v1343 = vand.u32 %v379, %v1174
  %v1344 = vand.u32 %v379, %v1178
  %v1345 = vand.u32 %v383, %v1174
  %v1346 = vand.u32 %v383, %v1178
  %v1347 = vand.u32 %v387, %v1174
  %v1348 = vand.u32 %v387, %v1178
  %v1349 = vand.u32 %v391, %v1174
  %v1350 = vand.u32 %v391, %v1178
  %v1351 = vand.u32 %v395, %v1174
  %v1352 = vand.u32 %v395, %v1178
  %v1353 = vand.u32 %v399, %v1174
  %v1354 = vand.u32 %v399, %v1178
  %v1355 = vand.u32 %v403, %v1174
  %v1356 = vand.u32 %v403, %v1178
  %v1357 = vand.u32 %v407, %v1174
  %v1358 = vand.u32 %v407, %v1178
  %v1359 = vand.u32 %v411, %v1174
  %v1360 = vand.u32 %v411, %v1178
  %v1361 = vand.u32 %v415, %v1174
  %v1362 = vand.u32 %v415, %v1178
  %v1363 = vand.u32 %v419, %v1174
  %v1364 = vand.u32 %v419, %v1178
  %v1365 = vand.u32 %v423, %v1174
  %v1366 = vand.u32 %v423, %v1178
  %v1367 = vand.u32 %v427, %v1174
  %v1368 = vand.u32 %v427, %v1178
  %v1369 = vand.u32 %v431, %v1174
  %v1370 = vand.u32 %v431, %v1178
  %v1371 = vand.u32 %v438, %v1174
  %v1372 = vand.u32 %v438, %v1178
  %v1373 = vand.u32 %v442, %v1174
  %v1374 = vand.u32 %v442, %v1178
  %v1375 = vand.u32 %v446, %v1174
  %v1376 = vand.u32 %v446, %v1178
  %v1377 = vand.u32 %v450, %v1174
  %v1378 = vand.u32 %v450, %v1178
  %v1379 = vand.u32 %v454, %v1174
  %v1380 = vand.u32 %v454, %v1178
  %v1381 = vand.u32 %v458, %v1174
  %v1382 = vand.u32 %v458, %v1178
  %v1383 = vand.u32 %v462, %v1174
  %v1384 = vand.u32 %v462, %v1178
  %v1385 = vand.u32 %v466, %v1174
  %v1386 = vand.u32 %v466, %v1178
  %v1387 = vand.u32 %v470, %v1174
  %v1388 = vand.u32 %v470, %v1178
  %v1389 = vand.u32 %v474, %v1174
  %v1390 = vand.u32 %v474, %v1178
  %v1391 = vand.u32 %v478, %v1174
  %v1392 = vand.u32 %v478, %v1178
  %v1393 = vand.u32 %v482, %v1174
  %v1394 = vand.u32 %v482, %v1178
  %v1395 = vand.u32 %v486, %v1174
  %v1396 = vand.u32 %v486, %v1178
  %v1397 = vand.u32 %v490, %v1174
  %v1398 = vand.u32 %v490, %v1178
  %v1399 = vand.u32 %v494, %v1174
  %v1400 = vand.u32 %v494, %v1178
  %v1401 = vand.u32 %v498, %v1174
  %v1402 = vand.u32 %v498, %v1178
  %v1403 = vand.u32 %v505, %v1174
  %v1404 = vand.u32 %v505, %v1178
  %v1405 = vand.u32 %v509, %v1174
  %v1406 = vand.u32 %v509, %v1178
  %v1407 = vand.u32 %v513, %v1174
  %v1408 = vand.u32 %v513, %v1178
  %v1409 = vand.u32 %v517, %v1174
  %v1410 = vand.u32 %v517, %v1178
  %v1411 = vand.u32 %v521, %v1174
  %v1412 = vand.u32 %v521, %v1178
  %v1413 = vand.u32 %v525, %v1174
  %v1414 = vand.u32 %v525, %v1178
  %v1415 = vand.u32 %v529, %v1174
  %v1416 = vand.u32 %v529, %v1178
  %v1417 = vand.u32 %v533, %v1174
  %v1418 = vand.u32 %v533, %v1178
  %v1419 = vand.u32 %v537, %v1174
  %v1420 = vand.u32 %v537, %v1178
  %v1421 = vand.u32 %v541, %v1174
  %v1422 = vand.u32 %v541, %v1178
  %v1423 = vand.u32 %v545, %v1174
  %v1424 = vand.u32 %v545, %v1178
  %v1425 = vand.u32 %v549, %v1174
  %v1426 = vand.u32 %v549, %v1178
  %v1427 = vand.u32 %v553, %v1174
  %v1428 = vand.u32 %v553, %v1178
  %v1429 = vand.u32 %v557, %v1174
  %v1430 = vand.u32 %v557, %v1178
  %v1431 = vand.u32 %v561, %v1174
  %v1432 = vand.u32 %v561, %v1178
  %v1433 = vand.u32 %v565, %v1174
  %v1434 = vand.u32 %v565, %v1178
  %v1435 = vand.u32 %v572, %v1174
  %v1436 = vand.u32 %v572, %v1178
  %v1437 = vand.u32 %v576, %v1174
  %v1438 = vand.u32 %v576, %v1178
  %v1439 = vand.u32 %v580, %v1174
  %v1440 = vand.u32 %v580, %v1178
  %v1441 = vand.u32 %v584, %v1174
  %v1442 = vand.u32 %v584, %v1178
  %v1443 = vand.u32 %v588, %v1174
  %v1444 = vand.u32 %v588, %v1178
  %v1445 = vand.u32 %v592, %v1174
  %v1446 = vand.u32 %v592, %v1178
  %v1447 = vand.u32 %v596, %v1174
  %v1448 = vand.u32 %v596, %v1178
  %v1449 = vand.u32 %v600, %v1174
  %v1450 = vand.u32 %v600, %v1178
  %v1451 = vand.u32 %v604, %v1174
  %v1452 = vand.u32 %v604, %v1178
  %v1453 = vand.u32 %v608, %v1174
  %v1454 = vand.u32 %v608, %v1178
  %v1455 = vand.u32 %v612, %v1174
  %v1456 = vand.u32 %v612, %v1178
  %v1457 = vand.u32 %v616, %v1174
  %v1458 = vand.u32 %v616, %v1178
  %v1459 = vand.u32 %v620, %v1174
  %v1460 = vand.u32 %v620, %v1178
  %v1461 = vand.u32 %v624, %v1174
  %v1462 = vand.u32 %v624, %v1178
  %v1463 = vand.u32 %v628, %v1174
  %v1464 = vand.u32 %v628, %v1178
  %v1465 = vand.u32 %v632, %v1174
  %v1466 = vand.u32 %v632, %v1178
  %v1467 = vand.u32 %v639, %v1174
  %v1468 = vand.u32 %v639, %v1178
  %v1469 = vand.u32 %v643, %v1174
  %v1470 = vand.u32 %v643, %v1178
  %v1471 = vand.u32 %v647, %v1174
  %v1472 = vand.u32 %v647, %v1178
  %v1473 = vand.u32 %v651, %v1174
  %v1474 = vand.u32 %v651, %v1178
  %v1475 = vand.u32 %v655, %v1174
  %v1476 = vand.u32 %v655, %v1178
  %v1477 = vand.u32 %v659, %v1174
  %v1478 = vand.u32 %v659, %v1178
  %v1479 = vand.u32 %v663, %v1174
  %v1480 = vand.u32 %v663, %v1178
  %v1481 = vand.u32 %v667, %v1174
  %v1482 = vand.u32 %v667, %v1178
  %v1483 = vand.u32 %v671, %v1174
  %v1484 = vand.u32 %v671, %v1178
  %v1485 = vand.u32 %v675, %v1174
  %v1486 = vand.u32 %v675, %v1178
  %v1487 = vand.u32 %v679, %v1174
  %v1488 = vand.u32 %v679, %v1178
  %v1489 = vand.u32 %v683, %v1174
  %v1490 = vand.u32 %v683, %v1178
  %v1491 = vand.u32 %v687, %v1174
  %v1492 = vand.u32 %v687, %v1178
  %v1493 = vand.u32 %v691, %v1174
  %v1494 = vand.u32 %v691, %v1178
  %v1495 = vand.u32 %v695, %v1174
  %v1496 = vand.u32 %v695, %v1178
  %v1497 = vand.u32 %v699, %v1174
  %v1498 = vand.u32 %v699, %v1178
  %v1499 = vand.u32 %v706, %v1174
  %v1500 = vand.u32 %v706, %v1178
  %v1501 = vand.u32 %v710, %v1174
  %v1502 = vand.u32 %v710, %v1178
  %v1503 = vand.u32 %v714, %v1174
  %v1504 = vand.u32 %v714, %v1178
  %v1505 = vand.u32 %v718, %v1174
  %v1506 = vand.u32 %v718, %v1178
  %v1507 = vand.u32 %v722, %v1174
  %v1508 = vand.u32 %v722, %v1178
  %v1509 = vand.u32 %v726, %v1174
  %v1510 = vand.u32 %v726, %v1178
  %v1511 = vand.u32 %v730, %v1174
  %v1512 = vand.u32 %v730, %v1178
  %v1513 = vand.u32 %v734, %v1174
  %v1514 = vand.u32 %v734, %v1178
  %v1515 = vand.u32 %v738, %v1174
  %v1516 = vand.u32 %v738, %v1178
  %v1517 = vand.u32 %v742, %v1174
  %v1518 = vand.u32 %v742, %v1178
  %v1519 = vand.u32 %v746, %v1174
  %v1520 = vand.u32 %v746, %v1178
  %v1521 = vand.u32 %v750, %v1174
  %v1522 = vand.u32 %v750, %v1178
  %v1523 = vand.u32 %v754, %v1174
  %v1524 = vand.u32 %v754, %v1178
  %v1525 = vand.u32 %v758, %v1174
  %v1526 = vand.u32 %v758, %v1178
  %v1527 = vand.u32 %v762, %v1174
  %v1528 = vand.u32 %v762, %v1178
  %v1529 = vand.u32 %v766, %v1174
  %v1530 = vand.u32 %v766, %v1178
  %v1531 = vand.u32 %v773, %v1174
  %v1532 = vand.u32 %v773, %v1178
  %v1533 = vand.u32 %v777, %v1174
  %v1534 = vand.u32 %v777, %v1178
  %v1535 = vand.u32 %v781, %v1174
  %v1536 = vand.u32 %v781, %v1178
  %v1537 = vand.u32 %v785, %v1174
  %v1538 = vand.u32 %v785, %v1178
  %v1539 = vand.u32 %v789, %v1174
  %v1540 = vand.u32 %v789, %v1178
  %v1541 = vand.u32 %v793, %v1174
  %v1542 = vand.u32 %v793, %v1178
  %v1543 = vand.u32 %v797, %v1174
  %v1544 = vand.u32 %v797, %v1178
  %v1545 = vand.u32 %v801, %v1174
  %v1546 = vand.u32 %v801, %v1178
  %v1547 = vand.u32 %v805, %v1174
  %v1548 = vand.u32 %v805, %v1178
  %v1549 = vand.u32 %v809, %v1174
  %v1550 = vand.u32 %v809, %v1178
  %v1551 = vand.u32 %v813, %v1174
  %v1552 = vand.u32 %v813, %v1178
  %v1553 = vand.u32 %v817, %v1174
  %v1554 = vand.u32 %v817, %v1178
  %v1555 = vand.u32 %v821, %v1174
  %v1556 = vand.u32 %v821, %v1178
  %v1557 = vand.u32 %v825, %v1174
  %v1558 = vand.u32 %v825, %v1178
  %v1559 = vand.u32 %v829, %v1174
  %v1560 = vand.u32 %v829, %v1178
  %v1561 = vand.u32 %v833, %v1174
  %v1562 = vand.u32 %v833, %v1178
  %v1563 = vand.u32 %v840, %v1174
  %v1564 = vand.u32 %v840, %v1178
  %v1565 = vand.u32 %v844, %v1174
  %v1566 = vand.u32 %v844, %v1178
  %v1567 = vand.u32 %v848, %v1174
  %v1568 = vand.u32 %v848, %v1178
  %v1569 = vand.u32 %v852, %v1174
  %v1570 = vand.u32 %v852, %v1178
  %v1571 = vand.u32 %v856, %v1174
  %v1572 = vand.u32 %v856, %v1178
  %v1573 = vand.u32 %v860, %v1174
  %v1574 = vand.u32 %v860, %v1178
  %v1575 = vand.u32 %v864, %v1174
  %v1576 = vand.u32 %v864, %v1178
  %v1577 = vand.u32 %v868, %v1174
  %v1578 = vand.u32 %v868, %v1178
  %v1579 = vand.u32 %v872, %v1174
  %v1580 = vand.u32 %v872, %v1178
  %v1581 = vand.u32 %v876, %v1174
  %v1582 = vand.u32 %v876, %v1178
  %v1583 = vand.u32 %v880, %v1174
  %v1584 = vand.u32 %v880, %v1178
  %v1585 = vand.u32 %v884, %v1174
  %v1586 = vand.u32 %v884, %v1178
  %v1587 = vand.u32 %v888, %v1174
  %v1588 = vand.u32 %v888, %v1178
  %v1589 = vand.u32 %v892, %v1174
  %v1590 = vand.u32 %v892, %v1178
  %v1591 = vand.u32 %v896, %v1174
  %v1592 = vand.u32 %v896, %v1178
  %v1593 = vand.u32 %v900, %v1174
  %v1594 = vand.u32 %v900, %v1178
  %v1595 = vand.u32 %v907, %v1174
  %v1596 = vand.u32 %v907, %v1178
  %v1597 = vand.u32 %v911, %v1174
  %v1598 = vand.u32 %v911, %v1178
  %v1599 = vand.u32 %v915, %v1174
  %v1600 = vand.u32 %v915, %v1178
  %v1601 = vand.u32 %v919, %v1174
  %v1602 = vand.u32 %v919, %v1178
  %v1603 = vand.u32 %v923, %v1174
  %v1604 = vand.u32 %v923, %v1178
  %v1605 = vand.u32 %v927, %v1174
  %v1606 = vand.u32 %v927, %v1178
  %v1607 = vand.u32 %v931, %v1174
  %v1608 = vand.u32 %v931, %v1178
  %v1609 = vand.u32 %v935, %v1174
  %v1610 = vand.u32 %v935, %v1178
  %v1611 = vand.u32 %v939, %v1174
  %v1612 = vand.u32 %v939, %v1178
  %v1613 = vand.u32 %v943, %v1174
  %v1614 = vand.u32 %v943, %v1178
  %v1615 = vand.u32 %v947, %v1174
  %v1616 = vand.u32 %v947, %v1178
  %v1617 = vand.u32 %v951, %v1174
  %v1618 = vand.u32 %v951, %v1178
  %v1619 = vand.u32 %v955, %v1174
  %v1620 = vand.u32 %v955, %v1178
  %v1621 = vand.u32 %v959, %v1174
  %v1622 = vand.u32 %v959, %v1178
  %v1623 = vand.u32 %v963, %v1174
  %v1624 = vand.u32 %v963, %v1178
  %v1625 = vand.u32 %v967, %v1174
  %v1626 = vand.u32 %v967, %v1178
  %v1627 = vand.u32 %v974, %v1174
  %v1628 = vand.u32 %v974, %v1178
  %v1629 = vand.u32 %v978, %v1174
  %v1630 = vand.u32 %v978, %v1178
  %v1631 = vand.u32 %v982, %v1174
  %v1632 = vand.u32 %v982, %v1178
  %v1633 = vand.u32 %v986, %v1174
  %v1634 = vand.u32 %v986, %v1178
  %v1635 = vand.u32 %v990, %v1174
  %v1636 = vand.u32 %v990, %v1178
  %v1637 = vand.u32 %v994, %v1174
  %v1638 = vand.u32 %v994, %v1178
  %v1639 = vand.u32 %v998, %v1174
  %v1640 = vand.u32 %v998, %v1178
  %v1641 = vand.u32 %v1002, %v1174
  %v1642 = vand.u32 %v1002, %v1178
  %v1643 = vand.u32 %v1006, %v1174
  %v1644 = vand.u32 %v1006, %v1178
  %v1645 = vand.u32 %v1010, %v1174
  %v1646 = vand.u32 %v1010, %v1178
  %v1647 = vand.u32 %v1014, %v1174
  %v1648 = vand.u32 %v1014, %v1178
  %v1649 = vand.u32 %v1018, %v1174
  %v1650 = vand.u32 %v1018, %v1178
  %v1651 = vand.u32 %v1022, %v1174
  %v1652 = vand.u32 %v1022, %v1178
  %v1653 = vand.u32 %v1026, %v1174
  %v1654 = vand.u32 %v1026, %v1178
  %v1655 = vand.u32 %v1030, %v1174
  %v1656 = vand.u32 %v1030, %v1178
  %v1657 = vand.u32 %v1034, %v1174
  %v1658 = vand.u32 %v1034, %v1178
  %v1659 = vand.u32 %v1041, %v1174
  %v1660 = vand.u32 %v1041, %v1178
  %v1661 = vand.u32 %v1045, %v1174
  %v1662 = vand.u32 %v1045, %v1178
  %v1663 = vand.u32 %v1049, %v1174
  %v1664 = vand.u32 %v1049, %v1178
  %v1665 = vand.u32 %v1053, %v1174
  %v1666 = vand.u32 %v1053, %v1178
  %v1667 = vand.u32 %v1057, %v1174
  %v1668 = vand.u32 %v1057, %v1178
  %v1669 = vand.u32 %v1061, %v1174
  %v1670 = vand.u32 %v1061, %v1178
  %v1671 = vand.u32 %v1065, %v1174
  %v1672 = vand.u32 %v1065, %v1178
  %v1673 = vand.u32 %v1069, %v1174
  %v1674 = vand.u32 %v1069, %v1178
  %v1675 = vand.u32 %v1073, %v1174
  %v1676 = vand.u32 %v1073, %v1178
  %v1677 = vand.u32 %v1077, %v1174
  %v1678 = vand.u32 %v1077, %v1178
  %v1679 = vand.u32 %v1081, %v1174
  %v1680 = vand.u32 %v1081, %v1178
  %v1681 = vand.u32 %v1085, %v1174
  %v1682 = vand.u32 %v1085, %v1178
  %v1683 = vand.u32 %v1089, %v1174
  %v1684 = vand.u32 %v1089, %v1178
  %v1685 = vand.u32 %v1093, %v1174
  %v1686 = vand.u32 %v1093, %v1178
  %v1687 = vand.u32 %v1097, %v1174
  %v1688 = vand.u32 %v1097, %v1178
  %v1689 = vand.u32 %v1101, %v1174
  %v1690 = vand.u32 %v1101, %v1178
  %v1691 = vand.u32 %v1108, %v1174
  %v1692 = vand.u32 %v1108, %v1178
  %v1693 = vand.u32 %v1112, %v1174
  %v1694 = vand.u32 %v1112, %v1178
  %v1695 = vand.u32 %v1116, %v1174
  %v1696 = vand.u32 %v1116, %v1178
  %v1697 = vand.u32 %v1120, %v1174
  %v1698 = vand.u32 %v1120, %v1178
  %v1699 = vand.u32 %v1124, %v1174
  %v1700 = vand.u32 %v1124, %v1178
  %v1701 = vand.u32 %v1128, %v1174
  %v1702 = vand.u32 %v1128, %v1178
  %v1703 = vand.u32 %v1132, %v1174
  %v1704 = vand.u32 %v1132, %v1178
  %v1705 = vand.u32 %v1136, %v1174
  %v1706 = vand.u32 %v1136, %v1178
  %v1707 = vand.u32 %v1140, %v1174
  %v1708 = vand.u32 %v1140, %v1178
  %v1709 = vand.u32 %v1144, %v1174
  %v1710 = vand.u32 %v1144, %v1178
  %v1711 = vand.u32 %v1148, %v1174
  %v1712 = vand.u32 %v1148, %v1178
  %v1713 = vand.u32 %v1152, %v1174
  %v1714 = vand.u32 %v1152, %v1178
  %v1715 = vand.u32 %v1156, %v1174
  %v1716 = vand.u32 %v1156, %v1178
  %v1717 = vand.u32 %v1160, %v1174
  %v1718 = vand.u32 %v1160, %v1178
  %v1719 = vand.u32 %v1164, %v1174
  %v1720 = vand.u32 %v1164, %v1178
  %v1721 = vand.u32 %v1168, %v1174
  %v1722 = vand.u32 %v1168, %v1178
  %v1723 = vlaneseq
  %v1724 = vshrl.u32 %v1723, 7
  %v1725 = vsub.s32 0, %v1724
  %v1726 = vrot.slane %v1170, %v1725
  %v1727 = vlaneseq
  %v1728 = vshrl.u32 %v1727, 7
  %v1729 = vsub.s32 1, %v1728
  %v1730 = vrot.slane %v1170, %v1729
  %vm1731 = vcmp.eq.s32.totalorder %v1179, %v1726
  %vm1732 = vcmp.eq.s32.totalorder %v1180, %v1730
  %vm1733 = vcmp.eq.s32.totalorder %v1181, %v1726
  %vm1734 = vcmp.eq.s32.totalorder %v1182, %v1730
  %vm1735 = vcmp.eq.s32.totalorder %v1183, %v1726
  %vm1736 = vcmp.eq.s32.totalorder %v1184, %v1730
  %vm1737 = vcmp.eq.s32.totalorder %v1185, %v1726
  %vm1738 = vcmp.eq.s32.totalorder %v1186, %v1730
  %vm1739 = vcmp.eq.s32.totalorder %v1187, %v1726
  %vm1740 = vcmp.eq.s32.totalorder %v1188, %v1730
  %vm1741 = vcmp.eq.s32.totalorder %v1189, %v1726
  %vm1742 = vcmp.eq.s32.totalorder %v1190, %v1730
  %vm1743 = vcmp.eq.s32.totalorder %v1191, %v1726
  %vm1744 = vcmp.eq.s32.totalorder %v1192, %v1730
  %vm1745 = vcmp.eq.s32.totalorder %v1193, %v1726
  %vm1746 = vcmp.eq.s32.totalorder %v1194, %v1730
  %vm1747 = vcmp.eq.s32.totalorder %v1195, %v1726
  %vm1748 = vcmp.eq.s32.totalorder %v1196, %v1730
  %vm1749 = vcmp.eq.s32.totalorder %v1197, %v1726
  %vm1750 = vcmp.eq.s32.totalorder %v1198, %v1730
  %vm1751 = vcmp.eq.s32.totalorder %v1199, %v1726
  %vm1752 = vcmp.eq.s32.totalorder %v1200, %v1730
  %vm1753 = vcmp.eq.s32.totalorder %v1201, %v1726
  %vm1754 = vcmp.eq.s32.totalorder %v1202, %v1730
  %vm1755 = vcmp.eq.s32.totalorder %v1203, %v1726
  %vm1756 = vcmp.eq.s32.totalorder %v1204, %v1730
  %vm1757 = vcmp.eq.s32.totalorder %v1205, %v1726
  %vm1758 = vcmp.eq.s32.totalorder %v1206, %v1730
  %vm1759 = vcmp.eq.s32.totalorder %v1207, %v1726
  %vm1760 = vcmp.eq.s32.totalorder %v1208, %v1730
  %vm1761 = vcmp.eq.s32.totalorder %v1209, %v1726
  %vm1762 = vcmp.eq.s32.totalorder %v1210, %v1730
  %vm1763 = vcmp.eq.s32.totalorder %v1211, %v1726
  %vm1764 = vcmp.eq.s32.totalorder %v1212, %v1730
  %vm1765 = vcmp.eq.s32.totalorder %v1213, %v1726
  %vm1766 = vcmp.eq.s32.totalorder %v1214, %v1730
  %vm1767 = vcmp.eq.s32.totalorder %v1215, %v1726
  %vm1768 = vcmp.eq.s32.totalorder %v1216, %v1730
  %vm1769 = vcmp.eq.s32.totalorder %v1217, %v1726
  %vm1770 = vcmp.eq.s32.totalorder %v1218, %v1730
  %vm1771 = vcmp.eq.s32.totalorder %v1219, %v1726
  %vm1772 = vcmp.eq.s32.totalorder %v1220, %v1730
  %vm1773 = vcmp.eq.s32.totalorder %v1221, %v1726
  %vm1774 = vcmp.eq.s32.totalorder %v1222, %v1730
  %vm1775 = vcmp.eq.s32.totalorder %v1223, %v1726
  %vm1776 = vcmp.eq.s32.totalorder %v1224, %v1730
  %vm1777 = vcmp.eq.s32.totalorder %v1225, %v1726
  %vm1778 = vcmp.eq.s32.totalorder %v1226, %v1730
  %vm1779 = vcmp.eq.s32.totalorder %v1227, %v1726
  %vm1780 = vcmp.eq.s32.totalorder %v1228, %v1730
  %vm1781 = vcmp.eq.s32.totalorder %v1229, %v1726
  %vm1782 = vcmp.eq.s32.totalorder %v1230, %v1730
  %vm1783 = vcmp.eq.s32.totalorder %v1231, %v1726
  %vm1784 = vcmp.eq.s32.totalorder %v1232, %v1730
  %vm1785 = vcmp.eq.s32.totalorder %v1233, %v1726
  %vm1786 = vcmp.eq.s32.totalorder %v1234, %v1730
  %vm1787 = vcmp.eq.s32.totalorder %v1235, %v1726
  %vm1788 = vcmp.eq.s32.totalorder %v1236, %v1730
  %vm1789 = vcmp.eq.s32.totalorder %v1237, %v1726
  %vm1790 = vcmp.eq.s32.totalorder %v1238, %v1730
  %vm1791 = vcmp.eq.s32.totalorder %v1239, %v1726
  %vm1792 = vcmp.eq.s32.totalorder %v1240, %v1730
  %vm1793 = vcmp.eq.s32.totalorder %v1241, %v1726
  %vm1794 = vcmp.eq.s32.totalorder %v1242, %v1730
  %vm1795 = vcmp.eq.s32.totalorder %v1243, %v1726
  %vm1796 = vcmp.eq.s32.totalorder %v1244, %v1730
  %vm1797 = vcmp.eq.s32.totalorder %v1245, %v1726
  %vm1798 = vcmp.eq.s32.totalorder %v1246, %v1730
  %vm1799 = vcmp.eq.s32.totalorder %v1247, %v1726
  %vm1800 = vcmp.eq.s32.totalorder %v1248, %v1730
  %vm1801 = vcmp.eq.s32.totalorder %v1249, %v1726
  %vm1802 = vcmp.eq.s32.totalorder %v1250, %v1730
  %vm1803 = vcmp.eq.s32.totalorder %v1251, %v1726
  %vm1804 = vcmp.eq.s32.totalorder %v1252, %v1730
  %vm1805 = vcmp.eq.s32.totalorder %v1253, %v1726
  %vm1806 = vcmp.eq.s32.totalorder %v1254, %v1730
  %vm1807 = vcmp.eq.s32.totalorder %v1255, %v1726
  %vm1808 = vcmp.eq.s32.totalorder %v1256, %v1730
  %vm1809 = vcmp.eq.s32.totalorder %v1257, %v1726
  %vm1810 = vcmp.eq.s32.totalorder %v1258, %v1730
  %vm1811 = vcmp.eq.s32.totalorder %v1259, %v1726
  %vm1812 = vcmp.eq.s32.totalorder %v1260, %v1730
  %vm1813 = vcmp.eq.s32.totalorder %v1261, %v1726
  %vm1814 = vcmp.eq.s32.totalorder %v1262, %v1730
  %vm1815 = vcmp.eq.s32.totalorder %v1263, %v1726
  %vm1816 = vcmp.eq.s32.totalorder %v1264, %v1730
  %vm1817 = vcmp.eq.s32.totalorder %v1265, %v1726
  %vm1818 = vcmp.eq.s32.totalorder %v1266, %v1730
  %vm1819 = vcmp.eq.s32.totalorder %v1267, %v1726
  %vm1820 = vcmp.eq.s32.totalorder %v1268, %v1730
  %vm1821 = vcmp.eq.s32.totalorder %v1269, %v1726
  %vm1822 = vcmp.eq.s32.totalorder %v1270, %v1730
  %vm1823 = vcmp.eq.s32.totalorder %v1271, %v1726
  %vm1824 = vcmp.eq.s32.totalorder %v1272, %v1730
  %vm1825 = vcmp.eq.s32.totalorder %v1273, %v1726
  %vm1826 = vcmp.eq.s32.totalorder %v1274, %v1730
  %vm1827 = vcmp.eq.s32.totalorder %v1275, %v1726
  %vm1828 = vcmp.eq.s32.totalorder %v1276, %v1730
  %vm1829 = vcmp.eq.s32.totalorder %v1277, %v1726
  %vm1830 = vcmp.eq.s32.totalorder %v1278, %v1730
  %vm1831 = vcmp.eq.s32.totalorder %v1279, %v1726
  %vm1832 = vcmp.eq.s32.totalorder %v1280, %v1730
  %vm1833 = vcmp.eq.s32.totalorder %v1281, %v1726
  %vm1834 = vcmp.eq.s32.totalorder %v1282, %v1730
  %vm1835 = vcmp.eq.s32.totalorder %v1283, %v1726
  %vm1836 = vcmp.eq.s32.totalorder %v1284, %v1730
  %vm1837 = vcmp.eq.s32.totalorder %v1285, %v1726
  %vm1838 = vcmp.eq.s32.totalorder %v1286, %v1730
  %vm1839 = vcmp.eq.s32.totalorder %v1287, %v1726
  %vm1840 = vcmp.eq.s32.totalorder %v1288, %v1730
  %vm1841 = vcmp.eq.s32.totalorder %v1289, %v1726
  %vm1842 = vcmp.eq.s32.totalorder %v1290, %v1730
  %vm1843 = vcmp.eq.s32.totalorder %v1291, %v1726
  %vm1844 = vcmp.eq.s32.totalorder %v1292, %v1730
  %vm1845 = vcmp.eq.s32.totalorder %v1293, %v1726
  %vm1846 = vcmp.eq.s32.totalorder %v1294, %v1730
  %vm1847 = vcmp.eq.s32.totalorder %v1295, %v1726
  %vm1848 = vcmp.eq.s32.totalorder %v1296, %v1730
  %vm1849 = vcmp.eq.s32.totalorder %v1297, %v1726
  %vm1850 = vcmp.eq.s32.totalorder %v1298, %v1730
  %vm1851 = vcmp.eq.s32.totalorder %v1299, %v1726
  %vm1852 = vcmp.eq.s32.totalorder %v1300, %v1730
  %vm1853 = vcmp.eq.s32.totalorder %v1301, %v1726
  %vm1854 = vcmp.eq.s32.totalorder %v1302, %v1730
  %vm1855 = vcmp.eq.s32.totalorder %v1303, %v1726
  %vm1856 = vcmp.eq.s32.totalorder %v1304, %v1730
  %vm1857 = vcmp.eq.s32.totalorder %v1305, %v1726
  %vm1858 = vcmp.eq.s32.totalorder %v1306, %v1730
  %vm1859 = vcmp.eq.s32.totalorder %v1307, %v1726
  %vm1860 = vcmp.eq.s32.totalorder %v1308, %v1730
  %vm1861 = vcmp.eq.s32.totalorder %v1309, %v1726
  %vm1862 = vcmp.eq.s32.totalorder %v1310, %v1730
  %vm1863 = vcmp.eq.s32.totalorder %v1311, %v1726
  %vm1864 = vcmp.eq.s32.totalorder %v1312, %v1730
  %vm1865 = vcmp.eq.s32.totalorder %v1313, %v1726
  %vm1866 = vcmp.eq.s32.totalorder %v1314, %v1730
  %vm1867 = vcmp.eq.s32.totalorder %v1315, %v1726
  %vm1868 = vcmp.eq.s32.totalorder %v1316, %v1730
  %vm1869 = vcmp.eq.s32.totalorder %v1317, %v1726
  %vm1870 = vcmp.eq.s32.totalorder %v1318, %v1730
  %vm1871 = vcmp.eq.s32.totalorder %v1319, %v1726
  %vm1872 = vcmp.eq.s32.totalorder %v1320, %v1730
  %vm1873 = vcmp.eq.s32.totalorder %v1321, %v1726
  %vm1874 = vcmp.eq.s32.totalorder %v1322, %v1730
  %vm1875 = vcmp.eq.s32.totalorder %v1323, %v1726
  %vm1876 = vcmp.eq.s32.totalorder %v1324, %v1730
  %vm1877 = vcmp.eq.s32.totalorder %v1325, %v1726
  %vm1878 = vcmp.eq.s32.totalorder %v1326, %v1730
  %vm1879 = vcmp.eq.s32.totalorder %v1327, %v1726
  %vm1880 = vcmp.eq.s32.totalorder %v1328, %v1730
  %vm1881 = vcmp.eq.s32.totalorder %v1329, %v1726
  %vm1882 = vcmp.eq.s32.totalorder %v1330, %v1730
  %vm1883 = vcmp.eq.s32.totalorder %v1331, %v1726
  %vm1884 = vcmp.eq.s32.totalorder %v1332, %v1730
  %vm1885 = vcmp.eq.s32.totalorder %v1333, %v1726
  %vm1886 = vcmp.eq.s32.totalorder %v1334, %v1730
  %vm1887 = vcmp.eq.s32.totalorder %v1335, %v1726
  %vm1888 = vcmp.eq.s32.totalorder %v1336, %v1730
  %vm1889 = vcmp.eq.s32.totalorder %v1337, %v1726
  %vm1890 = vcmp.eq.s32.totalorder %v1338, %v1730
  %vm1891 = vcmp.eq.s32.totalorder %v1339, %v1726
  %vm1892 = vcmp.eq.s32.totalorder %v1340, %v1730
  %vm1893 = vcmp.eq.s32.totalorder %v1341, %v1726
  %vm1894 = vcmp.eq.s32.totalorder %v1342, %v1730
  %vm1895 = vcmp.eq.s32.totalorder %v1343, %v1726
  %vm1896 = vcmp.eq.s32.totalorder %v1344, %v1730
  %vm1897 = vcmp.eq.s32.totalorder %v1345, %v1726
  %vm1898 = vcmp.eq.s32.totalorder %v1346, %v1730
  %vm1899 = vcmp.eq.s32.totalorder %v1347, %v1726
  %vm1900 = vcmp.eq.s32.totalorder %v1348, %v1730
  %vm1901 = vcmp.eq.s32.totalorder %v1349, %v1726
  %vm1902 = vcmp.eq.s32.totalorder %v1350, %v1730
  %vm1903 = vcmp.eq.s32.totalorder %v1351, %v1726
  %vm1904 = vcmp.eq.s32.totalorder %v1352, %v1730
  %vm1905 = vcmp.eq.s32.totalorder %v1353, %v1726
  %vm1906 = vcmp.eq.s32.totalorder %v1354, %v1730
  %vm1907 = vcmp.eq.s32.totalorder %v1355, %v1726
  %vm1908 = vcmp.eq.s32.totalorder %v1356, %v1730
  %vm1909 = vcmp.eq.s32.totalorder %v1357, %v1726
  %vm1910 = vcmp.eq.s32.totalorder %v1358, %v1730
  %vm1911 = vcmp.eq.s32.totalorder %v1359, %v1726
  %vm1912 = vcmp.eq.s32.totalorder %v1360, %v1730
  %vm1913 = vcmp.eq.s32.totalorder %v1361, %v1726
  %vm1914 = vcmp.eq.s32.totalorder %v1362, %v1730
  %vm1915 = vcmp.eq.s32.totalorder %v1363, %v1726
  %vm1916 = vcmp.eq.s32.totalorder %v1364, %v1730
  %vm1917 = vcmp.eq.s32.totalorder %v1365, %v1726
  %vm1918 = vcmp.eq.s32.totalorder %v1366, %v1730
  %vm1919 = vcmp.eq.s32.totalorder %v1367, %v1726
  %vm1920 = vcmp.eq.s32.totalorder %v1368, %v1730
  %vm1921 = vcmp.eq.s32.totalorder %v1369, %v1726
  %vm1922 = vcmp.eq.s32.totalorder %v1370, %v1730
  %vm1923 = vcmp.eq.s32.totalorder %v1371, %v1726
  %vm1924 = vcmp.eq.s32.totalorder %v1372, %v1730
  %vm1925 = vcmp.eq.s32.totalorder %v1373, %v1726
  %vm1926 = vcmp.eq.s32.totalorder %v1374, %v1730
  %vm1927 = vcmp.eq.s32.totalorder %v1375, %v1726
  %vm1928 = vcmp.eq.s32.totalorder %v1376, %v1730
  %vm1929 = vcmp.eq.s32.totalorder %v1377, %v1726
  %vm1930 = vcmp.eq.s32.totalorder %v1378, %v1730
  %vm1931 = vcmp.eq.s32.totalorder %v1379, %v1726
  %vm1932 = vcmp.eq.s32.totalorder %v1380, %v1730
  %vm1933 = vcmp.eq.s32.totalorder %v1381, %v1726
  %vm1934 = vcmp.eq.s32.totalorder %v1382, %v1730
  %vm1935 = vcmp.eq.s32.totalorder %v1383, %v1726
  %vm1936 = vcmp.eq.s32.totalorder %v1384, %v1730
  %vm1937 = vcmp.eq.s32.totalorder %v1385, %v1726
  %vm1938 = vcmp.eq.s32.totalorder %v1386, %v1730
  %vm1939 = vcmp.eq.s32.totalorder %v1387, %v1726
  %vm1940 = vcmp.eq.s32.totalorder %v1388, %v1730
  %vm1941 = vcmp.eq.s32.totalorder %v1389, %v1726
  %vm1942 = vcmp.eq.s32.totalorder %v1390, %v1730
  %vm1943 = vcmp.eq.s32.totalorder %v1391, %v1726
  %vm1944 = vcmp.eq.s32.totalorder %v1392, %v1730
  %vm1945 = vcmp.eq.s32.totalorder %v1393, %v1726
  %vm1946 = vcmp.eq.s32.totalorder %v1394, %v1730
  %vm1947 = vcmp.eq.s32.totalorder %v1395, %v1726
  %vm1948 = vcmp.eq.s32.totalorder %v1396, %v1730
  %vm1949 = vcmp.eq.s32.totalorder %v1397, %v1726
  %vm1950 = vcmp.eq.s32.totalorder %v1398, %v1730
  %vm1951 = vcmp.eq.s32.totalorder %v1399, %v1726
  %vm1952 = vcmp.eq.s32.totalorder %v1400, %v1730
  %vm1953 = vcmp.eq.s32.totalorder %v1401, %v1726
  %vm1954 = vcmp.eq.s32.totalorder %v1402, %v1730
  %vm1955 = vcmp.eq.s32.totalorder %v1403, %v1726
  %vm1956 = vcmp.eq.s32.totalorder %v1404, %v1730
  %vm1957 = vcmp.eq.s32.totalorder %v1405, %v1726
  %vm1958 = vcmp.eq.s32.totalorder %v1406, %v1730
  %vm1959 = vcmp.eq.s32.totalorder %v1407, %v1726
  %vm1960 = vcmp.eq.s32.totalorder %v1408, %v1730
  %vm1961 = vcmp.eq.s32.totalorder %v1409, %v1726
  %vm1962 = vcmp.eq.s32.totalorder %v1410, %v1730
  %vm1963 = vcmp.eq.s32.totalorder %v1411, %v1726
  %vm1964 = vcmp.eq.s32.totalorder %v1412, %v1730
  %vm1965 = vcmp.eq.s32.totalorder %v1413, %v1726
  %vm1966 = vcmp.eq.s32.totalorder %v1414, %v1730
  %vm1967 = vcmp.eq.s32.totalorder %v1415, %v1726
  %vm1968 = vcmp.eq.s32.totalorder %v1416, %v1730
  %vm1969 = vcmp.eq.s32.totalorder %v1417, %v1726
  %vm1970 = vcmp.eq.s32.totalorder %v1418, %v1730
  %vm1971 = vcmp.eq.s32.totalorder %v1419, %v1726
  %vm1972 = vcmp.eq.s32.totalorder %v1420, %v1730
  %vm1973 = vcmp.eq.s32.totalorder %v1421, %v1726
  %vm1974 = vcmp.eq.s32.totalorder %v1422, %v1730
  %vm1975 = vcmp.eq.s32.totalorder %v1423, %v1726
  %vm1976 = vcmp.eq.s32.totalorder %v1424, %v1730
  %vm1977 = vcmp.eq.s32.totalorder %v1425, %v1726
  %vm1978 = vcmp.eq.s32.totalorder %v1426, %v1730
  %vm1979 = vcmp.eq.s32.totalorder %v1427, %v1726
  %vm1980 = vcmp.eq.s32.totalorder %v1428, %v1730
  %vm1981 = vcmp.eq.s32.totalorder %v1429, %v1726
  %vm1982 = vcmp.eq.s32.totalorder %v1430, %v1730
  %vm1983 = vcmp.eq.s32.totalorder %v1431, %v1726
  %vm1984 = vcmp.eq.s32.totalorder %v1432, %v1730
  %vm1985 = vcmp.eq.s32.totalorder %v1433, %v1726
  %vm1986 = vcmp.eq.s32.totalorder %v1434, %v1730
  %vm1987 = vcmp.eq.s32.totalorder %v1435, %v1726
  %vm1988 = vcmp.eq.s32.totalorder %v1436, %v1730
  %vm1989 = vcmp.eq.s32.totalorder %v1437, %v1726
  %vm1990 = vcmp.eq.s32.totalorder %v1438, %v1730
  %vm1991 = vcmp.eq.s32.totalorder %v1439, %v1726
  %vm1992 = vcmp.eq.s32.totalorder %v1440, %v1730
  %vm1993 = vcmp.eq.s32.totalorder %v1441, %v1726
  %vm1994 = vcmp.eq.s32.totalorder %v1442, %v1730
  %vm1995 = vcmp.eq.s32.totalorder %v1443, %v1726
  %vm1996 = vcmp.eq.s32.totalorder %v1444, %v1730
  %vm1997 = vcmp.eq.s32.totalorder %v1445, %v1726
  %vm1998 = vcmp.eq.s32.totalorder %v1446, %v1730
  %vm1999 = vcmp.eq.s32.totalorder %v1447, %v1726
  %vm2000 = vcmp.eq.s32.totalorder %v1448, %v1730
  %vm2001 = vcmp.eq.s32.totalorder %v1449, %v1726
  %vm2002 = vcmp.eq.s32.totalorder %v1450, %v1730
  %vm2003 = vcmp.eq.s32.totalorder %v1451, %v1726
  %vm2004 = vcmp.eq.s32.totalorder %v1452, %v1730
  %vm2005 = vcmp.eq.s32.totalorder %v1453, %v1726
  %vm2006 = vcmp.eq.s32.totalorder %v1454, %v1730
  %vm2007 = vcmp.eq.s32.totalorder %v1455, %v1726
  %vm2008 = vcmp.eq.s32.totalorder %v1456, %v1730
  %vm2009 = vcmp.eq.s32.totalorder %v1457, %v1726
  %vm2010 = vcmp.eq.s32.totalorder %v1458, %v1730
  %vm2011 = vcmp.eq.s32.totalorder %v1459, %v1726
  %vm2012 = vcmp.eq.s32.totalorder %v1460, %v1730
  %vm2013 = vcmp.eq.s32.totalorder %v1461, %v1726
  %vm2014 = vcmp.eq.s32.totalorder %v1462, %v1730
  %vm2015 = vcmp.eq.s32.totalorder %v1463, %v1726
  %vm2016 = vcmp.eq.s32.totalorder %v1464, %v1730
  %vm2017 = vcmp.eq.s32.totalorder %v1465, %v1726
  %vm2018 = vcmp.eq.s32.totalorder %v1466, %v1730
  %vm2019 = vcmp.eq.s32.totalorder %v1467, %v1726
  %vm2020 = vcmp.eq.s32.totalorder %v1468, %v1730
  %vm2021 = vcmp.eq.s32.totalorder %v1469, %v1726
  %vm2022 = vcmp.eq.s32.totalorder %v1470, %v1730
  %vm2023 = vcmp.eq.s32.totalorder %v1471, %v1726
  %vm2024 = vcmp.eq.s32.totalorder %v1472, %v1730
  %vm2025 = vcmp.eq.s32.totalorder %v1473, %v1726
  %vm2026 = vcmp.eq.s32.totalorder %v1474, %v1730
  %vm2027 = vcmp.eq.s32.totalorder %v1475, %v1726
  %vm2028 = vcmp.eq.s32.totalorder %v1476, %v1730
  %vm2029 = vcmp.eq.s32.totalorder %v1477, %v1726
  %vm2030 = vcmp.eq.s32.totalorder %v1478, %v1730
  %vm2031 = vcmp.eq.s32.totalorder %v1479, %v1726
  %vm2032 = vcmp.eq.s32.totalorder %v1480, %v1730
  %vm2033 = vcmp.eq.s32.totalorder %v1481, %v1726
  %vm2034 = vcmp.eq.s32.totalorder %v1482, %v1730
  %vm2035 = vcmp.eq.s32.totalorder %v1483, %v1726
  %vm2036 = vcmp.eq.s32.totalorder %v1484, %v1730
  %vm2037 = vcmp.eq.s32.totalorder %v1485, %v1726
  %vm2038 = vcmp.eq.s32.totalorder %v1486, %v1730
  %vm2039 = vcmp.eq.s32.totalorder %v1487, %v1726
  %vm2040 = vcmp.eq.s32.totalorder %v1488, %v1730
  %vm2041 = vcmp.eq.s32.totalorder %v1489, %v1726
  %vm2042 = vcmp.eq.s32.totalorder %v1490, %v1730
  %vm2043 = vcmp.eq.s32.totalorder %v1491, %v1726
  %vm2044 = vcmp.eq.s32.totalorder %v1492, %v1730
  %vm2045 = vcmp.eq.s32.totalorder %v1493, %v1726
  %vm2046 = vcmp.eq.s32.totalorder %v1494, %v1730
  %vm2047 = vcmp.eq.s32.totalorder %v1495, %v1726
  %vm2048 = vcmp.eq.s32.totalorder %v1496, %v1730
  %vm2049 = vcmp.eq.s32.totalorder %v1497, %v1726
  %vm2050 = vcmp.eq.s32.totalorder %v1498, %v1730
  %vm2051 = vcmp.eq.s32.totalorder %v1499, %v1726
  %vm2052 = vcmp.eq.s32.totalorder %v1500, %v1730
  %vm2053 = vcmp.eq.s32.totalorder %v1501, %v1726
  %vm2054 = vcmp.eq.s32.totalorder %v1502, %v1730
  %vm2055 = vcmp.eq.s32.totalorder %v1503, %v1726
  %vm2056 = vcmp.eq.s32.totalorder %v1504, %v1730
  %vm2057 = vcmp.eq.s32.totalorder %v1505, %v1726
  %vm2058 = vcmp.eq.s32.totalorder %v1506, %v1730
  %vm2059 = vcmp.eq.s32.totalorder %v1507, %v1726
  %vm2060 = vcmp.eq.s32.totalorder %v1508, %v1730
  %vm2061 = vcmp.eq.s32.totalorder %v1509, %v1726
  %vm2062 = vcmp.eq.s32.totalorder %v1510, %v1730
  %vm2063 = vcmp.eq.s32.totalorder %v1511, %v1726
  %vm2064 = vcmp.eq.s32.totalorder %v1512, %v1730
  %vm2065 = vcmp.eq.s32.totalorder %v1513, %v1726
  %vm2066 = vcmp.eq.s32.totalorder %v1514, %v1730
  %vm2067 = vcmp.eq.s32.totalorder %v1515, %v1726
  %vm2068 = vcmp.eq.s32.totalorder %v1516, %v1730
  %vm2069 = vcmp.eq.s32.totalorder %v1517, %v1726
  %vm2070 = vcmp.eq.s32.totalorder %v1518, %v1730
  %vm2071 = vcmp.eq.s32.totalorder %v1519, %v1726
  %vm2072 = vcmp.eq.s32.totalorder %v1520, %v1730
  %vm2073 = vcmp.eq.s32.totalorder %v1521, %v1726
  %vm2074 = vcmp.eq.s32.totalorder %v1522, %v1730
  %vm2075 = vcmp.eq.s32.totalorder %v1523, %v1726
  %vm2076 = vcmp.eq.s32.totalorder %v1524, %v1730
  %vm2077 = vcmp.eq.s32.totalorder %v1525, %v1726
  %vm2078 = vcmp.eq.s32.totalorder %v1526, %v1730
  %vm2079 = vcmp.eq.s32.totalorder %v1527, %v1726
  %vm2080 = vcmp.eq.s32.totalorder %v1528, %v1730
  %vm2081 = vcmp.eq.s32.totalorder %v1529, %v1726
  %vm2082 = vcmp.eq.s32.totalorder %v1530, %v1730
  %vm2083 = vcmp.eq.s32.totalorder %v1531, %v1726
  %vm2084 = vcmp.eq.s32.totalorder %v1532, %v1730
  %vm2085 = vcmp.eq.s32.totalorder %v1533, %v1726
  %vm2086 = vcmp.eq.s32.totalorder %v1534, %v1730
  %vm2087 = vcmp.eq.s32.totalorder %v1535, %v1726
  %vm2088 = vcmp.eq.s32.totalorder %v1536, %v1730
  %vm2089 = vcmp.eq.s32.totalorder %v1537, %v1726
  %vm2090 = vcmp.eq.s32.totalorder %v1538, %v1730
  %vm2091 = vcmp.eq.s32.totalorder %v1539, %v1726
  %vm2092 = vcmp.eq.s32.totalorder %v1540, %v1730
  %vm2093 = vcmp.eq.s32.totalorder %v1541, %v1726
  %vm2094 = vcmp.eq.s32.totalorder %v1542, %v1730
  %vm2095 = vcmp.eq.s32.totalorder %v1543, %v1726
  %vm2096 = vcmp.eq.s32.totalorder %v1544, %v1730
  %vm2097 = vcmp.eq.s32.totalorder %v1545, %v1726
  %vm2098 = vcmp.eq.s32.totalorder %v1546, %v1730
  %vm2099 = vcmp.eq.s32.totalorder %v1547, %v1726
  %vm2100 = vcmp.eq.s32.totalorder %v1548, %v1730
  %vm2101 = vcmp.eq.s32.totalorder %v1549, %v1726
  %vm2102 = vcmp.eq.s32.totalorder %v1550, %v1730
  %vm2103 = vcmp.eq.s32.totalorder %v1551, %v1726
  %vm2104 = vcmp.eq.s32.totalorder %v1552, %v1730
  %vm2105 = vcmp.eq.s32.totalorder %v1553, %v1726
  %vm2106 = vcmp.eq.s32.totalorder %v1554, %v1730
  %vm2107 = vcmp.eq.s32.totalorder %v1555, %v1726
  %vm2108 = vcmp.eq.s32.totalorder %v1556, %v1730
  %vm2109 = vcmp.eq.s32.totalorder %v1557, %v1726
  %vm2110 = vcmp.eq.s32.totalorder %v1558, %v1730
  %vm2111 = vcmp.eq.s32.totalorder %v1559, %v1726
  %vm2112 = vcmp.eq.s32.totalorder %v1560, %v1730
  %vm2113 = vcmp.eq.s32.totalorder %v1561, %v1726
  %vm2114 = vcmp.eq.s32.totalorder %v1562, %v1730
  %vm2115 = vcmp.eq.s32.totalorder %v1563, %v1726
  %vm2116 = vcmp.eq.s32.totalorder %v1564, %v1730
  %vm2117 = vcmp.eq.s32.totalorder %v1565, %v1726
  %vm2118 = vcmp.eq.s32.totalorder %v1566, %v1730
  %vm2119 = vcmp.eq.s32.totalorder %v1567, %v1726
  %vm2120 = vcmp.eq.s32.totalorder %v1568, %v1730
  %vm2121 = vcmp.eq.s32.totalorder %v1569, %v1726
  %vm2122 = vcmp.eq.s32.totalorder %v1570, %v1730
  %vm2123 = vcmp.eq.s32.totalorder %v1571, %v1726
  %vm2124 = vcmp.eq.s32.totalorder %v1572, %v1730
  %vm2125 = vcmp.eq.s32.totalorder %v1573, %v1726
  %vm2126 = vcmp.eq.s32.totalorder %v1574, %v1730
  %vm2127 = vcmp.eq.s32.totalorder %v1575, %v1726
  %vm2128 = vcmp.eq.s32.totalorder %v1576, %v1730
  %vm2129 = vcmp.eq.s32.totalorder %v1577, %v1726
  %vm2130 = vcmp.eq.s32.totalorder %v1578, %v1730
  %vm2131 = vcmp.eq.s32.totalorder %v1579, %v1726
  %vm2132 = vcmp.eq.s32.totalorder %v1580, %v1730
  %vm2133 = vcmp.eq.s32.totalorder %v1581, %v1726
  %vm2134 = vcmp.eq.s32.totalorder %v1582, %v1730
  %vm2135 = vcmp.eq.s32.totalorder %v1583, %v1726
  %vm2136 = vcmp.eq.s32.totalorder %v1584, %v1730
  %vm2137 = vcmp.eq.s32.totalorder %v1585, %v1726
  %vm2138 = vcmp.eq.s32.totalorder %v1586, %v1730
  %vm2139 = vcmp.eq.s32.totalorder %v1587, %v1726
  %vm2140 = vcmp.eq.s32.totalorder %v1588, %v1730
  %vm2141 = vcmp.eq.s32.totalorder %v1589, %v1726
  %vm2142 = vcmp.eq.s32.totalorder %v1590, %v1730
  %vm2143 = vcmp.eq.s32.totalorder %v1591, %v1726
  %vm2144 = vcmp.eq.s32.totalorder %v1592, %v1730
  %vm2145 = vcmp.eq.s32.totalorder %v1593, %v1726
  %vm2146 = vcmp.eq.s32.totalorder %v1594, %v1730
  %vm2147 = vcmp.eq.s32.totalorder %v1595, %v1726
  %vm2148 = vcmp.eq.s32.totalorder %v1596, %v1730
  %vm2149 = vcmp.eq.s32.totalorder %v1597, %v1726
  %vm2150 = vcmp.eq.s32.totalorder %v1598, %v1730
  %vm2151 = vcmp.eq.s32.totalorder %v1599, %v1726
  %vm2152 = vcmp.eq.s32.totalorder %v1600, %v1730
  %vm2153 = vcmp.eq.s32.totalorder %v1601, %v1726
  %vm2154 = vcmp.eq.s32.totalorder %v1602, %v1730
  %vm2155 = vcmp.eq.s32.totalorder %v1603, %v1726
  %vm2156 = vcmp.eq.s32.totalorder %v1604, %v1730
  %vm2157 = vcmp.eq.s32.totalorder %v1605, %v1726
  %vm2158 = vcmp.eq.s32.totalorder %v1606, %v1730
  %vm2159 = vcmp.eq.s32.totalorder %v1607, %v1726
  %vm2160 = vcmp.eq.s32.totalorder %v1608, %v1730
  %vm2161 = vcmp.eq.s32.totalorder %v1609, %v1726
  %vm2162 = vcmp.eq.s32.totalorder %v1610, %v1730
  %vm2163 = vcmp.eq.s32.totalorder %v1611, %v1726
  %vm2164 = vcmp.eq.s32.totalorder %v1612, %v1730
  %vm2165 = vcmp.eq.s32.totalorder %v1613, %v1726
  %vm2166 = vcmp.eq.s32.totalorder %v1614, %v1730
  %vm2167 = vcmp.eq.s32.totalorder %v1615, %v1726
  %vm2168 = vcmp.eq.s32.totalorder %v1616, %v1730
  %vm2169 = vcmp.eq.s32.totalorder %v1617, %v1726
  %vm2170 = vcmp.eq.s32.totalorder %v1618, %v1730
  %vm2171 = vcmp.eq.s32.totalorder %v1619, %v1726
  %vm2172 = vcmp.eq.s32.totalorder %v1620, %v1730
  %vm2173 = vcmp.eq.s32.totalorder %v1621, %v1726
  %vm2174 = vcmp.eq.s32.totalorder %v1622, %v1730
  %vm2175 = vcmp.eq.s32.totalorder %v1623, %v1726
  %vm2176 = vcmp.eq.s32.totalorder %v1624, %v1730
  %vm2177 = vcmp.eq.s32.totalorder %v1625, %v1726
  %vm2178 = vcmp.eq.s32.totalorder %v1626, %v1730
  %vm2179 = vcmp.eq.s32.totalorder %v1627, %v1726
  %vm2180 = vcmp.eq.s32.totalorder %v1628, %v1730
  %vm2181 = vcmp.eq.s32.totalorder %v1629, %v1726
  %vm2182 = vcmp.eq.s32.totalorder %v1630, %v1730
  %vm2183 = vcmp.eq.s32.totalorder %v1631, %v1726
  %vm2184 = vcmp.eq.s32.totalorder %v1632, %v1730
  %vm2185 = vcmp.eq.s32.totalorder %v1633, %v1726
  %vm2186 = vcmp.eq.s32.totalorder %v1634, %v1730
  %vm2187 = vcmp.eq.s32.totalorder %v1635, %v1726
  %vm2188 = vcmp.eq.s32.totalorder %v1636, %v1730
  %vm2189 = vcmp.eq.s32.totalorder %v1637, %v1726
  %vm2190 = vcmp.eq.s32.totalorder %v1638, %v1730
  %vm2191 = vcmp.eq.s32.totalorder %v1639, %v1726
  %vm2192 = vcmp.eq.s32.totalorder %v1640, %v1730
  %vm2193 = vcmp.eq.s32.totalorder %v1641, %v1726
  %vm2194 = vcmp.eq.s32.totalorder %v1642, %v1730
  %vm2195 = vcmp.eq.s32.totalorder %v1643, %v1726
  %vm2196 = vcmp.eq.s32.totalorder %v1644, %v1730
  %vm2197 = vcmp.eq.s32.totalorder %v1645, %v1726
  %vm2198 = vcmp.eq.s32.totalorder %v1646, %v1730
  %vm2199 = vcmp.eq.s32.totalorder %v1647, %v1726
  %vm2200 = vcmp.eq.s32.totalorder %v1648, %v1730
  %vm2201 = vcmp.eq.s32.totalorder %v1649, %v1726
  %vm2202 = vcmp.eq.s32.totalorder %v1650, %v1730
  %vm2203 = vcmp.eq.s32.totalorder %v1651, %v1726
  %vm2204 = vcmp.eq.s32.totalorder %v1652, %v1730
  %vm2205 = vcmp.eq.s32.totalorder %v1653, %v1726
  %vm2206 = vcmp.eq.s32.totalorder %v1654, %v1730
  %vm2207 = vcmp.eq.s32.totalorder %v1655, %v1726
  %vm2208 = vcmp.eq.s32.totalorder %v1656, %v1730
  %vm2209 = vcmp.eq.s32.totalorder %v1657, %v1726
  %vm2210 = vcmp.eq.s32.totalorder %v1658, %v1730
  %vm2211 = vcmp.eq.s32.totalorder %v1659, %v1726
  %vm2212 = vcmp.eq.s32.totalorder %v1660, %v1730
  %vm2213 = vcmp.eq.s32.totalorder %v1661, %v1726
  %vm2214 = vcmp.eq.s32.totalorder %v1662, %v1730
  %vm2215 = vcmp.eq.s32.totalorder %v1663, %v1726
  %vm2216 = vcmp.eq.s32.totalorder %v1664, %v1730
  %vm2217 = vcmp.eq.s32.totalorder %v1665, %v1726
  %vm2218 = vcmp.eq.s32.totalorder %v1666, %v1730
  %vm2219 = vcmp.eq.s32.totalorder %v1667, %v1726
  %vm2220 = vcmp.eq.s32.totalorder %v1668, %v1730
  %vm2221 = vcmp.eq.s32.totalorder %v1669, %v1726
  %vm2222 = vcmp.eq.s32.totalorder %v1670, %v1730
  %vm2223 = vcmp.eq.s32.totalorder %v1671, %v1726
  %vm2224 = vcmp.eq.s32.totalorder %v1672, %v1730
  %vm2225 = vcmp.eq.s32.totalorder %v1673, %v1726
  %vm2226 = vcmp.eq.s32.totalorder %v1674, %v1730
  %vm2227 = vcmp.eq.s32.totalorder %v1675, %v1726
  %vm2228 = vcmp.eq.s32.totalorder %v1676, %v1730
  %vm2229 = vcmp.eq.s32.totalorder %v1677, %v1726
  %vm2230 = vcmp.eq.s32.totalorder %v1678, %v1730
  %vm2231 = vcmp.eq.s32.totalorder %v1679, %v1726
  %vm2232 = vcmp.eq.s32.totalorder %v1680, %v1730
  %vm2233 = vcmp.eq.s32.totalorder %v1681, %v1726
  %vm2234 = vcmp.eq.s32.totalorder %v1682, %v1730
  %vm2235 = vcmp.eq.s32.totalorder %v1683, %v1726
  %vm2236 = vcmp.eq.s32.totalorder %v1684, %v1730
  %vm2237 = vcmp.eq.s32.totalorder %v1685, %v1726
  %vm2238 = vcmp.eq.s32.totalorder %v1686, %v1730
  %vm2239 = vcmp.eq.s32.totalorder %v1687, %v1726
  %vm2240 = vcmp.eq.s32.totalorder %v1688, %v1730
  %vm2241 = vcmp.eq.s32.totalorder %v1689, %v1726
  %vm2242 = vcmp.eq.s32.totalorder %v1690, %v1730
  %vm2243 = vcmp.eq.s32.totalorder %v1691, %v1726
  %vm2244 = vcmp.eq.s32.totalorder %v1692, %v1730
  %vm2245 = vcmp.eq.s32.totalorder %v1693, %v1726
  %vm2246 = vcmp.eq.s32.totalorder %v1694, %v1730
  %vm2247 = vcmp.eq.s32.totalorder %v1695, %v1726
  %vm2248 = vcmp.eq.s32.totalorder %v1696, %v1730
  %vm2249 = vcmp.eq.s32.totalorder %v1697, %v1726
  %vm2250 = vcmp.eq.s32.totalorder %v1698, %v1730
  %vm2251 = vcmp.eq.s32.totalorder %v1699, %v1726
  %vm2252 = vcmp.eq.s32.totalorder %v1700, %v1730
  %vm2253 = vcmp.eq.s32.totalorder %v1701, %v1726
  %vm2254 = vcmp.eq.s32.totalorder %v1702, %v1730
  %vm2255 = vcmp.eq.s32.totalorder %v1703, %v1726
  %vm2256 = vcmp.eq.s32.totalorder %v1704, %v1730
  %vm2257 = vcmp.eq.s32.totalorder %v1705, %v1726
  %vm2258 = vcmp.eq.s32.totalorder %v1706, %v1730
  %vm2259 = vcmp.eq.s32.totalorder %v1707, %v1726
  %vm2260 = vcmp.eq.s32.totalorder %v1708, %v1730
  %vm2261 = vcmp.eq.s32.totalorder %v1709, %v1726
  %vm2262 = vcmp.eq.s32.totalorder %v1710, %v1730
  %vm2263 = vcmp.eq.s32.totalorder %v1711, %v1726
  %vm2264 = vcmp.eq.s32.totalorder %v1712, %v1730
  %vm2265 = vcmp.eq.s32.totalorder %v1713, %v1726
  %vm2266 = vcmp.eq.s32.totalorder %v1714, %v1730
  %vm2267 = vcmp.eq.s32.totalorder %v1715, %v1726
  %vm2268 = vcmp.eq.s32.totalorder %v1716, %v1730
  %vm2269 = vcmp.eq.s32.totalorder %v1717, %v1726
  %vm2270 = vcmp.eq.s32.totalorder %v1718, %v1730
  %vm2271 = vcmp.eq.s32.totalorder %v1719, %v1726
  %vm2272 = vcmp.eq.s32.totalorder %v1720, %v1730
  %vm2273 = vcmp.eq.s32.totalorder %v1721, %v1726
  %vm2274 = vcmp.eq.s32.totalorder %v1722, %v1730
  %v2275 = vsel %vm1731, 1, 0
  %v2276 = vsel %vm1732, 1, 0
  %v2277 = vsel %vm1733, 1, 0
  %v2278 = vsel %vm1734, 1, 0
  %v2279 = vsel %vm1735, 1, 0
  %v2280 = vsel %vm1736, 1, 0
  %v2281 = vsel %vm1737, 1, 0
  %v2282 = vsel %vm1738, 1, 0
  %v2283 = vsel %vm1739, 1, 0
  %v2284 = vsel %vm1740, 1, 0
  %v2285 = vsel %vm1741, 1, 0
  %v2286 = vsel %vm1742, 1, 0
  %v2287 = vsel %vm1743, 1, 0
  %v2288 = vsel %vm1744, 1, 0
  %v2289 = vsel %vm1745, 1, 0
  %v2290 = vsel %vm1746, 1, 0
  %v2291 = vsel %vm1747, 1, 0
  %v2292 = vsel %vm1748, 1, 0
  %v2293 = vsel %vm1749, 1, 0
  %v2294 = vsel %vm1750, 1, 0
  %v2295 = vsel %vm1751, 1, 0
  %v2296 = vsel %vm1752, 1, 0
  %v2297 = vsel %vm1753, 1, 0
  %v2298 = vsel %vm1754, 1, 0
  %v2299 = vsel %vm1755, 1, 0
  %v2300 = vsel %vm1756, 1, 0
  %v2301 = vsel %vm1757, 1, 0
  %v2302 = vsel %vm1758, 1, 0
  %v2303 = vsel %vm1759, 1, 0
  %v2304 = vsel %vm1760, 1, 0
  %v2305 = vsel %vm1761, 1, 0
  %v2306 = vsel %vm1762, 1, 0
  %v2307 = vsel %vm1763, 1, 0
  %v2308 = vsel %vm1764, 1, 0
  %v2309 = vsel %vm1765, 1, 0
  %v2310 = vsel %vm1766, 1, 0
  %v2311 = vsel %vm1767, 1, 0
  %v2312 = vsel %vm1768, 1, 0
  %v2313 = vsel %vm1769, 1, 0
  %v2314 = vsel %vm1770, 1, 0
  %v2315 = vsel %vm1771, 1, 0
  %v2316 = vsel %vm1772, 1, 0
  %v2317 = vsel %vm1773, 1, 0
  %v2318 = vsel %vm1774, 1, 0
  %v2319 = vsel %vm1775, 1, 0
  %v2320 = vsel %vm1776, 1, 0
  %v2321 = vsel %vm1777, 1, 0
  %v2322 = vsel %vm1778, 1, 0
  %v2323 = vsel %vm1779, 1, 0
  %v2324 = vsel %vm1780, 1, 0
  %v2325 = vsel %vm1781, 1, 0
  %v2326 = vsel %vm1782, 1, 0
  %v2327 = vsel %vm1783, 1, 0
  %v2328 = vsel %vm1784, 1, 0
  %v2329 = vsel %vm1785, 1, 0
  %v2330 = vsel %vm1786, 1, 0
  %v2331 = vsel %vm1787, 1, 0
  %v2332 = vsel %vm1788, 1, 0
  %v2333 = vsel %vm1789, 1, 0
  %v2334 = vsel %vm1790, 1, 0
  %v2335 = vsel %vm1791, 1, 0
  %v2336 = vsel %vm1792, 1, 0
  %v2337 = vsel %vm1793, 1, 0
  %v2338 = vsel %vm1794, 1, 0
  %v2339 = vsel %vm1795, 1, 0
  %v2340 = vsel %vm1796, 1, 0
  %v2341 = vsel %vm1797, 1, 0
  %v2342 = vsel %vm1798, 1, 0
  %v2343 = vsel %vm1799, 1, 0
  %v2344 = vsel %vm1800, 1, 0
  %v2345 = vsel %vm1801, 1, 0
  %v2346 = vsel %vm1802, 1, 0
  %v2347 = vsel %vm1803, 1, 0
  %v2348 = vsel %vm1804, 1, 0
  %v2349 = vsel %vm1805, 1, 0
  %v2350 = vsel %vm1806, 1, 0
  %v2351 = vsel %vm1807, 1, 0
  %v2352 = vsel %vm1808, 1, 0
  %v2353 = vsel %vm1809, 1, 0
  %v2354 = vsel %vm1810, 1, 0
  %v2355 = vsel %vm1811, 1, 0
  %v2356 = vsel %vm1812, 1, 0
  %v2357 = vsel %vm1813, 1, 0
  %v2358 = vsel %vm1814, 1, 0
  %v2359 = vsel %vm1815, 1, 0
  %v2360 = vsel %vm1816, 1, 0
  %v2361 = vsel %vm1817, 1, 0
  %v2362 = vsel %vm1818, 1, 0
  %v2363 = vsel %vm1819, 1, 0
  %v2364 = vsel %vm1820, 1, 0
  %v2365 = vsel %vm1821, 1, 0
  %v2366 = vsel %vm1822, 1, 0
  %v2367 = vsel %vm1823, 1, 0
  %v2368 = vsel %vm1824, 1, 0
  %v2369 = vsel %vm1825, 1, 0
  %v2370 = vsel %vm1826, 1, 0
  %v2371 = vsel %vm1827, 1, 0
  %v2372 = vsel %vm1828, 1, 0
  %v2373 = vsel %vm1829, 1, 0
  %v2374 = vsel %vm1830, 1, 0
  %v2375 = vsel %vm1831, 1, 0
  %v2376 = vsel %vm1832, 1, 0
  %v2377 = vsel %vm1833, 1, 0
  %v2378 = vsel %vm1834, 1, 0
  %v2379 = vsel %vm1835, 1, 0
  %v2380 = vsel %vm1836, 1, 0
  %v2381 = vsel %vm1837, 1, 0
  %v2382 = vsel %vm1838, 1, 0
  %v2383 = vsel %vm1839, 1, 0
  %v2384 = vsel %vm1840, 1, 0
  %v2385 = vsel %vm1841, 1, 0
  %v2386 = vsel %vm1842, 1, 0
  %v2387 = vsel %vm1843, 1, 0
  %v2388 = vsel %vm1844, 1, 0
  %v2389 = vsel %vm1845, 1, 0
  %v2390 = vsel %vm1846, 1, 0
  %v2391 = vsel %vm1847, 1, 0
  %v2392 = vsel %vm1848, 1, 0
  %v2393 = vsel %vm1849, 1, 0
  %v2394 = vsel %vm1850, 1, 0
  %v2395 = vsel %vm1851, 1, 0
  %v2396 = vsel %vm1852, 1, 0
  %v2397 = vsel %vm1853, 1, 0
  %v2398 = vsel %vm1854, 1, 0
  %v2399 = vsel %vm1855, 1, 0
  %v2400 = vsel %vm1856, 1, 0
  %v2401 = vsel %vm1857, 1, 0
  %v2402 = vsel %vm1858, 1, 0
  %v2403 = vsel %vm1859, 1, 0
  %v2404 = vsel %vm1860, 1, 0
  %v2405 = vsel %vm1861, 1, 0
  %v2406 = vsel %vm1862, 1, 0
  %v2407 = vsel %vm1863, 1, 0
  %v2408 = vsel %vm1864, 1, 0
  %v2409 = vsel %vm1865, 1, 0
  %v2410 = vsel %vm1866, 1, 0
  %v2411 = vsel %vm1867, 1, 0
  %v2412 = vsel %vm1868, 1, 0
  %v2413 = vsel %vm1869, 1, 0
  %v2414 = vsel %vm1870, 1, 0
  %v2415 = vsel %vm1871, 1, 0
  %v2416 = vsel %vm1872, 1, 0
  %v2417 = vsel %vm1873, 1, 0
  %v2418 = vsel %vm1874, 1, 0
  %v2419 = vsel %vm1875, 1, 0
  %v2420 = vsel %vm1876, 1, 0
  %v2421 = vsel %vm1877, 1, 0
  %v2422 = vsel %vm1878, 1, 0
  %v2423 = vsel %vm1879, 1, 0
  %v2424 = vsel %vm1880, 1, 0
  %v2425 = vsel %vm1881, 1, 0
  %v2426 = vsel %vm1882, 1, 0
  %v2427 = vsel %vm1883, 1, 0
  %v2428 = vsel %vm1884, 1, 0
  %v2429 = vsel %vm1885, 1, 0
  %v2430 = vsel %vm1886, 1, 0
  %v2431 = vsel %vm1887, 1, 0
  %v2432 = vsel %vm1888, 1, 0
  %v2433 = vsel %vm1889, 1, 0
  %v2434 = vsel %vm1890, 1, 0
  %v2435 = vsel %vm1891, 1, 0
  %v2436 = vsel %vm1892, 1, 0
  %v2437 = vsel %vm1893, 1, 0
  %v2438 = vsel %vm1894, 1, 0
  %v2439 = vsel %vm1895, 1, 0
  %v2440 = vsel %vm1896, 1, 0
  %v2441 = vsel %vm1897, 1, 0
  %v2442 = vsel %vm1898, 1, 0
  %v2443 = vsel %vm1899, 1, 0
  %v2444 = vsel %vm1900, 1, 0
  %v2445 = vsel %vm1901, 1, 0
  %v2446 = vsel %vm1902, 1, 0
  %v2447 = vsel %vm1903, 1, 0
  %v2448 = vsel %vm1904, 1, 0
  %v2449 = vsel %vm1905, 1, 0
  %v2450 = vsel %vm1906, 1, 0
  %v2451 = vsel %vm1907, 1, 0
  %v2452 = vsel %vm1908, 1, 0
  %v2453 = vsel %vm1909, 1, 0
  %v2454 = vsel %vm1910, 1, 0
  %v2455 = vsel %vm1911, 1, 0
  %v2456 = vsel %vm1912, 1, 0
  %v2457 = vsel %vm1913, 1, 0
  %v2458 = vsel %vm1914, 1, 0
  %v2459 = vsel %vm1915, 1, 0
  %v2460 = vsel %vm1916, 1, 0
  %v2461 = vsel %vm1917, 1, 0
  %v2462 = vsel %vm1918, 1, 0
  %v2463 = vsel %vm1919, 1, 0
  %v2464 = vsel %vm1920, 1, 0
  %v2465 = vsel %vm1921, 1, 0
  %v2466 = vsel %vm1922, 1, 0
  %v2467 = vsel %vm1923, 1, 0
  %v2468 = vsel %vm1924, 1, 0
  %v2469 = vsel %vm1925, 1, 0
  %v2470 = vsel %vm1926, 1, 0
  %v2471 = vsel %vm1927, 1, 0
  %v2472 = vsel %vm1928, 1, 0
  %v2473 = vsel %vm1929, 1, 0
  %v2474 = vsel %vm1930, 1, 0
  %v2475 = vsel %vm1931, 1, 0
  %v2476 = vsel %vm1932, 1, 0
  %v2477 = vsel %vm1933, 1, 0
  %v2478 = vsel %vm1934, 1, 0
  %v2479 = vsel %vm1935, 1, 0
  %v2480 = vsel %vm1936, 1, 0
  %v2481 = vsel %vm1937, 1, 0
  %v2482 = vsel %vm1938, 1, 0
  %v2483 = vsel %vm1939, 1, 0
  %v2484 = vsel %vm1940, 1, 0
  %v2485 = vsel %vm1941, 1, 0
  %v2486 = vsel %vm1942, 1, 0
  %v2487 = vsel %vm1943, 1, 0
  %v2488 = vsel %vm1944, 1, 0
  %v2489 = vsel %vm1945, 1, 0
  %v2490 = vsel %vm1946, 1, 0
  %v2491 = vsel %vm1947, 1, 0
  %v2492 = vsel %vm1948, 1, 0
  %v2493 = vsel %vm1949, 1, 0
  %v2494 = vsel %vm1950, 1, 0
  %v2495 = vsel %vm1951, 1, 0
  %v2496 = vsel %vm1952, 1, 0
  %v2497 = vsel %vm1953, 1, 0
  %v2498 = vsel %vm1954, 1, 0
  %v2499 = vsel %vm1955, 1, 0
  %v2500 = vsel %vm1956, 1, 0
  %v2501 = vsel %vm1957, 1, 0
  %v2502 = vsel %vm1958, 1, 0
  %v2503 = vsel %vm1959, 1, 0
  %v2504 = vsel %vm1960, 1, 0
  %v2505 = vsel %vm1961, 1, 0
  %v2506 = vsel %vm1962, 1, 0
  %v2507 = vsel %vm1963, 1, 0
  %v2508 = vsel %vm1964, 1, 0
  %v2509 = vsel %vm1965, 1, 0
  %v2510 = vsel %vm1966, 1, 0
  %v2511 = vsel %vm1967, 1, 0
  %v2512 = vsel %vm1968, 1, 0
  %v2513 = vsel %vm1969, 1, 0
  %v2514 = vsel %vm1970, 1, 0
  %v2515 = vsel %vm1971, 1, 0
  %v2516 = vsel %vm1972, 1, 0
  %v2517 = vsel %vm1973, 1, 0
  %v2518 = vsel %vm1974, 1, 0
  %v2519 = vsel %vm1975, 1, 0
  %v2520 = vsel %vm1976, 1, 0
  %v2521 = vsel %vm1977, 1, 0
  %v2522 = vsel %vm1978, 1, 0
  %v2523 = vsel %vm1979, 1, 0
  %v2524 = vsel %vm1980, 1, 0
  %v2525 = vsel %vm1981, 1, 0
  %v2526 = vsel %vm1982, 1, 0
  %v2527 = vsel %vm1983, 1, 0
  %v2528 = vsel %vm1984, 1, 0
  %v2529 = vsel %vm1985, 1, 0
  %v2530 = vsel %vm1986, 1, 0
  %v2531 = vsel %vm1987, 1, 0
  %v2532 = vsel %vm1988, 1, 0
  %v2533 = vsel %vm1989, 1, 0
  %v2534 = vsel %vm1990, 1, 0
  %v2535 = vsel %vm1991, 1, 0
  %v2536 = vsel %vm1992, 1, 0
  %v2537 = vsel %vm1993, 1, 0
  %v2538 = vsel %vm1994, 1, 0
  %v2539 = vsel %vm1995, 1, 0
  %v2540 = vsel %vm1996, 1, 0
  %v2541 = vsel %vm1997, 1, 0
  %v2542 = vsel %vm1998, 1, 0
  %v2543 = vsel %vm1999, 1, 0
  %v2544 = vsel %vm2000, 1, 0
  %v2545 = vsel %vm2001, 1, 0
  %v2546 = vsel %vm2002, 1, 0
  %v2547 = vsel %vm2003, 1, 0
  %v2548 = vsel %vm2004, 1, 0
  %v2549 = vsel %vm2005, 1, 0
  %v2550 = vsel %vm2006, 1, 0
  %v2551 = vsel %vm2007, 1, 0
  %v2552 = vsel %vm2008, 1, 0
  %v2553 = vsel %vm2009, 1, 0
  %v2554 = vsel %vm2010, 1, 0
  %v2555 = vsel %vm2011, 1, 0
  %v2556 = vsel %vm2012, 1, 0
  %v2557 = vsel %vm2013, 1, 0
  %v2558 = vsel %vm2014, 1, 0
  %v2559 = vsel %vm2015, 1, 0
  %v2560 = vsel %vm2016, 1, 0
  %v2561 = vsel %vm2017, 1, 0
  %v2562 = vsel %vm2018, 1, 0
  %v2563 = vsel %vm2019, 1, 0
  %v2564 = vsel %vm2020, 1, 0
  %v2565 = vsel %vm2021, 1, 0
  %v2566 = vsel %vm2022, 1, 0
  %v2567 = vsel %vm2023, 1, 0
  %v2568 = vsel %vm2024, 1, 0
  %v2569 = vsel %vm2025, 1, 0
  %v2570 = vsel %vm2026, 1, 0
  %v2571 = vsel %vm2027, 1, 0
  %v2572 = vsel %vm2028, 1, 0
  %v2573 = vsel %vm2029, 1, 0
  %v2574 = vsel %vm2030, 1, 0
  %v2575 = vsel %vm2031, 1, 0
  %v2576 = vsel %vm2032, 1, 0
  %v2577 = vsel %vm2033, 1, 0
  %v2578 = vsel %vm2034, 1, 0
  %v2579 = vsel %vm2035, 1, 0
  %v2580 = vsel %vm2036, 1, 0
  %v2581 = vsel %vm2037, 1, 0
  %v2582 = vsel %vm2038, 1, 0
  %v2583 = vsel %vm2039, 1, 0
  %v2584 = vsel %vm2040, 1, 0
  %v2585 = vsel %vm2041, 1, 0
  %v2586 = vsel %vm2042, 1, 0
  %v2587 = vsel %vm2043, 1, 0
  %v2588 = vsel %vm2044, 1, 0
  %v2589 = vsel %vm2045, 1, 0
  %v2590 = vsel %vm2046, 1, 0
  %v2591 = vsel %vm2047, 1, 0
  %v2592 = vsel %vm2048, 1, 0
  %v2593 = vsel %vm2049, 1, 0
  %v2594 = vsel %vm2050, 1, 0
  %v2595 = vsel %vm2051, 1, 0
  %v2596 = vsel %vm2052, 1, 0
  %v2597 = vsel %vm2053, 1, 0
  %v2598 = vsel %vm2054, 1, 0
  %v2599 = vsel %vm2055, 1, 0
  %v2600 = vsel %vm2056, 1, 0
  %v2601 = vsel %vm2057, 1, 0
  %v2602 = vsel %vm2058, 1, 0
  %v2603 = vsel %vm2059, 1, 0
  %v2604 = vsel %vm2060, 1, 0
  %v2605 = vsel %vm2061, 1, 0
  %v2606 = vsel %vm2062, 1, 0
  %v2607 = vsel %vm2063, 1, 0
  %v2608 = vsel %vm2064, 1, 0
  %v2609 = vsel %vm2065, 1, 0
  %v2610 = vsel %vm2066, 1, 0
  %v2611 = vsel %vm2067, 1, 0
  %v2612 = vsel %vm2068, 1, 0
  %v2613 = vsel %vm2069, 1, 0
  %v2614 = vsel %vm2070, 1, 0
  %v2615 = vsel %vm2071, 1, 0
  %v2616 = vsel %vm2072, 1, 0
  %v2617 = vsel %vm2073, 1, 0
  %v2618 = vsel %vm2074, 1, 0
  %v2619 = vsel %vm2075, 1, 0
  %v2620 = vsel %vm2076, 1, 0
  %v2621 = vsel %vm2077, 1, 0
  %v2622 = vsel %vm2078, 1, 0
  %v2623 = vsel %vm2079, 1, 0
  %v2624 = vsel %vm2080, 1, 0
  %v2625 = vsel %vm2081, 1, 0
  %v2626 = vsel %vm2082, 1, 0
  %v2627 = vsel %vm2083, 1, 0
  %v2628 = vsel %vm2084, 1, 0
  %v2629 = vsel %vm2085, 1, 0
  %v2630 = vsel %vm2086, 1, 0
  %v2631 = vsel %vm2087, 1, 0
  %v2632 = vsel %vm2088, 1, 0
  %v2633 = vsel %vm2089, 1, 0
  %v2634 = vsel %vm2090, 1, 0
  %v2635 = vsel %vm2091, 1, 0
  %v2636 = vsel %vm2092, 1, 0
  %v2637 = vsel %vm2093, 1, 0
  %v2638 = vsel %vm2094, 1, 0
  %v2639 = vsel %vm2095, 1, 0
  %v2640 = vsel %vm2096, 1, 0
  %v2641 = vsel %vm2097, 1, 0
  %v2642 = vsel %vm2098, 1, 0
  %v2643 = vsel %vm2099, 1, 0
  %v2644 = vsel %vm2100, 1, 0
  %v2645 = vsel %vm2101, 1, 0
  %v2646 = vsel %vm2102, 1, 0
  %v2647 = vsel %vm2103, 1, 0
  %v2648 = vsel %vm2104, 1, 0
  %v2649 = vsel %vm2105, 1, 0
  %v2650 = vsel %vm2106, 1, 0
  %v2651 = vsel %vm2107, 1, 0
  %v2652 = vsel %vm2108, 1, 0
  %v2653 = vsel %vm2109, 1, 0
  %v2654 = vsel %vm2110, 1, 0
  %v2655 = vsel %vm2111, 1, 0
  %v2656 = vsel %vm2112, 1, 0
  %v2657 = vsel %vm2113, 1, 0
  %v2658 = vsel %vm2114, 1, 0
  %v2659 = vsel %vm2115, 1, 0
  %v2660 = vsel %vm2116, 1, 0
  %v2661 = vsel %vm2117, 1, 0
  %v2662 = vsel %vm2118, 1, 0
  %v2663 = vsel %vm2119, 1, 0
  %v2664 = vsel %vm2120, 1, 0
  %v2665 = vsel %vm2121, 1, 0
  %v2666 = vsel %vm2122, 1, 0
  %v2667 = vsel %vm2123, 1, 0
  %v2668 = vsel %vm2124, 1, 0
  %v2669 = vsel %vm2125, 1, 0
  %v2670 = vsel %vm2126, 1, 0
  %v2671 = vsel %vm2127, 1, 0
  %v2672 = vsel %vm2128, 1, 0
  %v2673 = vsel %vm2129, 1, 0
  %v2674 = vsel %vm2130, 1, 0
  %v2675 = vsel %vm2131, 1, 0
  %v2676 = vsel %vm2132, 1, 0
  %v2677 = vsel %vm2133, 1, 0
  %v2678 = vsel %vm2134, 1, 0
  %v2679 = vsel %vm2135, 1, 0
  %v2680 = vsel %vm2136, 1, 0
  %v2681 = vsel %vm2137, 1, 0
  %v2682 = vsel %vm2138, 1, 0
  %v2683 = vsel %vm2139, 1, 0
  %v2684 = vsel %vm2140, 1, 0
  %v2685 = vsel %vm2141, 1, 0
  %v2686 = vsel %vm2142, 1, 0
  %v2687 = vsel %vm2143, 1, 0
  %v2688 = vsel %vm2144, 1, 0
  %v2689 = vsel %vm2145, 1, 0
  %v2690 = vsel %vm2146, 1, 0
  %v2691 = vsel %vm2147, 1, 0
  %v2692 = vsel %vm2148, 1, 0
  %v2693 = vsel %vm2149, 1, 0
  %v2694 = vsel %vm2150, 1, 0
  %v2695 = vsel %vm2151, 1, 0
  %v2696 = vsel %vm2152, 1, 0
  %v2697 = vsel %vm2153, 1, 0
  %v2698 = vsel %vm2154, 1, 0
  %v2699 = vsel %vm2155, 1, 0
  %v2700 = vsel %vm2156, 1, 0
  %v2701 = vsel %vm2157, 1, 0
  %v2702 = vsel %vm2158, 1, 0
  %v2703 = vsel %vm2159, 1, 0
  %v2704 = vsel %vm2160, 1, 0
  %v2705 = vsel %vm2161, 1, 0
  %v2706 = vsel %vm2162, 1, 0
  %v2707 = vsel %vm2163, 1, 0
  %v2708 = vsel %vm2164, 1, 0
  %v2709 = vsel %vm2165, 1, 0
  %v2710 = vsel %vm2166, 1, 0
  %v2711 = vsel %vm2167, 1, 0
  %v2712 = vsel %vm2168, 1, 0
  %v2713 = vsel %vm2169, 1, 0
  %v2714 = vsel %vm2170, 1, 0
  %v2715 = vsel %vm2171, 1, 0
  %v2716 = vsel %vm2172, 1, 0
  %v2717 = vsel %vm2173, 1, 0
  %v2718 = vsel %vm2174, 1, 0
  %v2719 = vsel %vm2175, 1, 0
  %v2720 = vsel %vm2176, 1, 0
  %v2721 = vsel %vm2177, 1, 0
  %v2722 = vsel %vm2178, 1, 0
  %v2723 = vsel %vm2179, 1, 0
  %v2724 = vsel %vm2180, 1, 0
  %v2725 = vsel %vm2181, 1, 0
  %v2726 = vsel %vm2182, 1, 0
  %v2727 = vsel %vm2183, 1, 0
  %v2728 = vsel %vm2184, 1, 0
  %v2729 = vsel %vm2185, 1, 0
  %v2730 = vsel %vm2186, 1, 0
  %v2731 = vsel %vm2187, 1, 0
  %v2732 = vsel %vm2188, 1, 0
  %v2733 = vsel %vm2189, 1, 0
  %v2734 = vsel %vm2190, 1, 0
  %v2735 = vsel %vm2191, 1, 0
  %v2736 = vsel %vm2192, 1, 0
  %v2737 = vsel %vm2193, 1, 0
  %v2738 = vsel %vm2194, 1, 0
  %v2739 = vsel %vm2195, 1, 0
  %v2740 = vsel %vm2196, 1, 0
  %v2741 = vsel %vm2197, 1, 0
  %v2742 = vsel %vm2198, 1, 0
  %v2743 = vsel %vm2199, 1, 0
  %v2744 = vsel %vm2200, 1, 0
  %v2745 = vsel %vm2201, 1, 0
  %v2746 = vsel %vm2202, 1, 0
  %v2747 = vsel %vm2203, 1, 0
  %v2748 = vsel %vm2204, 1, 0
  %v2749 = vsel %vm2205, 1, 0
  %v2750 = vsel %vm2206, 1, 0
  %v2751 = vsel %vm2207, 1, 0
  %v2752 = vsel %vm2208, 1, 0
  %v2753 = vsel %vm2209, 1, 0
  %v2754 = vsel %vm2210, 1, 0
  %v2755 = vsel %vm2211, 1, 0
  %v2756 = vsel %vm2212, 1, 0
  %v2757 = vsel %vm2213, 1, 0
  %v2758 = vsel %vm2214, 1, 0
  %v2759 = vsel %vm2215, 1, 0
  %v2760 = vsel %vm2216, 1, 0
  %v2761 = vsel %vm2217, 1, 0
  %v2762 = vsel %vm2218, 1, 0
  %v2763 = vsel %vm2219, 1, 0
  %v2764 = vsel %vm2220, 1, 0
  %v2765 = vsel %vm2221, 1, 0
  %v2766 = vsel %vm2222, 1, 0
  %v2767 = vsel %vm2223, 1, 0
  %v2768 = vsel %vm2224, 1, 0
  %v2769 = vsel %vm2225, 1, 0
  %v2770 = vsel %vm2226, 1, 0
  %v2771 = vsel %vm2227, 1, 0
  %v2772 = vsel %vm2228, 1, 0
  %v2773 = vsel %vm2229, 1, 0
  %v2774 = vsel %vm2230, 1, 0
  %v2775 = vsel %vm2231, 1, 0
  %v2776 = vsel %vm2232, 1, 0
  %v2777 = vsel %vm2233, 1, 0
  %v2778 = vsel %vm2234, 1, 0
  %v2779 = vsel %vm2235, 1, 0
  %v2780 = vsel %vm2236, 1, 0
  %v2781 = vsel %vm2237, 1, 0
  %v2782 = vsel %vm2238, 1, 0
  %v2783 = vsel %vm2239, 1, 0
  %v2784 = vsel %vm2240, 1, 0
  %v2785 = vsel %vm2241, 1, 0
  %v2786 = vsel %vm2242, 1, 0
  %v2787 = vsel %vm2243, 1, 0
  %v2788 = vsel %vm2244, 1, 0
  %v2789 = vsel %vm2245, 1, 0
  %v2790 = vsel %vm2246, 1, 0
  %v2791 = vsel %vm2247, 1, 0
  %v2792 = vsel %vm2248, 1, 0
  %v2793 = vsel %vm2249, 1, 0
  %v2794 = vsel %vm2250, 1, 0
  %v2795 = vsel %vm2251, 1, 0
  %v2796 = vsel %vm2252, 1, 0
  %v2797 = vsel %vm2253, 1, 0
  %v2798 = vsel %vm2254, 1, 0
  %v2799 = vsel %vm2255, 1, 0
  %v2800 = vsel %vm2256, 1, 0
  %v2801 = vsel %vm2257, 1, 0
  %v2802 = vsel %vm2258, 1, 0
  %v2803 = vsel %vm2259, 1, 0
  %v2804 = vsel %vm2260, 1, 0
  %v2805 = vsel %vm2261, 1, 0
  %v2806 = vsel %vm2262, 1, 0
  %v2807 = vsel %vm2263, 1, 0
  %v2808 = vsel %vm2264, 1, 0
  %v2809 = vsel %vm2265, 1, 0
  %v2810 = vsel %vm2266, 1, 0
  %v2811 = vsel %vm2267, 1, 0
  %v2812 = vsel %vm2268, 1, 0
  %v2813 = vsel %vm2269, 1, 0
  %v2814 = vsel %vm2270, 1, 0
  %v2815 = vsel %vm2271, 1, 0
  %v2816 = vsel %vm2272, 1, 0
  %v2817 = vsel %vm2273, 1, 0
  %v2818 = vsel %vm2274, 1, 0
  %v2819 = vcvt.s32.f32 %v2275
  %v2820 = vcvt.s32.f32 %v2276
  %v2821 = vcvt.s32.f32 %v2277
  %v2822 = vcvt.s32.f32 %v2278
  %v2823 = vcvt.s32.f32 %v2279
  %v2824 = vcvt.s32.f32 %v2280
  %v2825 = vcvt.s32.f32 %v2281
  %v2826 = vcvt.s32.f32 %v2282
  %v2827 = vcvt.s32.f32 %v2283
  %v2828 = vcvt.s32.f32 %v2284
  %v2829 = vcvt.s32.f32 %v2285
  %v2830 = vcvt.s32.f32 %v2286
  %v2831 = vcvt.s32.f32 %v2287
  %v2832 = vcvt.s32.f32 %v2288
  %v2833 = vcvt.s32.f32 %v2289
  %v2834 = vcvt.s32.f32 %v2290
  %v2835 = vcvt.s32.f32 %v2291
  %v2836 = vcvt.s32.f32 %v2292
  %v2837 = vcvt.s32.f32 %v2293
  %v2838 = vcvt.s32.f32 %v2294
  %v2839 = vcvt.s32.f32 %v2295
  %v2840 = vcvt.s32.f32 %v2296
  %v2841 = vcvt.s32.f32 %v2297
  %v2842 = vcvt.s32.f32 %v2298
  %v2843 = vcvt.s32.f32 %v2299
  %v2844 = vcvt.s32.f32 %v2300
  %v2845 = vcvt.s32.f32 %v2301
  %v2846 = vcvt.s32.f32 %v2302
  %v2847 = vcvt.s32.f32 %v2303
  %v2848 = vcvt.s32.f32 %v2304
  %v2849 = vcvt.s32.f32 %v2305
  %v2850 = vcvt.s32.f32 %v2306
  %v2851 = vcvt.s32.f32 %v2307
  %v2852 = vcvt.s32.f32 %v2308
  %v2853 = vcvt.s32.f32 %v2309
  %v2854 = vcvt.s32.f32 %v2310
  %v2855 = vcvt.s32.f32 %v2311
  %v2856 = vcvt.s32.f32 %v2312
  %v2857 = vcvt.s32.f32 %v2313
  %v2858 = vcvt.s32.f32 %v2314
  %v2859 = vcvt.s32.f32 %v2315
  %v2860 = vcvt.s32.f32 %v2316
  %v2861 = vcvt.s32.f32 %v2317
  %v2862 = vcvt.s32.f32 %v2318
  %v2863 = vcvt.s32.f32 %v2319
  %v2864 = vcvt.s32.f32 %v2320
  %v2865 = vcvt.s32.f32 %v2321
  %v2866 = vcvt.s32.f32 %v2322
  %v2867 = vcvt.s32.f32 %v2323
  %v2868 = vcvt.s32.f32 %v2324
  %v2869 = vcvt.s32.f32 %v2325
  %v2870 = vcvt.s32.f32 %v2326
  %v2871 = vcvt.s32.f32 %v2327
  %v2872 = vcvt.s32.f32 %v2328
  %v2873 = vcvt.s32.f32 %v2329
  %v2874 = vcvt.s32.f32 %v2330
  %v2875 = vcvt.s32.f32 %v2331
  %v2876 = vcvt.s32.f32 %v2332
  %v2877 = vcvt.s32.f32 %v2333
  %v2878 = vcvt.s32.f32 %v2334
  %v2879 = vcvt.s32.f32 %v2335
  %v2880 = vcvt.s32.f32 %v2336
  %v2881 = vcvt.s32.f32 %v2337
  %v2882 = vcvt.s32.f32 %v2338
  %v2883 = vcvt.s32.f32 %v2339
  %v2884 = vcvt.s32.f32 %v2340
  %v2885 = vcvt.s32.f32 %v2341
  %v2886 = vcvt.s32.f32 %v2342
  %v2887 = vcvt.s32.f32 %v2343
  %v2888 = vcvt.s32.f32 %v2344
  %v2889 = vcvt.s32.f32 %v2345
  %v2890 = vcvt.s32.f32 %v2346
  %v2891 = vcvt.s32.f32 %v2347
  %v2892 = vcvt.s32.f32 %v2348
  %v2893 = vcvt.s32.f32 %v2349
  %v2894 = vcvt.s32.f32 %v2350
  %v2895 = vcvt.s32.f32 %v2351
  %v2896 = vcvt.s32.f32 %v2352
  %v2897 = vcvt.s32.f32 %v2353
  %v2898 = vcvt.s32.f32 %v2354
  %v2899 = vcvt.s32.f32 %v2355
  %v2900 = vcvt.s32.f32 %v2356
  %v2901 = vcvt.s32.f32 %v2357
  %v2902 = vcvt.s32.f32 %v2358
  %v2903 = vcvt.s32.f32 %v2359
  %v2904 = vcvt.s32.f32 %v2360
  %v2905 = vcvt.s32.f32 %v2361
  %v2906 = vcvt.s32.f32 %v2362
  %v2907 = vcvt.s32.f32 %v2363
  %v2908 = vcvt.s32.f32 %v2364
  %v2909 = vcvt.s32.f32 %v2365
  %v2910 = vcvt.s32.f32 %v2366
  %v2911 = vcvt.s32.f32 %v2367
  %v2912 = vcvt.s32.f32 %v2368
  %v2913 = vcvt.s32.f32 %v2369
  %v2914 = vcvt.s32.f32 %v2370
  %v2915 = vcvt.s32.f32 %v2371
  %v2916 = vcvt.s32.f32 %v2372
  %v2917 = vcvt.s32.f32 %v2373
  %v2918 = vcvt.s32.f32 %v2374
  %v2919 = vcvt.s32.f32 %v2375
  %v2920 = vcvt.s32.f32 %v2376
  %v2921 = vcvt.s32.f32 %v2377
  %v2922 = vcvt.s32.f32 %v2378
  %v2923 = vcvt.s32.f32 %v2379
  %v2924 = vcvt.s32.f32 %v2380
  %v2925 = vcvt.s32.f32 %v2381
  %v2926 = vcvt.s32.f32 %v2382
  %v2927 = vcvt.s32.f32 %v2383
  %v2928 = vcvt.s32.f32 %v2384
  %v2929 = vcvt.s32.f32 %v2385
  %v2930 = vcvt.s32.f32 %v2386
  %v2931 = vcvt.s32.f32 %v2387
  %v2932 = vcvt.s32.f32 %v2388
  %v2933 = vcvt.s32.f32 %v2389
  %v2934 = vcvt.s32.f32 %v2390
  %v2935 = vcvt.s32.f32 %v2391
  %v2936 = vcvt.s32.f32 %v2392
  %v2937 = vcvt.s32.f32 %v2393
  %v2938 = vcvt.s32.f32 %v2394
  %v2939 = vcvt.s32.f32 %v2395
  %v2940 = vcvt.s32.f32 %v2396
  %v2941 = vcvt.s32.f32 %v2397
  %v2942 = vcvt.s32.f32 %v2398
  %v2943 = vcvt.s32.f32 %v2399
  %v2944 = vcvt.s32.f32 %v2400
  %v2945 = vcvt.s32.f32 %v2401
  %v2946 = vcvt.s32.f32 %v2402
  %v2947 = vcvt.s32.f32 %v2403
  %v2948 = vcvt.s32.f32 %v2404
  %v2949 = vcvt.s32.f32 %v2405
  %v2950 = vcvt.s32.f32 %v2406
  %v2951 = vcvt.s32.f32 %v2407
  %v2952 = vcvt.s32.f32 %v2408
  %v2953 = vcvt.s32.f32 %v2409
  %v2954 = vcvt.s32.f32 %v2410
  %v2955 = vcvt.s32.f32 %v2411
  %v2956 = vcvt.s32.f32 %v2412
  %v2957 = vcvt.s32.f32 %v2413
  %v2958 = vcvt.s32.f32 %v2414
  %v2959 = vcvt.s32.f32 %v2415
  %v2960 = vcvt.s32.f32 %v2416
  %v2961 = vcvt.s32.f32 %v2417
  %v2962 = vcvt.s32.f32 %v2418
  %v2963 = vcvt.s32.f32 %v2419
  %v2964 = vcvt.s32.f32 %v2420
  %v2965 = vcvt.s32.f32 %v2421
  %v2966 = vcvt.s32.f32 %v2422
  %v2967 = vcvt.s32.f32 %v2423
  %v2968 = vcvt.s32.f32 %v2424
  %v2969 = vcvt.s32.f32 %v2425
  %v2970 = vcvt.s32.f32 %v2426
  %v2971 = vcvt.s32.f32 %v2427
  %v2972 = vcvt.s32.f32 %v2428
  %v2973 = vcvt.s32.f32 %v2429
  %v2974 = vcvt.s32.f32 %v2430
  %v2975 = vcvt.s32.f32 %v2431
  %v2976 = vcvt.s32.f32 %v2432
  %v2977 = vcvt.s32.f32 %v2433
  %v2978 = vcvt.s32.f32 %v2434
  %v2979 = vcvt.s32.f32 %v2435
  %v2980 = vcvt.s32.f32 %v2436
  %v2981 = vcvt.s32.f32 %v2437
  %v2982 = vcvt.s32.f32 %v2438
  %v2983 = vcvt.s32.f32 %v2439
  %v2984 = vcvt.s32.f32 %v2440
  %v2985 = vcvt.s32.f32 %v2441
  %v2986 = vcvt.s32.f32 %v2442
  %v2987 = vcvt.s32.f32 %v2443
  %v2988 = vcvt.s32.f32 %v2444
  %v2989 = vcvt.s32.f32 %v2445
  %v2990 = vcvt.s32.f32 %v2446
  %v2991 = vcvt.s32.f32 %v2447
  %v2992 = vcvt.s32.f32 %v2448
  %v2993 = vcvt.s32.f32 %v2449
  %v2994 = vcvt.s32.f32 %v2450
  %v2995 = vcvt.s32.f32 %v2451
  %v2996 = vcvt.s32.f32 %v2452
  %v2997 = vcvt.s32.f32 %v2453
  %v2998 = vcvt.s32.f32 %v2454
  %v2999 = vcvt.s32.f32 %v2455
  %v3000 = vcvt.s32.f32 %v2456
  %v3001 = vcvt.s32.f32 %v2457
  %v3002 = vcvt.s32.f32 %v2458
  %v3003 = vcvt.s32.f32 %v2459
  %v3004 = vcvt.s32.f32 %v2460
  %v3005 = vcvt.s32.f32 %v2461
  %v3006 = vcvt.s32.f32 %v2462
  %v3007 = vcvt.s32.f32 %v2463
  %v3008 = vcvt.s32.f32 %v2464
  %v3009 = vcvt.s32.f32 %v2465
  %v3010 = vcvt.s32.f32 %v2466
  %v3011 = vcvt.s32.f32 %v2467
  %v3012 = vcvt.s32.f32 %v2468
  %v3013 = vcvt.s32.f32 %v2469
  %v3014 = vcvt.s32.f32 %v2470
  %v3015 = vcvt.s32.f32 %v2471
  %v3016 = vcvt.s32.f32 %v2472
  %v3017 = vcvt.s32.f32 %v2473
  %v3018 = vcvt.s32.f32 %v2474
  %v3019 = vcvt.s32.f32 %v2475
  %v3020 = vcvt.s32.f32 %v2476
  %v3021 = vcvt.s32.f32 %v2477
  %v3022 = vcvt.s32.f32 %v2478
  %v3023 = vcvt.s32.f32 %v2479
  %v3024 = vcvt.s32.f32 %v2480
  %v3025 = vcvt.s32.f32 %v2481
  %v3026 = vcvt.s32.f32 %v2482
  %v3027 = vcvt.s32.f32 %v2483
  %v3028 = vcvt.s32.f32 %v2484
  %v3029 = vcvt.s32.f32 %v2485
  %v3030 = vcvt.s32.f32 %v2486
  %v3031 = vcvt.s32.f32 %v2487
  %v3032 = vcvt.s32.f32 %v2488
  %v3033 = vcvt.s32.f32 %v2489
  %v3034 = vcvt.s32.f32 %v2490
  %v3035 = vcvt.s32.f32 %v2491
  %v3036 = vcvt.s32.f32 %v2492
  %v3037 = vcvt.s32.f32 %v2493
  %v3038 = vcvt.s32.f32 %v2494
  %v3039 = vcvt.s32.f32 %v2495
  %v3040 = vcvt.s32.f32 %v2496
  %v3041 = vcvt.s32.f32 %v2497
  %v3042 = vcvt.s32.f32 %v2498
  %v3043 = vcvt.s32.f32 %v2499
  %v3044 = vcvt.s32.f32 %v2500
  %v3045 = vcvt.s32.f32 %v2501
  %v3046 = vcvt.s32.f32 %v2502
  %v3047 = vcvt.s32.f32 %v2503
  %v3048 = vcvt.s32.f32 %v2504
  %v3049 = vcvt.s32.f32 %v2505
  %v3050 = vcvt.s32.f32 %v2506
  %v3051 = vcvt.s32.f32 %v2507
  %v3052 = vcvt.s32.f32 %v2508
  %v3053 = vcvt.s32.f32 %v2509
  %v3054 = vcvt.s32.f32 %v2510
  %v3055 = vcvt.s32.f32 %v2511
  %v3056 = vcvt.s32.f32 %v2512
  %v3057 = vcvt.s32.f32 %v2513
  %v3058 = vcvt.s32.f32 %v2514
  %v3059 = vcvt.s32.f32 %v2515
  %v3060 = vcvt.s32.f32 %v2516
  %v3061 = vcvt.s32.f32 %v2517
  %v3062 = vcvt.s32.f32 %v2518
  %v3063 = vcvt.s32.f32 %v2519
  %v3064 = vcvt.s32.f32 %v2520
  %v3065 = vcvt.s32.f32 %v2521
  %v3066 = vcvt.s32.f32 %v2522
  %v3067 = vcvt.s32.f32 %v2523
  %v3068 = vcvt.s32.f32 %v2524
  %v3069 = vcvt.s32.f32 %v2525
  %v3070 = vcvt.s32.f32 %v2526
  %v3071 = vcvt.s32.f32 %v2527
  %v3072 = vcvt.s32.f32 %v2528
  %v3073 = vcvt.s32.f32 %v2529
  %v3074 = vcvt.s32.f32 %v2530
  %v3075 = vcvt.s32.f32 %v2531
  %v3076 = vcvt.s32.f32 %v2532
  %v3077 = vcvt.s32.f32 %v2533
  %v3078 = vcvt.s32.f32 %v2534
  %v3079 = vcvt.s32.f32 %v2535
  %v3080 = vcvt.s32.f32 %v2536
  %v3081 = vcvt.s32.f32 %v2537
  %v3082 = vcvt.s32.f32 %v2538
  %v3083 = vcvt.s32.f32 %v2539
  %v3084 = vcvt.s32.f32 %v2540
  %v3085 = vcvt.s32.f32 %v2541
  %v3086 = vcvt.s32.f32 %v2542
  %v3087 = vcvt.s32.f32 %v2543
  %v3088 = vcvt.s32.f32 %v2544
  %v3089 = vcvt.s32.f32 %v2545
  %v3090 = vcvt.s32.f32 %v2546
  %v3091 = vcvt.s32.f32 %v2547
  %v3092 = vcvt.s32.f32 %v2548
  %v3093 = vcvt.s32.f32 %v2549
  %v3094 = vcvt.s32.f32 %v2550
  %v3095 = vcvt.s32.f32 %v2551
  %v3096 = vcvt.s32.f32 %v2552
  %v3097 = vcvt.s32.f32 %v2553
  %v3098 = vcvt.s32.f32 %v2554
  %v3099 = vcvt.s32.f32 %v2555
  %v3100 = vcvt.s32.f32 %v2556
  %v3101 = vcvt.s32.f32 %v2557
  %v3102 = vcvt.s32.f32 %v2558
  %v3103 = vcvt.s32.f32 %v2559
  %v3104 = vcvt.s32.f32 %v2560
  %v3105 = vcvt.s32.f32 %v2561
  %v3106 = vcvt.s32.f32 %v2562
  %v3107 = vcvt.s32.f32 %v2563
  %v3108 = vcvt.s32.f32 %v2564
  %v3109 = vcvt.s32.f32 %v2565
  %v3110 = vcvt.s32.f32 %v2566
  %v3111 = vcvt.s32.f32 %v2567
  %v3112 = vcvt.s32.f32 %v2568
  %v3113 = vcvt.s32.f32 %v2569
  %v3114 = vcvt.s32.f32 %v2570
  %v3115 = vcvt.s32.f32 %v2571
  %v3116 = vcvt.s32.f32 %v2572
  %v3117 = vcvt.s32.f32 %v2573
  %v3118 = vcvt.s32.f32 %v2574
  %v3119 = vcvt.s32.f32 %v2575
  %v3120 = vcvt.s32.f32 %v2576
  %v3121 = vcvt.s32.f32 %v2577
  %v3122 = vcvt.s32.f32 %v2578
  %v3123 = vcvt.s32.f32 %v2579
  %v3124 = vcvt.s32.f32 %v2580
  %v3125 = vcvt.s32.f32 %v2581
  %v3126 = vcvt.s32.f32 %v2582
  %v3127 = vcvt.s32.f32 %v2583
  %v3128 = vcvt.s32.f32 %v2584
  %v3129 = vcvt.s32.f32 %v2585
  %v3130 = vcvt.s32.f32 %v2586
  %v3131 = vcvt.s32.f32 %v2587
  %v3132 = vcvt.s32.f32 %v2588
  %v3133 = vcvt.s32.f32 %v2589
  %v3134 = vcvt.s32.f32 %v2590
  %v3135 = vcvt.s32.f32 %v2591
  %v3136 = vcvt.s32.f32 %v2592
  %v3137 = vcvt.s32.f32 %v2593
  %v3138 = vcvt.s32.f32 %v2594
  %v3139 = vcvt.s32.f32 %v2595
  %v3140 = vcvt.s32.f32 %v2596
  %v3141 = vcvt.s32.f32 %v2597
  %v3142 = vcvt.s32.f32 %v2598
  %v3143 = vcvt.s32.f32 %v2599
  %v3144 = vcvt.s32.f32 %v2600
  %v3145 = vcvt.s32.f32 %v2601
  %v3146 = vcvt.s32.f32 %v2602
  %v3147 = vcvt.s32.f32 %v2603
  %v3148 = vcvt.s32.f32 %v2604
  %v3149 = vcvt.s32.f32 %v2605
  %v3150 = vcvt.s32.f32 %v2606
  %v3151 = vcvt.s32.f32 %v2607
  %v3152 = vcvt.s32.f32 %v2608
  %v3153 = vcvt.s32.f32 %v2609
  %v3154 = vcvt.s32.f32 %v2610
  %v3155 = vcvt.s32.f32 %v2611
  %v3156 = vcvt.s32.f32 %v2612
  %v3157 = vcvt.s32.f32 %v2613
  %v3158 = vcvt.s32.f32 %v2614
  %v3159 = vcvt.s32.f32 %v2615
  %v3160 = vcvt.s32.f32 %v2616
  %v3161 = vcvt.s32.f32 %v2617
  %v3162 = vcvt.s32.f32 %v2618
  %v3163 = vcvt.s32.f32 %v2619
  %v3164 = vcvt.s32.f32 %v2620
  %v3165 = vcvt.s32.f32 %v2621
  %v3166 = vcvt.s32.f32 %v2622
  %v3167 = vcvt.s32.f32 %v2623
  %v3168 = vcvt.s32.f32 %v2624
  %v3169 = vcvt.s32.f32 %v2625
  %v3170 = vcvt.s32.f32 %v2626
  %v3171 = vcvt.s32.f32 %v2627
  %v3172 = vcvt.s32.f32 %v2628
  %v3173 = vcvt.s32.f32 %v2629
  %v3174 = vcvt.s32.f32 %v2630
  %v3175 = vcvt.s32.f32 %v2631
  %v3176 = vcvt.s32.f32 %v2632
  %v3177 = vcvt.s32.f32 %v2633
  %v3178 = vcvt.s32.f32 %v2634
  %v3179 = vcvt.s32.f32 %v2635
  %v3180 = vcvt.s32.f32 %v2636
  %v3181 = vcvt.s32.f32 %v2637
  %v3182 = vcvt.s32.f32 %v2638
  %v3183 = vcvt.s32.f32 %v2639
  %v3184 = vcvt.s32.f32 %v2640
  %v3185 = vcvt.s32.f32 %v2641
  %v3186 = vcvt.s32.f32 %v2642
  %v3187 = vcvt.s32.f32 %v2643
  %v3188 = vcvt.s32.f32 %v2644
  %v3189 = vcvt.s32.f32 %v2645
  %v3190 = vcvt.s32.f32 %v2646
  %v3191 = vcvt.s32.f32 %v2647
  %v3192 = vcvt.s32.f32 %v2648
  %v3193 = vcvt.s32.f32 %v2649
  %v3194 = vcvt.s32.f32 %v2650
  %v3195 = vcvt.s32.f32 %v2651
  %v3196 = vcvt.s32.f32 %v2652
  %v3197 = vcvt.s32.f32 %v2653
  %v3198 = vcvt.s32.f32 %v2654
  %v3199 = vcvt.s32.f32 %v2655
  %v3200 = vcvt.s32.f32 %v2656
  %v3201 = vcvt.s32.f32 %v2657
  %v3202 = vcvt.s32.f32 %v2658
  %v3203 = vcvt.s32.f32 %v2659
  %v3204 = vcvt.s32.f32 %v2660
  %v3205 = vcvt.s32.f32 %v2661
  %v3206 = vcvt.s32.f32 %v2662
  %v3207 = vcvt.s32.f32 %v2663
  %v3208 = vcvt.s32.f32 %v2664
  %v3209 = vcvt.s32.f32 %v2665
  %v3210 = vcvt.s32.f32 %v2666
  %v3211 = vcvt.s32.f32 %v2667
  %v3212 = vcvt.s32.f32 %v2668
  %v3213 = vcvt.s32.f32 %v2669
  %v3214 = vcvt.s32.f32 %v2670
  %v3215 = vcvt.s32.f32 %v2671
  %v3216 = vcvt.s32.f32 %v2672
  %v3217 = vcvt.s32.f32 %v2673
  %v3218 = vcvt.s32.f32 %v2674
  %v3219 = vcvt.s32.f32 %v2675
  %v3220 = vcvt.s32.f32 %v2676
  %v3221 = vcvt.s32.f32 %v2677
  %v3222 = vcvt.s32.f32 %v2678
  %v3223 = vcvt.s32.f32 %v2679
  %v3224 = vcvt.s32.f32 %v2680
  %v3225 = vcvt.s32.f32 %v2681
  %v3226 = vcvt.s32.f32 %v2682
  %v3227 = vcvt.s32.f32 %v2683
  %v3228 = vcvt.s32.f32 %v2684
  %v3229 = vcvt.s32.f32 %v2685
  %v3230 = vcvt.s32.f32 %v2686
  %v3231 = vcvt.s32.f32 %v2687
  %v3232 = vcvt.s32.f32 %v2688
  %v3233 = vcvt.s32.f32 %v2689
  %v3234 = vcvt.s32.f32 %v2690
  %v3235 = vcvt.s32.f32 %v2691
  %v3236 = vcvt.s32.f32 %v2692
  %v3237 = vcvt.s32.f32 %v2693
  %v3238 = vcvt.s32.f32 %v2694
  %v3239 = vcvt.s32.f32 %v2695
  %v3240 = vcvt.s32.f32 %v2696
  %v3241 = vcvt.s32.f32 %v2697
  %v3242 = vcvt.s32.f32 %v2698
  %v3243 = vcvt.s32.f32 %v2699
  %v3244 = vcvt.s32.f32 %v2700
  %v3245 = vcvt.s32.f32 %v2701
  %v3246 = vcvt.s32.f32 %v2702
  %v3247 = vcvt.s32.f32 %v2703
  %v3248 = vcvt.s32.f32 %v2704
  %v3249 = vcvt.s32.f32 %v2705
  %v3250 = vcvt.s32.f32 %v2706
  %v3251 = vcvt.s32.f32 %v2707
  %v3252 = vcvt.s32.f32 %v2708
  %v3253 = vcvt.s32.f32 %v2709
  %v3254 = vcvt.s32.f32 %v2710
  %v3255 = vcvt.s32.f32 %v2711
  %v3256 = vcvt.s32.f32 %v2712
  %v3257 = vcvt.s32.f32 %v2713
  %v3258 = vcvt.s32.f32 %v2714
  %v3259 = vcvt.s32.f32 %v2715
  %v3260 = vcvt.s32.f32 %v2716
  %v3261 = vcvt.s32.f32 %v2717
  %v3262 = vcvt.s32.f32 %v2718
  %v3263 = vcvt.s32.f32 %v2719
  %v3264 = vcvt.s32.f32 %v2720
  %v3265 = vcvt.s32.f32 %v2721
  %v3266 = vcvt.s32.f32 %v2722
  %v3267 = vcvt.s32.f32 %v2723
  %v3268 = vcvt.s32.f32 %v2724
  %v3269 = vcvt.s32.f32 %v2725
  %v3270 = vcvt.s32.f32 %v2726
  %v3271 = vcvt.s32.f32 %v2727
  %v3272 = vcvt.s32.f32 %v2728
  %v3273 = vcvt.s32.f32 %v2729
  %v3274 = vcvt.s32.f32 %v2730
  %v3275 = vcvt.s32.f32 %v2731
  %v3276 = vcvt.s32.f32 %v2732
  %v3277 = vcvt.s32.f32 %v2733
  %v3278 = vcvt.s32.f32 %v2734
  %v3279 = vcvt.s32.f32 %v2735
  %v3280 = vcvt.s32.f32 %v2736
  %v3281 = vcvt.s32.f32 %v2737
  %v3282 = vcvt.s32.f32 %v2738
  %v3283 = vcvt.s32.f32 %v2739
  %v3284 = vcvt.s32.f32 %v2740
  %v3285 = vcvt.s32.f32 %v2741
  %v3286 = vcvt.s32.f32 %v2742
  %v3287 = vcvt.s32.f32 %v2743
  %v3288 = vcvt.s32.f32 %v2744
  %v3289 = vcvt.s32.f32 %v2745
  %v3290 = vcvt.s32.f32 %v2746
  %v3291 = vcvt.s32.f32 %v2747
  %v3292 = vcvt.s32.f32 %v2748
  %v3293 = vcvt.s32.f32 %v2749
  %v3294 = vcvt.s32.f32 %v2750
  %v3295 = vcvt.s32.f32 %v2751
  %v3296 = vcvt.s32.f32 %v2752
  %v3297 = vcvt.s32.f32 %v2753
  %v3298 = vcvt.s32.f32 %v2754
  %v3299 = vcvt.s32.f32 %v2755
  %v3300 = vcvt.s32.f32 %v2756
  %v3301 = vcvt.s32.f32 %v2757
  %v3302 = vcvt.s32.f32 %v2758
  %v3303 = vcvt.s32.f32 %v2759
  %v3304 = vcvt.s32.f32 %v2760
  %v3305 = vcvt.s32.f32 %v2761
  %v3306 = vcvt.s32.f32 %v2762
  %v3307 = vcvt.s32.f32 %v2763
  %v3308 = vcvt.s32.f32 %v2764
  %v3309 = vcvt.s32.f32 %v2765
  %v3310 = vcvt.s32.f32 %v2766
  %v3311 = vcvt.s32.f32 %v2767
  %v3312 = vcvt.s32.f32 %v2768
  %v3313 = vcvt.s32.f32 %v2769
  %v3314 = vcvt.s32.f32 %v2770
  %v3315 = vcvt.s32.f32 %v2771
  %v3316 = vcvt.s32.f32 %v2772
  %v3317 = vcvt.s32.f32 %v2773
  %v3318 = vcvt.s32.f32 %v2774
  %v3319 = vcvt.s32.f32 %v2775
  %v3320 = vcvt.s32.f32 %v2776
  %v3321 = vcvt.s32.f32 %v2777
  %v3322 = vcvt.s32.f32 %v2778
  %v3323 = vcvt.s32.f32 %v2779
  %v3324 = vcvt.s32.f32 %v2780
  %v3325 = vcvt.s32.f32 %v2781
  %v3326 = vcvt.s32.f32 %v2782
  %v3327 = vcvt.s32.f32 %v2783
  %v3328 = vcvt.s32.f32 %v2784
  %v3329 = vcvt.s32.f32 %v2785
  %v3330 = vcvt.s32.f32 %v2786
  %v3331 = vcvt.s32.f32 %v2787
  %v3332 = vcvt.s32.f32 %v2788
  %v3333 = vcvt.s32.f32 %v2789
  %v3334 = vcvt.s32.f32 %v2790
  %v3335 = vcvt.s32.f32 %v2791
  %v3336 = vcvt.s32.f32 %v2792
  %v3337 = vcvt.s32.f32 %v2793
  %v3338 = vcvt.s32.f32 %v2794
  %v3339 = vcvt.s32.f32 %v2795
  %v3340 = vcvt.s32.f32 %v2796
  %v3341 = vcvt.s32.f32 %v2797
  %v3342 = vcvt.s32.f32 %v2798
  %v3343 = vcvt.s32.f32 %v2799
  %v3344 = vcvt.s32.f32 %v2800
  %v3345 = vcvt.s32.f32 %v2801
  %v3346 = vcvt.s32.f32 %v2802
  %v3347 = vcvt.s32.f32 %v2803
  %v3348 = vcvt.s32.f32 %v2804
  %v3349 = vcvt.s32.f32 %v2805
  %v3350 = vcvt.s32.f32 %v2806
  %v3351 = vcvt.s32.f32 %v2807
  %v3352 = vcvt.s32.f32 %v2808
  %v3353 = vcvt.s32.f32 %v2809
  %v3354 = vcvt.s32.f32 %v2810
  %v3355 = vcvt.s32.f32 %v2811
  %v3356 = vcvt.s32.f32 %v2812
  %v3357 = vcvt.s32.f32 %v2813
  %v3358 = vcvt.s32.f32 %v2814
  %v3359 = vcvt.s32.f32 %v2815
  %v3360 = vcvt.s32.f32 %v2816
  %v3361 = vcvt.s32.f32 %v2817
  %v3362 = vcvt.s32.f32 %v2818
  %v3363 = vpack.c.bf16 %v2821, %v2819
  %v3364 = vpack.c.bf16 %v2822, %v2820
  %v3365 = vpack.c.bf16 %v2825, %v2823
  %v3366 = vpack.c.bf16 %v2826, %v2824
  %v3367 = vpack.c.bf16 %v2829, %v2827
  %v3368 = vpack.c.bf16 %v2830, %v2828
  %v3369 = vpack.c.bf16 %v2833, %v2831
  %v3370 = vpack.c.bf16 %v2834, %v2832
  %v3371 = vpack.c.bf16 %v2837, %v2835
  %v3372 = vpack.c.bf16 %v2838, %v2836
  %v3373 = vpack.c.bf16 %v2841, %v2839
  %v3374 = vpack.c.bf16 %v2842, %v2840
  %v3375 = vpack.c.bf16 %v2845, %v2843
  %v3376 = vpack.c.bf16 %v2846, %v2844
  %v3377 = vpack.c.bf16 %v2849, %v2847
  %v3378 = vpack.c.bf16 %v2850, %v2848
  %v3379 = vpack.c.bf16 %v2853, %v2851
  %v3380 = vpack.c.bf16 %v2854, %v2852
  %v3381 = vpack.c.bf16 %v2857, %v2855
  %v3382 = vpack.c.bf16 %v2858, %v2856
  %v3383 = vpack.c.bf16 %v2861, %v2859
  %v3384 = vpack.c.bf16 %v2862, %v2860
  %v3385 = vpack.c.bf16 %v2865, %v2863
  %v3386 = vpack.c.bf16 %v2866, %v2864
  %v3387 = vpack.c.bf16 %v2869, %v2867
  %v3388 = vpack.c.bf16 %v2870, %v2868
  %v3389 = vpack.c.bf16 %v2873, %v2871
  %v3390 = vpack.c.bf16 %v2874, %v2872
  %v3391 = vpack.c.bf16 %v2877, %v2875
  %v3392 = vpack.c.bf16 %v2878, %v2876
  %v3393 = vpack.c.bf16 %v2881, %v2879
  %v3394 = vpack.c.bf16 %v2882, %v2880
  %v3395 = vpack.c.bf16 %v2885, %v2883
  %v3396 = vpack.c.bf16 %v2886, %v2884
  %v3397 = vpack.c.bf16 %v2889, %v2887
  %v3398 = vpack.c.bf16 %v2890, %v2888
  %v3399 = vpack.c.bf16 %v2893, %v2891
  %v3400 = vpack.c.bf16 %v2894, %v2892
  %v3401 = vpack.c.bf16 %v2897, %v2895
  %v3402 = vpack.c.bf16 %v2898, %v2896
  %v3403 = vpack.c.bf16 %v2901, %v2899
  %v3404 = vpack.c.bf16 %v2902, %v2900
  %v3405 = vpack.c.bf16 %v2905, %v2903
  %v3406 = vpack.c.bf16 %v2906, %v2904
  %v3407 = vpack.c.bf16 %v2909, %v2907
  %v3408 = vpack.c.bf16 %v2910, %v2908
  %v3409 = vpack.c.bf16 %v2913, %v2911
  %v3410 = vpack.c.bf16 %v2914, %v2912
  %v3411 = vpack.c.bf16 %v2917, %v2915
  %v3412 = vpack.c.bf16 %v2918, %v2916
  %v3413 = vpack.c.bf16 %v2921, %v2919
  %v3414 = vpack.c.bf16 %v2922, %v2920
  %v3415 = vpack.c.bf16 %v2925, %v2923
  %v3416 = vpack.c.bf16 %v2926, %v2924
  %v3417 = vpack.c.bf16 %v2929, %v2927
  %v3418 = vpack.c.bf16 %v2930, %v2928
  %v3419 = vpack.c.bf16 %v2933, %v2931
  %v3420 = vpack.c.bf16 %v2934, %v2932
  %v3421 = vpack.c.bf16 %v2937, %v2935
  %v3422 = vpack.c.bf16 %v2938, %v2936
  %v3423 = vpack.c.bf16 %v2941, %v2939
  %v3424 = vpack.c.bf16 %v2942, %v2940
  %v3425 = vpack.c.bf16 %v2945, %v2943
  %v3426 = vpack.c.bf16 %v2946, %v2944
  %v3427 = vpack.c.bf16 %v2949, %v2947
  %v3428 = vpack.c.bf16 %v2950, %v2948
  %v3429 = vpack.c.bf16 %v2953, %v2951
  %v3430 = vpack.c.bf16 %v2954, %v2952
  %v3431 = vpack.c.bf16 %v2957, %v2955
  %v3432 = vpack.c.bf16 %v2958, %v2956
  %v3433 = vpack.c.bf16 %v2961, %v2959
  %v3434 = vpack.c.bf16 %v2962, %v2960
  %v3435 = vpack.c.bf16 %v2965, %v2963
  %v3436 = vpack.c.bf16 %v2966, %v2964
  %v3437 = vpack.c.bf16 %v2969, %v2967
  %v3438 = vpack.c.bf16 %v2970, %v2968
  %v3439 = vpack.c.bf16 %v2973, %v2971
  %v3440 = vpack.c.bf16 %v2974, %v2972
  %v3441 = vpack.c.bf16 %v2977, %v2975
  %v3442 = vpack.c.bf16 %v2978, %v2976
  %v3443 = vpack.c.bf16 %v2981, %v2979
  %v3444 = vpack.c.bf16 %v2982, %v2980
  %v3445 = vpack.c.bf16 %v2985, %v2983
  %v3446 = vpack.c.bf16 %v2986, %v2984
  %v3447 = vpack.c.bf16 %v2989, %v2987
  %v3448 = vpack.c.bf16 %v2990, %v2988
  %v3449 = vpack.c.bf16 %v2993, %v2991
  %v3450 = vpack.c.bf16 %v2994, %v2992
  %v3451 = vpack.c.bf16 %v2997, %v2995
  %v3452 = vpack.c.bf16 %v2998, %v2996
  %v3453 = vpack.c.bf16 %v3001, %v2999
  %v3454 = vpack.c.bf16 %v3002, %v3000
  %v3455 = vpack.c.bf16 %v3005, %v3003
  %v3456 = vpack.c.bf16 %v3006, %v3004
  %v3457 = vpack.c.bf16 %v3009, %v3007
  %v3458 = vpack.c.bf16 %v3010, %v3008
  %v3459 = vpack.c.bf16 %v3013, %v3011
  %v3460 = vpack.c.bf16 %v3014, %v3012
  %v3461 = vpack.c.bf16 %v3017, %v3015
  %v3462 = vpack.c.bf16 %v3018, %v3016
  %v3463 = vpack.c.bf16 %v3021, %v3019
  %v3464 = vpack.c.bf16 %v3022, %v3020
  %v3465 = vpack.c.bf16 %v3025, %v3023
  %v3466 = vpack.c.bf16 %v3026, %v3024
  %v3467 = vpack.c.bf16 %v3029, %v3027
  %v3468 = vpack.c.bf16 %v3030, %v3028
  %v3469 = vpack.c.bf16 %v3033, %v3031
  %v3470 = vpack.c.bf16 %v3034, %v3032
  %v3471 = vpack.c.bf16 %v3037, %v3035
  %v3472 = vpack.c.bf16 %v3038, %v3036
  %v3473 = vpack.c.bf16 %v3041, %v3039
  %v3474 = vpack.c.bf16 %v3042, %v3040
  %v3475 = vpack.c.bf16 %v3045, %v3043
  %v3476 = vpack.c.bf16 %v3046, %v3044
  %v3477 = vpack.c.bf16 %v3049, %v3047
  %v3478 = vpack.c.bf16 %v3050, %v3048
  %v3479 = vpack.c.bf16 %v3053, %v3051
  %v3480 = vpack.c.bf16 %v3054, %v3052
  %v3481 = vpack.c.bf16 %v3057, %v3055
  %v3482 = vpack.c.bf16 %v3058, %v3056
  %v3483 = vpack.c.bf16 %v3061, %v3059
  %v3484 = vpack.c.bf16 %v3062, %v3060
  %v3485 = vpack.c.bf16 %v3065, %v3063
  %v3486 = vpack.c.bf16 %v3066, %v3064
  %v3487 = vpack.c.bf16 %v3069, %v3067
  %v3488 = vpack.c.bf16 %v3070, %v3068
  %v3489 = vpack.c.bf16 %v3073, %v3071
  %v3490 = vpack.c.bf16 %v3074, %v3072
  %v3491 = vpack.c.bf16 %v3077, %v3075
  %v3492 = vpack.c.bf16 %v3078, %v3076
  %v3493 = vpack.c.bf16 %v3081, %v3079
  %v3494 = vpack.c.bf16 %v3082, %v3080
  %v3495 = vpack.c.bf16 %v3085, %v3083
  %v3496 = vpack.c.bf16 %v3086, %v3084
  %v3497 = vpack.c.bf16 %v3089, %v3087
  %v3498 = vpack.c.bf16 %v3090, %v3088
  %v3499 = vpack.c.bf16 %v3093, %v3091
  %v3500 = vpack.c.bf16 %v3094, %v3092
  %v3501 = vpack.c.bf16 %v3097, %v3095
  %v3502 = vpack.c.bf16 %v3098, %v3096
  %v3503 = vpack.c.bf16 %v3101, %v3099
  %v3504 = vpack.c.bf16 %v3102, %v3100
  %v3505 = vpack.c.bf16 %v3105, %v3103
  %v3506 = vpack.c.bf16 %v3106, %v3104
  %v3507 = vpack.c.bf16 %v3109, %v3107
  %v3508 = vpack.c.bf16 %v3110, %v3108
  %v3509 = vpack.c.bf16 %v3113, %v3111
  %v3510 = vpack.c.bf16 %v3114, %v3112
  %v3511 = vpack.c.bf16 %v3117, %v3115
  %v3512 = vpack.c.bf16 %v3118, %v3116
  %v3513 = vpack.c.bf16 %v3121, %v3119
  %v3514 = vpack.c.bf16 %v3122, %v3120
  %v3515 = vpack.c.bf16 %v3125, %v3123
  %v3516 = vpack.c.bf16 %v3126, %v3124
  %v3517 = vpack.c.bf16 %v3129, %v3127
  %v3518 = vpack.c.bf16 %v3130, %v3128
  %v3519 = vpack.c.bf16 %v3133, %v3131
  %v3520 = vpack.c.bf16 %v3134, %v3132
  %v3521 = vpack.c.bf16 %v3137, %v3135
  %v3522 = vpack.c.bf16 %v3138, %v3136
  %v3523 = vpack.c.bf16 %v3141, %v3139
  %v3524 = vpack.c.bf16 %v3142, %v3140
  %v3525 = vpack.c.bf16 %v3145, %v3143
  %v3526 = vpack.c.bf16 %v3146, %v3144
  %v3527 = vpack.c.bf16 %v3149, %v3147
  %v3528 = vpack.c.bf16 %v3150, %v3148
  %v3529 = vpack.c.bf16 %v3153, %v3151
  %v3530 = vpack.c.bf16 %v3154, %v3152
  %v3531 = vpack.c.bf16 %v3157, %v3155
  %v3532 = vpack.c.bf16 %v3158, %v3156
  %v3533 = vpack.c.bf16 %v3161, %v3159
  %v3534 = vpack.c.bf16 %v3162, %v3160
  %v3535 = vpack.c.bf16 %v3165, %v3163
  %v3536 = vpack.c.bf16 %v3166, %v3164
  %v3537 = vpack.c.bf16 %v3169, %v3167
  %v3538 = vpack.c.bf16 %v3170, %v3168
  %v3539 = vpack.c.bf16 %v3173, %v3171
  %v3540 = vpack.c.bf16 %v3174, %v3172
  %v3541 = vpack.c.bf16 %v3177, %v3175
  %v3542 = vpack.c.bf16 %v3178, %v3176
  %v3543 = vpack.c.bf16 %v3181, %v3179
  %v3544 = vpack.c.bf16 %v3182, %v3180
  %v3545 = vpack.c.bf16 %v3185, %v3183
  %v3546 = vpack.c.bf16 %v3186, %v3184
  %v3547 = vpack.c.bf16 %v3189, %v3187
  %v3548 = vpack.c.bf16 %v3190, %v3188
  %v3549 = vpack.c.bf16 %v3193, %v3191
  %v3550 = vpack.c.bf16 %v3194, %v3192
  %v3551 = vpack.c.bf16 %v3197, %v3195
  %v3552 = vpack.c.bf16 %v3198, %v3196
  %v3553 = vpack.c.bf16 %v3201, %v3199
  %v3554 = vpack.c.bf16 %v3202, %v3200
  %v3555 = vpack.c.bf16 %v3205, %v3203
  %v3556 = vpack.c.bf16 %v3206, %v3204
  %v3557 = vpack.c.bf16 %v3209, %v3207
  %v3558 = vpack.c.bf16 %v3210, %v3208
  %v3559 = vpack.c.bf16 %v3213, %v3211
  %v3560 = vpack.c.bf16 %v3214, %v3212
  %v3561 = vpack.c.bf16 %v3217, %v3215
  %v3562 = vpack.c.bf16 %v3218, %v3216
  %v3563 = vpack.c.bf16 %v3221, %v3219
  %v3564 = vpack.c.bf16 %v3222, %v3220
  %v3565 = vpack.c.bf16 %v3225, %v3223
  %v3566 = vpack.c.bf16 %v3226, %v3224
  %v3567 = vpack.c.bf16 %v3229, %v3227
  %v3568 = vpack.c.bf16 %v3230, %v3228
  %v3569 = vpack.c.bf16 %v3233, %v3231
  %v3570 = vpack.c.bf16 %v3234, %v3232
  %v3571 = vpack.c.bf16 %v3237, %v3235
  %v3572 = vpack.c.bf16 %v3238, %v3236
  %v3573 = vpack.c.bf16 %v3241, %v3239
  %v3574 = vpack.c.bf16 %v3242, %v3240
  %v3575 = vpack.c.bf16 %v3245, %v3243
  %v3576 = vpack.c.bf16 %v3246, %v3244
  %v3577 = vpack.c.bf16 %v3249, %v3247
  %v3578 = vpack.c.bf16 %v3250, %v3248
  %v3579 = vpack.c.bf16 %v3253, %v3251
  %v3580 = vpack.c.bf16 %v3254, %v3252
  %v3581 = vpack.c.bf16 %v3257, %v3255
  %v3582 = vpack.c.bf16 %v3258, %v3256
  %v3583 = vpack.c.bf16 %v3261, %v3259
  %v3584 = vpack.c.bf16 %v3262, %v3260
  %v3585 = vpack.c.bf16 %v3265, %v3263
  %v3586 = vpack.c.bf16 %v3266, %v3264
  %v3587 = vpack.c.bf16 %v3269, %v3267
  %v3588 = vpack.c.bf16 %v3270, %v3268
  %v3589 = vpack.c.bf16 %v3273, %v3271
  %v3590 = vpack.c.bf16 %v3274, %v3272
  %v3591 = vpack.c.bf16 %v3277, %v3275
  %v3592 = vpack.c.bf16 %v3278, %v3276
  %v3593 = vpack.c.bf16 %v3281, %v3279
  %v3594 = vpack.c.bf16 %v3282, %v3280
  %v3595 = vpack.c.bf16 %v3285, %v3283
  %v3596 = vpack.c.bf16 %v3286, %v3284
  %v3597 = vpack.c.bf16 %v3289, %v3287
  %v3598 = vpack.c.bf16 %v3290, %v3288
  %v3599 = vpack.c.bf16 %v3293, %v3291
  %v3600 = vpack.c.bf16 %v3294, %v3292
  %v3601 = vpack.c.bf16 %v3297, %v3295
  %v3602 = vpack.c.bf16 %v3298, %v3296
  %v3603 = vpack.c.bf16 %v3301, %v3299
  %v3604 = vpack.c.bf16 %v3302, %v3300
  %v3605 = vpack.c.bf16 %v3305, %v3303
  %v3606 = vpack.c.bf16 %v3306, %v3304
  %v3607 = vpack.c.bf16 %v3309, %v3307
  %v3608 = vpack.c.bf16 %v3310, %v3308
  %v3609 = vpack.c.bf16 %v3313, %v3311
  %v3610 = vpack.c.bf16 %v3314, %v3312
  %v3611 = vpack.c.bf16 %v3317, %v3315
  %v3612 = vpack.c.bf16 %v3318, %v3316
  %v3613 = vpack.c.bf16 %v3321, %v3319
  %v3614 = vpack.c.bf16 %v3322, %v3320
  %v3615 = vpack.c.bf16 %v3325, %v3323
  %v3616 = vpack.c.bf16 %v3326, %v3324
  %v3617 = vpack.c.bf16 %v3329, %v3327
  %v3618 = vpack.c.bf16 %v3330, %v3328
  %v3619 = vpack.c.bf16 %v3333, %v3331
  %v3620 = vpack.c.bf16 %v3334, %v3332
  %v3621 = vpack.c.bf16 %v3337, %v3335
  %v3622 = vpack.c.bf16 %v3338, %v3336
  %v3623 = vpack.c.bf16 %v3341, %v3339
  %v3624 = vpack.c.bf16 %v3342, %v3340
  %v3625 = vpack.c.bf16 %v3345, %v3343
  %v3626 = vpack.c.bf16 %v3346, %v3344
  %v3627 = vpack.c.bf16 %v3349, %v3347
  %v3628 = vpack.c.bf16 %v3350, %v3348
  %v3629 = vpack.c.bf16 %v3353, %v3351
  %v3630 = vpack.c.bf16 %v3354, %v3352
  %v3631 = vpack.c.bf16 %v3357, %v3355
  %v3632 = vpack.c.bf16 %v3358, %v3356
  %v3633 = vpack.c.bf16 %v3361, %v3359
  %v3634 = vpack.c.bf16 %v3362, %v3360
  %v3635 = vld [vmem:[%s3] sm:$0xf]
  %v3636 = vld [vmem:[%s3 + $0x4] sm:$0xf]
  %v3637 = vld [vmem:[%s3 + $0x8] sm:$0xf]
  %v3638 = vld [vmem:[%s3 + $0xc] sm:$0xf]
  %v3639 = vld [vmem:[%s3 + $0x10] sm:$0xf]
  %v3640 = vld [vmem:[%s3 + $0x14] sm:$0xf]
  %v3641 = vld [vmem:[%s3 + $0x18] sm:$0xf]
  %v3642 = vld [vmem:[%s3 + $0x1c] sm:$0xf]
  %v3643 = vld [vmem:[%s3 + $0x20] sm:$0xf]
  %v3644 = vld [vmem:[%s3 + $0x24] sm:$0xf]
  %v3645 = vld [vmem:[%s3 + $0x28] sm:$0xf]
  %v3646 = vld [vmem:[%s3 + $0x2c] sm:$0xf]
  %v3647 = vld [vmem:[%s3 + $0x30] sm:$0xf]
  %v3648 = vld [vmem:[%s3 + $0x34] sm:$0xf]
  %v3649 = vld [vmem:[%s3 + $0x38] sm:$0xf]
  %v3650 = vld [vmem:[%s3 + $0x3c] sm:$0xf]
  %v3651 = vld [vmem:[%s3 + $0x40] sm:$0xf]
  %v3652 = vld [vmem:[%s3 + $0x44] sm:$0xf]
  %v3653 = vld [vmem:[%s3 + $0x48] sm:$0xf]
  %v3654 = vld [vmem:[%s3 + $0x4c] sm:$0xf]
  %v3675 = vunpack.c.l.b16 %v3635
  %v3676 = vunpack.c.l.b16 %v3636
  %v3677 = vunpack.c.l.b16 %v3637
  %v3678 = vunpack.c.l.b16 %v3638
  %v3679 = vunpack.c.l.b16 %v3639
  %v3680 = vunpack.c.l.b16 %v3640
  %v3681 = vunpack.c.l.b16 %v3641
  %v3682 = vunpack.c.l.b16 %v3642
  %v3683 = vunpack.c.l.b16 %v3643
  %v3684 = vunpack.c.l.b16 %v3644
  %v3685 = vunpack.c.l.b16 %v3645
  %v3686 = vunpack.c.l.b16 %v3646
  %v3687 = vunpack.c.l.b16 %v3647
  %v3688 = vunpack.c.l.b16 %v3648
  %v3689 = vunpack.c.l.b16 %v3649
  %v3690 = vunpack.c.l.b16 %v3650
  %v3691 = vunpack.c.l.b16 %v3651
  %v3692 = vunpack.c.l.b16 %v3652
  %v3693 = vunpack.c.l.b16 %v3653
  %v3694 = vunpack.c.l.b16 %v3654
  %v3695 = vpack.c.b16 %v3676, %v3675
  %v3696 = vpack.c.b16 %v3678, %v3677
  %v3697 = vpack.c.b16 %v3680, %v3679
  %v3698 = vpack.c.b16 %v3682, %v3681
  %v3699 = vpack.c.b16 %v3684, %v3683
  %v3700 = vpack.c.b16 %v3686, %v3685
  %v3701 = vpack.c.b16 %v3688, %v3687
  %v3702 = vpack.c.b16 %v3690, %v3689
  %v3703 = vpack.c.b16 %v3692, %v3691
  %v3704 = vpack.c.b16 %v3694, %v3693
  %vm3715 = vcmask 261120
  %v3717 = vsel %vm3715, %v3364, 0
  %v3720 = vsel %vm3715, %v3366, 0
  %v3723 = vsel %vm3715, %v3368, 0
  %v3726 = vsel %vm3715, %v3370, 0
  %v3729 = vsel %vm3715, %v3372, 0
  %v3732 = vsel %vm3715, %v3374, 0
  %v3735 = vsel %vm3715, %v3376, 0
  %v3738 = vsel %vm3715, %v3378, 0
  %v3741 = vsel %vm3715, %v3380, 0
  %v3744 = vsel %vm3715, %v3382, 0
  %v3747 = vsel %vm3715, %v3384, 0
  %v3750 = vsel %vm3715, %v3386, 0
  %v3753 = vsel %vm3715, %v3388, 0
  %v3756 = vsel %vm3715, %v3390, 0
  %v3759 = vsel %vm3715, %v3392, 0
  %v3762 = vsel %vm3715, %v3394, 0
  %v3765 = vsel %vm3715, %v3396, 0
  %v3768 = vsel %vm3715, %v3398, 0
  %v3771 = vsel %vm3715, %v3400, 0
  %v3774 = vsel %vm3715, %v3402, 0
  %v3777 = vsel %vm3715, %v3404, 0
  %v3780 = vsel %vm3715, %v3406, 0
  %v3783 = vsel %vm3715, %v3408, 0
  %v3786 = vsel %vm3715, %v3410, 0
  %v3789 = vsel %vm3715, %v3412, 0
  %v3792 = vsel %vm3715, %v3414, 0
  %v3795 = vsel %vm3715, %v3416, 0
  %v3798 = vsel %vm3715, %v3418, 0
  %v3801 = vsel %vm3715, %v3420, 0
  %v3804 = vsel %vm3715, %v3422, 0
  %v3807 = vsel %vm3715, %v3424, 0
  %v3810 = vsel %vm3715, %v3426, 0
  %v3813 = vsel %vm3715, %v3428, 0
  %v3816 = vsel %vm3715, %v3430, 0
  %v3819 = vsel %vm3715, %v3432, 0
  %v3822 = vsel %vm3715, %v3434, 0
  %v3825 = vsel %vm3715, %v3436, 0
  %v3828 = vsel %vm3715, %v3438, 0
  %v3831 = vsel %vm3715, %v3440, 0
  %v3834 = vsel %vm3715, %v3442, 0
  %v3837 = vsel %vm3715, %v3444, 0
  %v3840 = vsel %vm3715, %v3446, 0
  %v3843 = vsel %vm3715, %v3448, 0
  %v3846 = vsel %vm3715, %v3450, 0
  %v3849 = vsel %vm3715, %v3452, 0
  %v3852 = vsel %vm3715, %v3454, 0
  %v3855 = vsel %vm3715, %v3456, 0
  %v3858 = vsel %vm3715, %v3458, 0
  %v3861 = vsel %vm3715, %v3460, 0
  %v3864 = vsel %vm3715, %v3462, 0
  %v3867 = vsel %vm3715, %v3464, 0
  %v3870 = vsel %vm3715, %v3466, 0
  %v3873 = vsel %vm3715, %v3468, 0
  %v3876 = vsel %vm3715, %v3470, 0
  %v3879 = vsel %vm3715, %v3472, 0
  %v3882 = vsel %vm3715, %v3474, 0
  %v3885 = vsel %vm3715, %v3476, 0
  %v3888 = vsel %vm3715, %v3478, 0
  %v3891 = vsel %vm3715, %v3480, 0
  %v3894 = vsel %vm3715, %v3482, 0
  %v3897 = vsel %vm3715, %v3484, 0
  %v3900 = vsel %vm3715, %v3486, 0
  %v3903 = vsel %vm3715, %v3488, 0
  %v3906 = vsel %vm3715, %v3490, 0
  %v3909 = vsel %vm3715, %v3492, 0
  %v3912 = vsel %vm3715, %v3494, 0
  %v3915 = vsel %vm3715, %v3496, 0
  %v3918 = vsel %vm3715, %v3498, 0
  %v3921 = vsel %vm3715, %v3500, 0
  %v3924 = vsel %vm3715, %v3502, 0
  %v3927 = vsel %vm3715, %v3504, 0
  %v3930 = vsel %vm3715, %v3506, 0
  %v3933 = vsel %vm3715, %v3508, 0
  %v3936 = vsel %vm3715, %v3510, 0
  %v3939 = vsel %vm3715, %v3512, 0
  %v3942 = vsel %vm3715, %v3514, 0
  %v3945 = vsel %vm3715, %v3516, 0
  %v3948 = vsel %vm3715, %v3518, 0
  %v3951 = vsel %vm3715, %v3520, 0
  %v3954 = vsel %vm3715, %v3522, 0
  %v3957 = vsel %vm3715, %v3524, 0
  %v3960 = vsel %vm3715, %v3526, 0
  %v3963 = vsel %vm3715, %v3528, 0
  %v3966 = vsel %vm3715, %v3530, 0
  %v3969 = vsel %vm3715, %v3532, 0
  %v3972 = vsel %vm3715, %v3534, 0
  %v3975 = vsel %vm3715, %v3536, 0
  %v3978 = vsel %vm3715, %v3538, 0
  %v3981 = vsel %vm3715, %v3540, 0
  %v3984 = vsel %vm3715, %v3542, 0
  %v3987 = vsel %vm3715, %v3544, 0
  %v3990 = vsel %vm3715, %v3546, 0
  %v3993 = vsel %vm3715, %v3548, 0
  %v3996 = vsel %vm3715, %v3550, 0
  %v3999 = vsel %vm3715, %v3552, 0
  %v4002 = vsel %vm3715, %v3554, 0
  %v4005 = vsel %vm3715, %v3556, 0
  %v4008 = vsel %vm3715, %v3558, 0
  %v4011 = vsel %vm3715, %v3560, 0
  %v4014 = vsel %vm3715, %v3562, 0
  %v4017 = vsel %vm3715, %v3564, 0
  %v4020 = vsel %vm3715, %v3566, 0
  %v4023 = vsel %vm3715, %v3568, 0
  %v4026 = vsel %vm3715, %v3570, 0
  %v4029 = vsel %vm3715, %v3572, 0
  %v4032 = vsel %vm3715, %v3574, 0
  %v4035 = vsel %vm3715, %v3576, 0
  %v4038 = vsel %vm3715, %v3578, 0
  %v4041 = vsel %vm3715, %v3580, 0
  %v4044 = vsel %vm3715, %v3582, 0
  %v4047 = vsel %vm3715, %v3584, 0
  %v4050 = vsel %vm3715, %v3586, 0
  %v4053 = vsel %vm3715, %v3588, 0
  %v4056 = vsel %vm3715, %v3590, 0
  %v4059 = vsel %vm3715, %v3592, 0
  %v4062 = vsel %vm3715, %v3594, 0
  %v4065 = vsel %vm3715, %v3596, 0
  %v4068 = vsel %vm3715, %v3598, 0
  %v4071 = vsel %vm3715, %v3600, 0
  %v4074 = vsel %vm3715, %v3602, 0
  %v4077 = vsel %vm3715, %v3604, 0
  %v4080 = vsel %vm3715, %v3606, 0
  %v4083 = vsel %vm3715, %v3608, 0
  %v4086 = vsel %vm3715, %v3610, 0
  %v4089 = vsel %vm3715, %v3612, 0
  %v4092 = vsel %vm3715, %v3614, 0
  %v4095 = vsel %vm3715, %v3616, 0
  %v4098 = vsel %vm3715, %v3618, 0
  %v4101 = vsel %vm3715, %v3620, 0
  %v4104 = vsel %vm3715, %v3622, 0
  %v4107 = vsel %vm3715, %v3624, 0
  %v4110 = vsel %vm3715, %v3626, 0
  %v4113 = vsel %vm3715, %v3628, 0
  %v4116 = vsel %vm3715, %v3630, 0
  %v4119 = vsel %vm3715, %v3632, 0
  %v4122 = vsel %vm3715, %v3634, 0
  %4124 = vmatprep.subr.bf16.mxu0 0
  %4125 = vmatpush1.bf16.msra.mxu0 %v3695
  %4126 = vmatprep.subr.bf16.mxu0 0
  %4127 = vmatpush1.bf16.msra.mxu0 %v3696
  %4128 = vmatprep.subr.bf16.mxu0 0
  %4129 = vmatpush1.bf16.msra.mxu0 %v3697
  %4130 = vmatprep.subr.bf16.mxu0 0
  %4131 = vmatpush1.bf16.msra.mxu0 %v3698
  %4132 = vmatprep.subr.bf16.mxu0 0
  %4133 = vmatpush1.bf16.msra.mxu0 %v3699
  %4134 = vmatprep.subr.bf16.mxu0 0
  %4135 = vmatpush1.bf16.msra.mxu0 %v3700
  %4136 = vmatprep.subr.bf16.mxu0 0
  %4137 = vmatpush1.bf16.msra.mxu0 %v3701
  %4138 = vmatprep.subr.bf16.mxu0 0
  %4139 = vmatpush1.bf16.msra.mxu0 %v3702
  %4140 = vmatprep.subr.bf16.mxu0 0
  %4141 = vmatpush1.bf16.msra.mxu0 %v3703
  %4142 = vmatprep.subr.bf16.mxu0 0
  %4143 = vmatpush1.bf16.msra.mxu0 %v3704
  %4144 = vmatprep.subr.bf16.mxu0 0
  %4145 = vmatpush1.bf16.msra.mxu0 0
  %4146 = vmatprep.subr.bf16.mxu0 0
  %4147 = vmatpush1.bf16.msra.mxu0 0
  %4148 = vmatprep.subr.bf16.mxu0 0
  %4149 = vmatpush1.bf16.msra.mxu0 0
  %4150 = vmatprep.subr.bf16.mxu0 0
  %4151 = vmatpush1.bf16.msra.mxu0 0
  %4152 = vmatprep.subr.bf16.mxu0 0
  %4153 = vmatpush1.bf16.msra.mxu0 0
  %4154 = vmatprep.subr.bf16.mxu0 0
  %4155 = vmatpush1.bf16.msra.mxu0 0
  %4156 = vmatprep.mubr.bf16.mxu0 %v3717
  %4157 = vmatmul.mubr.bf16.gmra.mrb[0].mxu0 %v3363
  %v4158 = vpop.f32.mrb[0].mxu0
  %v4159 = vadd.f32 0.0, %v4158
  %v4160 = vpop.f32.mrb[0].mxu0
  %v4161 = vpop.f32.mrb[0].mxu0
  %v4162 = vadd.f32 0.0, %v4161
  %v4163 = vpop.f32.mrb[0].mxu0
  %4164 = vmatprep.mubr.bf16.mxu0 %v3720
  %4165 = vmatmul.mubr.bf16.gmra.mrb[0].mxu0 %v3365
  %v4166 = vpop.f32.mrb[0].mxu0
  %v4167 = vadd.f32 0.0, %v4166
  %v4168 = vpop.f32.mrb[0].mxu0
  %v4169 = vpop.f32.mrb[0].mxu0
  %v4170 = vadd.f32 0.0, %v4169
  %v4171 = vpop.f32.mrb[0].mxu0
  %4172 = vmatprep.mubr.bf16.mxu0 %v3723
  %4173 = vmatmul.mubr.bf16.gmra.mrb[0].mxu0 %v3367
  %v4174 = vpop.f32.mrb[0].mxu0
  %v4175 = vadd.f32 0.0, %v4174
  %v4176 = vpop.f32.mrb[0].mxu0
  %v4177 = vpop.f32.mrb[0].mxu0
  %v4178 = vadd.f32 0.0, %v4177
  %v4179 = vpop.f32.mrb[0].mxu0
  %4180 = vmatprep.mubr.bf16.mxu0 %v3726
  %4181 = vmatmul.mubr.bf16.gmra.mrb[0].mxu0 %v3369
  %v4182 = vpop.f32.mrb[0].mxu0
  %v4183 = vadd.f32 0.0, %v4182
  %v4184 = vpop.f32.mrb[0].mxu0
  %v4185 = vpop.f32.mrb[0].mxu0
  %v4186 = vadd.f32 0.0, %v4185
  %v4187 = vpop.f32.mrb[0].mxu0
  %4188 = vmatprep.mubr.bf16.mxu0 %v3729
  %4189 = vmatmul.mubr.bf16.gmra.mrb[0].mxu0 %v3371
  %v4190 = vpop.f32.mrb[0].mxu0
  %v4191 = vadd.f32 0.0, %v4190
  %v4192 = vpop.f32.mrb[0].mxu0
  %v4193 = vpop.f32.mrb[0].mxu0
  %v4194 = vadd.f32 0.0, %v4193
  %v4195 = vpop.f32.mrb[0].mxu0
  %4196 = vmatprep.mubr.bf16.mxu0 %v3732
  %4197 = vmatmul.mubr.bf16.gmra.mrb[0].mxu0 %v3373
  %v4198 = vpop.f32.mrb[0].mxu0
  %v4199 = vadd.f32 0.0, %v4198
  %v4200 = vpop.f32.mrb[0].mxu0
  %v4201 = vpop.f32.mrb[0].mxu0
  %v4202 = vadd.f32 0.0, %v4201
  %v4203 = vpop.f32.mrb[0].mxu0
  %4204 = vmatprep.mubr.bf16.mxu0 %v3735
  %4205 = vmatmul.mubr.bf16.gmra.mrb[0].mxu0 %v3375
  %v4206 = vpop.f32.mrb[0].mxu0
  %v4207 = vadd.f32 0.0, %v4206
  %v4208 = vpop.f32.mrb[0].mxu0
  %v4209 = vpop.f32.mrb[0].mxu0
  %v4210 = vadd.f32 0.0, %v4209
  %v4211 = vpop.f32.mrb[0].mxu0
  %4212 = vmatprep.mubr.bf16.mxu0 %v3738
  %4213 = vmatmul.mubr.bf16.gmra.mrb[0].mxu0 %v3377
  %v4214 = vpop.f32.mrb[0].mxu0
  %v4215 = vadd.f32 0.0, %v4214
  %v4216 = vpop.f32.mrb[0].mxu0
  %v4217 = vpop.f32.mrb[0].mxu0
  %v4218 = vadd.f32 0.0, %v4217
  %v4219 = vpop.f32.mrb[0].mxu0
  %4220 = vmatprep.mubr.bf16.mxu0 %v3741
  %4221 = vmatmul.mubr.bf16.gmra.mrb[0].mxu0 %v3379
  %v4222 = vpop.f32.mrb[0].mxu0
  %v4223 = vadd.f32 0.0, %v4222
  %v4224 = vpop.f32.mrb[0].mxu0
  %v4225 = vpop.f32.mrb[0].mxu0
  %v4226 = vadd.f32 0.0, %v4225
  %v4227 = vpop.f32.mrb[0].mxu0
  %4228 = vmatprep.mubr.bf16.mxu0 %v3744
  %4229 = vmatmul.mubr.bf16.gmra.mrb[0].mxu0 %v3381
  %v4230 = vpop.f32.mrb[0].mxu0
  %v4231 = vadd.f32 0.0, %v4230
  %v4232 = vpop.f32.mrb[0].mxu0
  %v4233 = vpop.f32.mrb[0].mxu0
  %v4234 = vadd.f32 0.0, %v4233
  %v4235 = vpop.f32.mrb[0].mxu0
  %4236 = vmatprep.mubr.bf16.mxu0 %v3747
  %4237 = vmatmul.mubr.bf16.gmra.mrb[0].mxu0 %v3383
  %v4238 = vpop.f32.mrb[0].mxu0
  %v4239 = vadd.f32 0.0, %v4238
  %v4240 = vpop.f32.mrb[0].mxu0
  %v4241 = vpop.f32.mrb[0].mxu0
  %v4242 = vadd.f32 0.0, %v4241
  %v4243 = vpop.f32.mrb[0].mxu0
  %4244 = vmatprep.mubr.bf16.mxu0 %v3750
  %4245 = vmatmul.mubr.bf16.gmra.mrb[0].mxu0 %v3385
  %v4246 = vpop.f32.mrb[0].mxu0
  %v4247 = vadd.f32 0.0, %v4246
  %v4248 = vpop.f32.mrb[0].mxu0
  %v4249 = vpop.f32.mrb[0].mxu0
  %v4250 = vadd.f32 0.0, %v4249
  %v4251 = vpop.f32.mrb[0].mxu0
  %4252 = vmatprep.mubr.bf16.mxu0 %v3753
  %4253 = vmatmul.mubr.bf16.gmra.mrb[0].mxu0 %v3387
  %v4254 = vpop.f32.mrb[0].mxu0
  %v4255 = vadd.f32 0.0, %v4254
  %v4256 = vpop.f32.mrb[0].mxu0
  %v4257 = vpop.f32.mrb[0].mxu0
  %v4258 = vadd.f32 0.0, %v4257
  %v4259 = vpop.f32.mrb[0].mxu0
  %4260 = vmatprep.mubr.bf16.mxu0 %v3756
  %4261 = vmatmul.mubr.bf16.gmra.mrb[0].mxu0 %v3389
  %v4262 = vpop.f32.mrb[0].mxu0
  %v4263 = vadd.f32 0.0, %v4262
  %v4264 = vpop.f32.mrb[0].mxu0
  %v4265 = vpop.f32.mrb[0].mxu0
  %v4266 = vadd.f32 0.0, %v4265
  %v4267 = vpop.f32.mrb[0].mxu0
  %4268 = vmatprep.mubr.bf16.mxu0 %v3759
  %4269 = vmatmul.mubr.bf16.gmra.mrb[0].mxu0 %v3391
  %v4270 = vpop.f32.mrb[0].mxu0
  %v4271 = vadd.f32 0.0, %v4270
  %v4272 = vpop.f32.mrb[0].mxu0
  %v4273 = vpop.f32.mrb[0].mxu0
  %v4274 = vadd.f32 0.0, %v4273
  %v4275 = vpop.f32.mrb[0].mxu0
  %4276 = vmatprep.mubr.bf16.mxu0 %v3762
  %4277 = vmatmul.mubr.bf16.gmra.mrb[0].mxu0 %v3393
  %v4278 = vpop.f32.mrb[0].mxu0
  %v4279 = vadd.f32 0.0, %v4278
  %v4280 = vpop.f32.mrb[0].mxu0
  %v4281 = vpop.f32.mrb[0].mxu0
  %v4282 = vadd.f32 0.0, %v4281
  %v4283 = vpop.f32.mrb[0].mxu0
  %4284 = vmatprep.mubr.bf16.mxu0 %v3765
  %4285 = vmatmul.mubr.bf16.gmra.mrb[0].mxu0 %v3395
  %v4286 = vpop.f32.mrb[0].mxu0
  %v4287 = vadd.f32 0.0, %v4286
  %v4288 = vpop.f32.mrb[0].mxu0
  %v4289 = vpop.f32.mrb[0].mxu0
  %v4290 = vadd.f32 0.0, %v4289
  %v4291 = vpop.f32.mrb[0].mxu0
  %4292 = vmatprep.mubr.bf16.mxu0 %v3768
  %4293 = vmatmul.mubr.bf16.gmra.mrb[0].mxu0 %v3397
  %v4294 = vpop.f32.mrb[0].mxu0
  %v4295 = vadd.f32 0.0, %v4294
  %v4296 = vpop.f32.mrb[0].mxu0
  %v4297 = vpop.f32.mrb[0].mxu0
  %v4298 = vadd.f32 0.0, %v4297
  %v4299 = vpop.f32.mrb[0].mxu0
  %4300 = vmatprep.mubr.bf16.mxu0 %v3771
  %4301 = vmatmul.mubr.bf16.gmra.mrb[0].mxu0 %v3399
  %v4302 = vpop.f32.mrb[0].mxu0
  %v4303 = vadd.f32 0.0, %v4302
  %v4304 = vpop.f32.mrb[0].mxu0
  %v4305 = vpop.f32.mrb[0].mxu0
  %v4306 = vadd.f32 0.0, %v4305
  %v4307 = vpop.f32.mrb[0].mxu0
  %4308 = vmatprep.mubr.bf16.mxu0 %v3774
  %4309 = vmatmul.mubr.bf16.gmra.mrb[0].mxu0 %v3401
  %v4310 = vpop.f32.mrb[0].mxu0
  %v4311 = vadd.f32 0.0, %v4310
  %v4312 = vpop.f32.mrb[0].mxu0
  %v4313 = vpop.f32.mrb[0].mxu0
  %v4314 = vadd.f32 0.0, %v4313
  %v4315 = vpop.f32.mrb[0].mxu0
  %4316 = vmatprep.mubr.bf16.mxu0 %v3777
  %4317 = vmatmul.mubr.bf16.gmra.mrb[0].mxu0 %v3403
  %v4318 = vpop.f32.mrb[0].mxu0
  %v4319 = vadd.f32 0.0, %v4318
  %v4320 = vpop.f32.mrb[0].mxu0
  %v4321 = vpop.f32.mrb[0].mxu0
  %v4322 = vadd.f32 0.0, %v4321
  %v4323 = vpop.f32.mrb[0].mxu0
  %4324 = vmatprep.mubr.bf16.mxu0 %v3780
  %4325 = vmatmul.mubr.bf16.gmra.mrb[0].mxu0 %v3405
  %v4326 = vpop.f32.mrb[0].mxu0
  %v4327 = vadd.f32 0.0, %v4326
  %v4328 = vpop.f32.mrb[0].mxu0
  %v4329 = vpop.f32.mrb[0].mxu0
  %v4330 = vadd.f32 0.0, %v4329
  %v4331 = vpop.f32.mrb[0].mxu0
  %4332 = vmatprep.mubr.bf16.mxu0 %v3783
  %4333 = vmatmul.mubr.bf16.gmra.mrb[0].mxu0 %v3407
  %v4334 = vpop.f32.mrb[0].mxu0
  %v4335 = vadd.f32 0.0, %v4334
  %v4336 = vpop.f32.mrb[0].mxu0
  %v4337 = vpop.f32.mrb[0].mxu0
  %v4338 = vadd.f32 0.0, %v4337
  %v4339 = vpop.f32.mrb[0].mxu0
  %4340 = vmatprep.mubr.bf16.mxu0 %v3786
  %4341 = vmatmul.mubr.bf16.gmra.mrb[0].mxu0 %v3409
  %v4342 = vpop.f32.mrb[0].mxu0
  %v4343 = vadd.f32 0.0, %v4342
  %v4344 = vpop.f32.mrb[0].mxu0
  %v4345 = vpop.f32.mrb[0].mxu0
  %v4346 = vadd.f32 0.0, %v4345
  %v4347 = vpop.f32.mrb[0].mxu0
  %4348 = vmatprep.mubr.bf16.mxu0 %v3789
  %4349 = vmatmul.mubr.bf16.gmra.mrb[0].mxu0 %v3411
  %v4350 = vpop.f32.mrb[0].mxu0
  %v4351 = vadd.f32 0.0, %v4350
  %v4352 = vpop.f32.mrb[0].mxu0
  %v4353 = vpop.f32.mrb[0].mxu0
  %v4354 = vadd.f32 0.0, %v4353
  %v4355 = vpop.f32.mrb[0].mxu0
  %4356 = vmatprep.mubr.bf16.mxu0 %v3792
  %4357 = vmatmul.mubr.bf16.gmra.mrb[0].mxu0 %v3413
  %v4358 = vpop.f32.mrb[0].mxu0
  %v4359 = vadd.f32 0.0, %v4358
  %v4360 = vpop.f32.mrb[0].mxu0
  %v4361 = vpop.f32.mrb[0].mxu0
  %v4362 = vadd.f32 0.0, %v4361
  %v4363 = vpop.f32.mrb[0].mxu0
  %4364 = vmatprep.mubr.bf16.mxu0 %v3795
  %4365 = vmatmul.mubr.bf16.gmra.mrb[0].mxu0 %v3415
  %v4366 = vpop.f32.mrb[0].mxu0
  %v4367 = vadd.f32 0.0, %v4366
  %v4368 = vpop.f32.mrb[0].mxu0
  %v4369 = vpop.f32.mrb[0].mxu0
  %v4370 = vadd.f32 0.0, %v4369
  %v4371 = vpop.f32.mrb[0].mxu0
  %4372 = vmatprep.mubr.bf16.mxu0 %v3798
  %4373 = vmatmul.mubr.bf16.gmra.mrb[0].mxu0 %v3417
  %v4374 = vpop.f32.mrb[0].mxu0
  %v4375 = vadd.f32 0.0, %v4374
  %v4376 = vpop.f32.mrb[0].mxu0
  %v4377 = vpop.f32.mrb[0].mxu0
  %v4378 = vadd.f32 0.0, %v4377
  %v4379 = vpop.f32.mrb[0].mxu0
  %4380 = vmatprep.mubr.bf16.mxu0 %v3801
  %4381 = vmatmul.mubr.bf16.gmra.mrb[0].mxu0 %v3419
  %v4382 = vpop.f32.mrb[0].mxu0
  %v4383 = vadd.f32 0.0, %v4382
  %v4384 = vpop.f32.mrb[0].mxu0
  %v4385 = vpop.f32.mrb[0].mxu0
  %v4386 = vadd.f32 0.0, %v4385
  %v4387 = vpop.f32.mrb[0].mxu0
  %4388 = vmatprep.mubr.bf16.mxu0 %v3804
  %4389 = vmatmul.mubr.bf16.gmra.mrb[0].mxu0 %v3421
  %v4390 = vpop.f32.mrb[0].mxu0
  %v4391 = vadd.f32 0.0, %v4390
  %v4392 = vpop.f32.mrb[0].mxu0
  %v4393 = vpop.f32.mrb[0].mxu0
  %v4394 = vadd.f32 0.0, %v4393
  %v4395 = vpop.f32.mrb[0].mxu0
  %4396 = vmatprep.mubr.bf16.mxu0 %v3807
  %4397 = vmatmul.mubr.bf16.gmra.mrb[0].mxu0 %v3423
  %v4398 = vpop.f32.mrb[0].mxu0
  %v4399 = vadd.f32 0.0, %v4398
  %v4400 = vpop.f32.mrb[0].mxu0
  %v4401 = vpop.f32.mrb[0].mxu0
  %v4402 = vadd.f32 0.0, %v4401
  %v4403 = vpop.f32.mrb[0].mxu0
  %4404 = vmatprep.mubr.bf16.mxu0 %v3810
  %4405 = vmatmul.mubr.bf16.gmra.mrb[0].mxu0 %v3425
  %v4406 = vpop.f32.mrb[0].mxu0
  %v4407 = vadd.f32 0.0, %v4406
  %v4408 = vpop.f32.mrb[0].mxu0
  %v4409 = vpop.f32.mrb[0].mxu0
  %v4410 = vadd.f32 0.0, %v4409
  %v4411 = vpop.f32.mrb[0].mxu0
  %4412 = vmatprep.mubr.bf16.mxu0 %v3813
  %4413 = vmatmul.mubr.bf16.gmra.mrb[0].mxu0 %v3427
  %v4414 = vpop.f32.mrb[0].mxu0
  %v4415 = vadd.f32 0.0, %v4414
  %v4416 = vpop.f32.mrb[0].mxu0
  %v4417 = vpop.f32.mrb[0].mxu0
  %v4418 = vadd.f32 0.0, %v4417
  %v4419 = vpop.f32.mrb[0].mxu0
  %4420 = vmatprep.mubr.bf16.mxu0 %v3816
  %4421 = vmatmul.mubr.bf16.gmra.mrb[0].mxu0 %v3429
  %v4422 = vpop.f32.mrb[0].mxu0
  %v4423 = vadd.f32 0.0, %v4422
  %v4424 = vpop.f32.mrb[0].mxu0
  %v4425 = vpop.f32.mrb[0].mxu0
  %v4426 = vadd.f32 0.0, %v4425
  %v4427 = vpop.f32.mrb[0].mxu0
  %4428 = vmatprep.mubr.bf16.mxu0 %v3819
  %4429 = vmatmul.mubr.bf16.gmra.mrb[0].mxu0 %v3431
  %v4430 = vpop.f32.mrb[0].mxu0
  %v4431 = vadd.f32 0.0, %v4430
  %v4432 = vpop.f32.mrb[0].mxu0
  %v4433 = vpop.f32.mrb[0].mxu0
  %v4434 = vadd.f32 0.0, %v4433
  %v4435 = vpop.f32.mrb[0].mxu0
  %4436 = vmatprep.mubr.bf16.mxu0 %v3822
  %4437 = vmatmul.mubr.bf16.gmra.mrb[0].mxu0 %v3433
  %v4438 = vpop.f32.mrb[0].mxu0
  %v4439 = vadd.f32 0.0, %v4438
  %v4440 = vpop.f32.mrb[0].mxu0
  %v4441 = vpop.f32.mrb[0].mxu0
  %v4442 = vadd.f32 0.0, %v4441
  %v4443 = vpop.f32.mrb[0].mxu0
  %4444 = vmatprep.mubr.bf16.mxu0 %v3825
  %4445 = vmatmul.mubr.bf16.gmra.mrb[0].mxu0 %v3435
  %v4446 = vpop.f32.mrb[0].mxu0
  %v4447 = vadd.f32 0.0, %v4446
  %v4448 = vpop.f32.mrb[0].mxu0
  %v4449 = vpop.f32.mrb[0].mxu0
  %v4450 = vadd.f32 0.0, %v4449
  %v4451 = vpop.f32.mrb[0].mxu0
  %4452 = vmatprep.mubr.bf16.mxu0 %v3828
  %4453 = vmatmul.mubr.bf16.gmra.mrb[0].mxu0 %v3437
  %v4454 = vpop.f32.mrb[0].mxu0
  %v4455 = vadd.f32 0.0, %v4454
  %v4456 = vpop.f32.mrb[0].mxu0
  %v4457 = vpop.f32.mrb[0].mxu0
  %v4458 = vadd.f32 0.0, %v4457
  %v4459 = vpop.f32.mrb[0].mxu0
  %4460 = vmatprep.mubr.bf16.mxu0 %v3831
  %4461 = vmatmul.mubr.bf16.gmra.mrb[0].mxu0 %v3439
  %v4462 = vpop.f32.mrb[0].mxu0
  %v4463 = vadd.f32 0.0, %v4462
  %v4464 = vpop.f32.mrb[0].mxu0
  %v4465 = vpop.f32.mrb[0].mxu0
  %v4466 = vadd.f32 0.0, %v4465
  %v4467 = vpop.f32.mrb[0].mxu0
  %4468 = vmatprep.mubr.bf16.mxu0 %v3834
  %4469 = vmatmul.mubr.bf16.gmra.mrb[0].mxu0 %v3441
  %v4470 = vpop.f32.mrb[0].mxu0
  %v4471 = vadd.f32 0.0, %v4470
  %v4472 = vpop.f32.mrb[0].mxu0
  %v4473 = vpop.f32.mrb[0].mxu0
  %v4474 = vadd.f32 0.0, %v4473
  %v4475 = vpop.f32.mrb[0].mxu0
  %4476 = vmatprep.mubr.bf16.mxu0 %v3837
  %4477 = vmatmul.mubr.bf16.gmra.mrb[0].mxu0 %v3443
  %v4478 = vpop.f32.mrb[0].mxu0
  %v4479 = vadd.f32 0.0, %v4478
  %v4480 = vpop.f32.mrb[0].mxu0
  %v4481 = vpop.f32.mrb[0].mxu0
  %v4482 = vadd.f32 0.0, %v4481
  %v4483 = vpop.f32.mrb[0].mxu0
  %4484 = vmatprep.mubr.bf16.mxu0 %v3840
  %4485 = vmatmul.mubr.bf16.gmra.mrb[0].mxu0 %v3445
  %v4486 = vpop.f32.mrb[0].mxu0
  %v4487 = vadd.f32 0.0, %v4486
  %v4488 = vpop.f32.mrb[0].mxu0
  %v4489 = vpop.f32.mrb[0].mxu0
  %v4490 = vadd.f32 0.0, %v4489
  %v4491 = vpop.f32.mrb[0].mxu0
  %4492 = vmatprep.mubr.bf16.mxu0 %v3843
  %4493 = vmatmul.mubr.bf16.gmra.mrb[0].mxu0 %v3447
  %v4494 = vpop.f32.mrb[0].mxu0
  %v4495 = vadd.f32 0.0, %v4494
  %v4496 = vpop.f32.mrb[0].mxu0
  %v4497 = vpop.f32.mrb[0].mxu0
  %v4498 = vadd.f32 0.0, %v4497
  %v4499 = vpop.f32.mrb[0].mxu0
  %4500 = vmatprep.mubr.bf16.mxu0 %v3846
  %4501 = vmatmul.mubr.bf16.gmra.mrb[0].mxu0 %v3449
  %v4502 = vpop.f32.mrb[0].mxu0
  %v4503 = vadd.f32 0.0, %v4502
  %v4504 = vpop.f32.mrb[0].mxu0
  %v4505 = vpop.f32.mrb[0].mxu0
  %v4506 = vadd.f32 0.0, %v4505
  %v4507 = vpop.f32.mrb[0].mxu0
  %4508 = vmatprep.mubr.bf16.mxu0 %v3849
  %4509 = vmatmul.mubr.bf16.gmra.mrb[0].mxu0 %v3451
  %v4510 = vpop.f32.mrb[0].mxu0
  %v4511 = vadd.f32 0.0, %v4510
  %v4512 = vpop.f32.mrb[0].mxu0
  %v4513 = vpop.f32.mrb[0].mxu0
  %v4514 = vadd.f32 0.0, %v4513
  %v4515 = vpop.f32.mrb[0].mxu0
  %4516 = vmatprep.mubr.bf16.mxu0 %v3852
  %4517 = vmatmul.mubr.bf16.gmra.mrb[0].mxu0 %v3453
  %v4518 = vpop.f32.mrb[0].mxu0
  %v4519 = vadd.f32 0.0, %v4518
  %v4520 = vpop.f32.mrb[0].mxu0
  %v4521 = vpop.f32.mrb[0].mxu0
  %v4522 = vadd.f32 0.0, %v4521
  %v4523 = vpop.f32.mrb[0].mxu0
  %4524 = vmatprep.mubr.bf16.mxu0 %v3855
  %4525 = vmatmul.mubr.bf16.gmra.mrb[0].mxu0 %v3455
  %v4526 = vpop.f32.mrb[0].mxu0
  %v4527 = vadd.f32 0.0, %v4526
  %v4528 = vpop.f32.mrb[0].mxu0
  %v4529 = vpop.f32.mrb[0].mxu0
  %v4530 = vadd.f32 0.0, %v4529
  %v4531 = vpop.f32.mrb[0].mxu0
  %4532 = vmatprep.mubr.bf16.mxu0 %v3858
  %4533 = vmatmul.mubr.bf16.gmra.mrb[0].mxu0 %v3457
  %v4534 = vpop.f32.mrb[0].mxu0
  %v4535 = vadd.f32 0.0, %v4534
  %v4536 = vpop.f32.mrb[0].mxu0
  %v4537 = vpop.f32.mrb[0].mxu0
  %v4538 = vadd.f32 0.0, %v4537
  %v4539 = vpop.f32.mrb[0].mxu0
  %4540 = vmatprep.mubr.bf16.mxu0 %v3861
  %4541 = vmatmul.mubr.bf16.gmra.mrb[0].mxu0 %v3459
  %v4542 = vpop.f32.mrb[0].mxu0
  %v4543 = vadd.f32 0.0, %v4542
  %v4544 = vpop.f32.mrb[0].mxu0
  %v4545 = vpop.f32.mrb[0].mxu0
  %v4546 = vadd.f32 0.0, %v4545
  %v4547 = vpop.f32.mrb[0].mxu0
  %4548 = vmatprep.mubr.bf16.mxu0 %v3864
  %4549 = vmatmul.mubr.bf16.gmra.mrb[0].mxu0 %v3461
  %v4550 = vpop.f32.mrb[0].mxu0
  %v4551 = vadd.f32 0.0, %v4550
  %v4552 = vpop.f32.mrb[0].mxu0
  %v4553 = vpop.f32.mrb[0].mxu0
  %v4554 = vadd.f32 0.0, %v4553
  %v4555 = vpop.f32.mrb[0].mxu0
  %4556 = vmatprep.mubr.bf16.mxu0 %v3867
  %4557 = vmatmul.mubr.bf16.gmra.mrb[0].mxu0 %v3463
  %v4558 = vpop.f32.mrb[0].mxu0
  %v4559 = vadd.f32 0.0, %v4558
  %v4560 = vpop.f32.mrb[0].mxu0
  %v4561 = vpop.f32.mrb[0].mxu0
  %v4562 = vadd.f32 0.0, %v4561
  %v4563 = vpop.f32.mrb[0].mxu0
  %4564 = vmatprep.mubr.bf16.mxu0 %v3870
  %4565 = vmatmul.mubr.bf16.gmra.mrb[0].mxu0 %v3465
  %v4566 = vpop.f32.mrb[0].mxu0
  %v4567 = vadd.f32 0.0, %v4566
  %v4568 = vpop.f32.mrb[0].mxu0
  %v4569 = vpop.f32.mrb[0].mxu0
  %v4570 = vadd.f32 0.0, %v4569
  %v4571 = vpop.f32.mrb[0].mxu0
  %4572 = vmatprep.mubr.bf16.mxu0 %v3873
  %4573 = vmatmul.mubr.bf16.gmra.mrb[0].mxu0 %v3467
  %v4574 = vpop.f32.mrb[0].mxu0
  %v4575 = vadd.f32 0.0, %v4574
  %v4576 = vpop.f32.mrb[0].mxu0
  %v4577 = vpop.f32.mrb[0].mxu0
  %v4578 = vadd.f32 0.0, %v4577
  %v4579 = vpop.f32.mrb[0].mxu0
  %4580 = vmatprep.mubr.bf16.mxu0 %v3876
  %4581 = vmatmul.mubr.bf16.gmra.mrb[0].mxu0 %v3469
  %v4582 = vpop.f32.mrb[0].mxu0
  %v4583 = vadd.f32 0.0, %v4582
  %v4584 = vpop.f32.mrb[0].mxu0
  %v4585 = vpop.f32.mrb[0].mxu0
  %v4586 = vadd.f32 0.0, %v4585
  %v4587 = vpop.f32.mrb[0].mxu0
  %4588 = vmatprep.mubr.bf16.mxu0 %v3879
  %4589 = vmatmul.mubr.bf16.gmra.mrb[0].mxu0 %v3471
  %v4590 = vpop.f32.mrb[0].mxu0
  %v4591 = vadd.f32 0.0, %v4590
  %v4592 = vpop.f32.mrb[0].mxu0
  %v4593 = vpop.f32.mrb[0].mxu0
  %v4594 = vadd.f32 0.0, %v4593
  %v4595 = vpop.f32.mrb[0].mxu0
  %4596 = vmatprep.mubr.bf16.mxu0 %v3882
  %4597 = vmatmul.mubr.bf16.gmra.mrb[0].mxu0 %v3473
  %v4598 = vpop.f32.mrb[0].mxu0
  %v4599 = vadd.f32 0.0, %v4598
  %v4600 = vpop.f32.mrb[0].mxu0
  %v4601 = vpop.f32.mrb[0].mxu0
  %v4602 = vadd.f32 0.0, %v4601
  %v4603 = vpop.f32.mrb[0].mxu0
  %4604 = vmatprep.mubr.bf16.mxu0 %v3885
  %4605 = vmatmul.mubr.bf16.gmra.mrb[0].mxu0 %v3475
  %v4606 = vpop.f32.mrb[0].mxu0
  %v4607 = vadd.f32 0.0, %v4606
  %v4608 = vpop.f32.mrb[0].mxu0
  %v4609 = vpop.f32.mrb[0].mxu0
  %v4610 = vadd.f32 0.0, %v4609
  %v4611 = vpop.f32.mrb[0].mxu0
  %4612 = vmatprep.mubr.bf16.mxu0 %v3888
  %4613 = vmatmul.mubr.bf16.gmra.mrb[0].mxu0 %v3477
  %v4614 = vpop.f32.mrb[0].mxu0
  %v4615 = vadd.f32 0.0, %v4614
  %v4616 = vpop.f32.mrb[0].mxu0
  %v4617 = vpop.f32.mrb[0].mxu0
  %v4618 = vadd.f32 0.0, %v4617
  %v4619 = vpop.f32.mrb[0].mxu0
  %4620 = vmatprep.mubr.bf16.mxu0 %v3891
  %4621 = vmatmul.mubr.bf16.gmra.mrb[0].mxu0 %v3479
  %v4622 = vpop.f32.mrb[0].mxu0
  %v4623 = vadd.f32 0.0, %v4622
  %v4624 = vpop.f32.mrb[0].mxu0
  %v4625 = vpop.f32.mrb[0].mxu0
  %v4626 = vadd.f32 0.0, %v4625
  %v4627 = vpop.f32.mrb[0].mxu0
  %4628 = vmatprep.mubr.bf16.mxu0 %v3894
  %4629 = vmatmul.mubr.bf16.gmra.mrb[0].mxu0 %v3481
  %v4630 = vpop.f32.mrb[0].mxu0
  %v4631 = vadd.f32 0.0, %v4630
  %v4632 = vpop.f32.mrb[0].mxu0
  %v4633 = vpop.f32.mrb[0].mxu0
  %v4634 = vadd.f32 0.0, %v4633
  %v4635 = vpop.f32.mrb[0].mxu0
  %4636 = vmatprep.mubr.bf16.mxu0 %v3897
  %4637 = vmatmul.mubr.bf16.gmra.mrb[0].mxu0 %v3483
  %v4638 = vpop.f32.mrb[0].mxu0
  %v4639 = vadd.f32 0.0, %v4638
  %v4640 = vpop.f32.mrb[0].mxu0
  %v4641 = vpop.f32.mrb[0].mxu0
  %v4642 = vadd.f32 0.0, %v4641
  %v4643 = vpop.f32.mrb[0].mxu0
  %4644 = vmatprep.mubr.bf16.mxu0 %v3900
  %4645 = vmatmul.mubr.bf16.gmra.mrb[0].mxu0 %v3485
  %v4646 = vpop.f32.mrb[0].mxu0
  %v4647 = vadd.f32 0.0, %v4646
  %v4648 = vpop.f32.mrb[0].mxu0
  %v4649 = vpop.f32.mrb[0].mxu0
  %v4650 = vadd.f32 0.0, %v4649
  %v4651 = vpop.f32.mrb[0].mxu0
  %4652 = vmatprep.mubr.bf16.mxu0 %v3903
  %4653 = vmatmul.mubr.bf16.gmra.mrb[0].mxu0 %v3487
  %v4654 = vpop.f32.mrb[0].mxu0
  %v4655 = vadd.f32 0.0, %v4654
  %v4656 = vpop.f32.mrb[0].mxu0
  %v4657 = vpop.f32.mrb[0].mxu0
  %v4658 = vadd.f32 0.0, %v4657
  %v4659 = vpop.f32.mrb[0].mxu0
  %4660 = vmatprep.mubr.bf16.mxu0 %v3906
  %4661 = vmatmul.mubr.bf16.gmra.mrb[0].mxu0 %v3489
  %v4662 = vpop.f32.mrb[0].mxu0
  %v4663 = vadd.f32 0.0, %v4662
  %v4664 = vpop.f32.mrb[0].mxu0
  %v4665 = vpop.f32.mrb[0].mxu0
  %v4666 = vadd.f32 0.0, %v4665
  %v4667 = vpop.f32.mrb[0].mxu0
  %4668 = vmatprep.mubr.bf16.mxu0 %v3909
  %4669 = vmatmul.mubr.bf16.gmra.mrb[0].mxu0 %v3491
  %v4670 = vpop.f32.mrb[0].mxu0
  %v4671 = vadd.f32 0.0, %v4670
  %v4672 = vpop.f32.mrb[0].mxu0
  %v4673 = vpop.f32.mrb[0].mxu0
  %v4674 = vadd.f32 0.0, %v4673
  %v4675 = vpop.f32.mrb[0].mxu0
  %4676 = vmatprep.mubr.bf16.mxu0 %v3912
  %4677 = vmatmul.mubr.bf16.gmra.mrb[0].mxu0 %v3493
  %v4678 = vpop.f32.mrb[0].mxu0
  %v4679 = vadd.f32 0.0, %v4678
  %v4680 = vpop.f32.mrb[0].mxu0
  %v4681 = vpop.f32.mrb[0].mxu0
  %v4682 = vadd.f32 0.0, %v4681
  %v4683 = vpop.f32.mrb[0].mxu0
  %4684 = vmatprep.mubr.bf16.mxu0 %v3915
  %4685 = vmatmul.mubr.bf16.gmra.mrb[0].mxu0 %v3495
  %v4686 = vpop.f32.mrb[0].mxu0
  %v4687 = vadd.f32 0.0, %v4686
  %v4688 = vpop.f32.mrb[0].mxu0
  %v4689 = vpop.f32.mrb[0].mxu0
  %v4690 = vadd.f32 0.0, %v4689
  %v4691 = vpop.f32.mrb[0].mxu0
  %4692 = vmatprep.mubr.bf16.mxu0 %v3918
  %4693 = vmatmul.mubr.bf16.gmra.mrb[0].mxu0 %v3497
  %v4694 = vpop.f32.mrb[0].mxu0
  %v4695 = vadd.f32 0.0, %v4694
  %v4696 = vpop.f32.mrb[0].mxu0
  %v4697 = vpop.f32.mrb[0].mxu0
  %v4698 = vadd.f32 0.0, %v4697
  %v4699 = vpop.f32.mrb[0].mxu0
  %4700 = vmatprep.mubr.bf16.mxu0 %v3921
  %4701 = vmatmul.mubr.bf16.gmra.mrb[0].mxu0 %v3499
  %v4702 = vpop.f32.mrb[0].mxu0
  %v4703 = vadd.f32 0.0, %v4702
  %v4704 = vpop.f32.mrb[0].mxu0
  %v4705 = vpop.f32.mrb[0].mxu0
  %v4706 = vadd.f32 0.0, %v4705
  %v4707 = vpop.f32.mrb[0].mxu0
  %4708 = vmatprep.mubr.bf16.mxu0 %v3924
  %4709 = vmatmul.mubr.bf16.gmra.mrb[0].mxu0 %v3501
  %v4710 = vpop.f32.mrb[0].mxu0
  %v4711 = vadd.f32 0.0, %v4710
  %v4712 = vpop.f32.mrb[0].mxu0
  %v4713 = vpop.f32.mrb[0].mxu0
  %v4714 = vadd.f32 0.0, %v4713
  %v4715 = vpop.f32.mrb[0].mxu0
  %4716 = vmatprep.mubr.bf16.mxu0 %v3927
  %4717 = vmatmul.mubr.bf16.gmra.mrb[0].mxu0 %v3503
  %v4718 = vpop.f32.mrb[0].mxu0
  %v4719 = vadd.f32 0.0, %v4718
  %v4720 = vpop.f32.mrb[0].mxu0
  %v4721 = vpop.f32.mrb[0].mxu0
  %v4722 = vadd.f32 0.0, %v4721
  %v4723 = vpop.f32.mrb[0].mxu0
  %4724 = vmatprep.mubr.bf16.mxu0 %v3930
  %4725 = vmatmul.mubr.bf16.gmra.mrb[0].mxu0 %v3505
  %v4726 = vpop.f32.mrb[0].mxu0
  %v4727 = vadd.f32 0.0, %v4726
  %v4728 = vpop.f32.mrb[0].mxu0
  %v4729 = vpop.f32.mrb[0].mxu0
  %v4730 = vadd.f32 0.0, %v4729
  %v4731 = vpop.f32.mrb[0].mxu0
  %4732 = vmatprep.mubr.bf16.mxu0 %v3933
  %4733 = vmatmul.mubr.bf16.gmra.mrb[0].mxu0 %v3507
  %v4734 = vpop.f32.mrb[0].mxu0
  %v4735 = vadd.f32 0.0, %v4734
  %v4736 = vpop.f32.mrb[0].mxu0
  %v4737 = vpop.f32.mrb[0].mxu0
  %v4738 = vadd.f32 0.0, %v4737
  %v4739 = vpop.f32.mrb[0].mxu0
  %4740 = vmatprep.mubr.bf16.mxu0 %v3936
  %4741 = vmatmul.mubr.bf16.gmra.mrb[0].mxu0 %v3509
  %v4742 = vpop.f32.mrb[0].mxu0
  %v4743 = vadd.f32 0.0, %v4742
  %v4744 = vpop.f32.mrb[0].mxu0
  %v4745 = vpop.f32.mrb[0].mxu0
  %v4746 = vadd.f32 0.0, %v4745
  %v4747 = vpop.f32.mrb[0].mxu0
  %4748 = vmatprep.mubr.bf16.mxu0 %v3939
  %4749 = vmatmul.mubr.bf16.gmra.mrb[0].mxu0 %v3511
  %v4750 = vpop.f32.mrb[0].mxu0
  %v4751 = vadd.f32 0.0, %v4750
  %v4752 = vpop.f32.mrb[0].mxu0
  %v4753 = vpop.f32.mrb[0].mxu0
  %v4754 = vadd.f32 0.0, %v4753
  %v4755 = vpop.f32.mrb[0].mxu0
  %4756 = vmatprep.mubr.bf16.mxu0 %v3942
  %4757 = vmatmul.mubr.bf16.gmra.mrb[0].mxu0 %v3513
  %v4758 = vpop.f32.mrb[0].mxu0
  %v4759 = vadd.f32 0.0, %v4758
  %v4760 = vpop.f32.mrb[0].mxu0
  %v4761 = vpop.f32.mrb[0].mxu0
  %v4762 = vadd.f32 0.0, %v4761
  %v4763 = vpop.f32.mrb[0].mxu0
  %4764 = vmatprep.mubr.bf16.mxu0 %v3945
  %4765 = vmatmul.mubr.bf16.gmra.mrb[0].mxu0 %v3515
  %v4766 = vpop.f32.mrb[0].mxu0
  %v4767 = vadd.f32 0.0, %v4766
  %v4768 = vpop.f32.mrb[0].mxu0
  %v4769 = vpop.f32.mrb[0].mxu0
  %v4770 = vadd.f32 0.0, %v4769
  %v4771 = vpop.f32.mrb[0].mxu0
  %4772 = vmatprep.mubr.bf16.mxu0 %v3948
  %4773 = vmatmul.mubr.bf16.gmra.mrb[0].mxu0 %v3517
  %v4774 = vpop.f32.mrb[0].mxu0
  %v4775 = vadd.f32 0.0, %v4774
  %v4776 = vpop.f32.mrb[0].mxu0
  %v4777 = vpop.f32.mrb[0].mxu0
  %v4778 = vadd.f32 0.0, %v4777
  %v4779 = vpop.f32.mrb[0].mxu0
  %4780 = vmatprep.mubr.bf16.mxu0 %v3951
  %4781 = vmatmul.mubr.bf16.gmra.mrb[0].mxu0 %v3519
  %v4782 = vpop.f32.mrb[0].mxu0
  %v4783 = vadd.f32 0.0, %v4782
  %v4784 = vpop.f32.mrb[0].mxu0
  %v4785 = vpop.f32.mrb[0].mxu0
  %v4786 = vadd.f32 0.0, %v4785
  %v4787 = vpop.f32.mrb[0].mxu0
  %4788 = vmatprep.mubr.bf16.mxu0 %v3954
  %4789 = vmatmul.mubr.bf16.gmra.mrb[0].mxu0 %v3521
  %v4790 = vpop.f32.mrb[0].mxu0
  %v4791 = vadd.f32 0.0, %v4790
  %v4792 = vpop.f32.mrb[0].mxu0
  %v4793 = vpop.f32.mrb[0].mxu0
  %v4794 = vadd.f32 0.0, %v4793
  %v4795 = vpop.f32.mrb[0].mxu0
  %4796 = vmatprep.mubr.bf16.mxu0 %v3957
  %4797 = vmatmul.mubr.bf16.gmra.mrb[0].mxu0 %v3523
  %v4798 = vpop.f32.mrb[0].mxu0
  %v4799 = vadd.f32 0.0, %v4798
  %v4800 = vpop.f32.mrb[0].mxu0
  %v4801 = vpop.f32.mrb[0].mxu0
  %v4802 = vadd.f32 0.0, %v4801
  %v4803 = vpop.f32.mrb[0].mxu0
  %4804 = vmatprep.mubr.bf16.mxu0 %v3960
  %4805 = vmatmul.mubr.bf16.gmra.mrb[0].mxu0 %v3525
  %v4806 = vpop.f32.mrb[0].mxu0
  %v4807 = vadd.f32 0.0, %v4806
  %v4808 = vpop.f32.mrb[0].mxu0
  %v4809 = vpop.f32.mrb[0].mxu0
  %v4810 = vadd.f32 0.0, %v4809
  %v4811 = vpop.f32.mrb[0].mxu0
  %4812 = vmatprep.mubr.bf16.mxu0 %v3963
  %4813 = vmatmul.mubr.bf16.gmra.mrb[0].mxu0 %v3527
  %v4814 = vpop.f32.mrb[0].mxu0
  %v4815 = vadd.f32 0.0, %v4814
  %v4816 = vpop.f32.mrb[0].mxu0
  %v4817 = vpop.f32.mrb[0].mxu0
  %v4818 = vadd.f32 0.0, %v4817
  %v4819 = vpop.f32.mrb[0].mxu0
  %4820 = vmatprep.mubr.bf16.mxu0 %v3966
  %4821 = vmatmul.mubr.bf16.gmra.mrb[0].mxu0 %v3529
  %v4822 = vpop.f32.mrb[0].mxu0
  %v4823 = vadd.f32 0.0, %v4822
  %v4824 = vpop.f32.mrb[0].mxu0
  %v4825 = vpop.f32.mrb[0].mxu0
  %v4826 = vadd.f32 0.0, %v4825
  %v4827 = vpop.f32.mrb[0].mxu0
  %4828 = vmatprep.mubr.bf16.mxu0 %v3969
  %4829 = vmatmul.mubr.bf16.gmra.mrb[0].mxu0 %v3531
  %v4830 = vpop.f32.mrb[0].mxu0
  %v4831 = vadd.f32 0.0, %v4830
  %v4832 = vpop.f32.mrb[0].mxu0
  %v4833 = vpop.f32.mrb[0].mxu0
  %v4834 = vadd.f32 0.0, %v4833
  %v4835 = vpop.f32.mrb[0].mxu0
  %4836 = vmatprep.mubr.bf16.mxu0 %v3972
  %4837 = vmatmul.mubr.bf16.gmra.mrb[0].mxu0 %v3533
  %v4838 = vpop.f32.mrb[0].mxu0
  %v4839 = vadd.f32 0.0, %v4838
  %v4840 = vpop.f32.mrb[0].mxu0
  %v4841 = vpop.f32.mrb[0].mxu0
  %v4842 = vadd.f32 0.0, %v4841
  %v4843 = vpop.f32.mrb[0].mxu0
  %4844 = vmatprep.mubr.bf16.mxu0 %v3975
  %4845 = vmatmul.mubr.bf16.gmra.mrb[0].mxu0 %v3535
  %v4846 = vpop.f32.mrb[0].mxu0
  %v4847 = vadd.f32 0.0, %v4846
  %v4848 = vpop.f32.mrb[0].mxu0
  %v4849 = vpop.f32.mrb[0].mxu0
  %v4850 = vadd.f32 0.0, %v4849
  %v4851 = vpop.f32.mrb[0].mxu0
  %4852 = vmatprep.mubr.bf16.mxu0 %v3978
  %4853 = vmatmul.mubr.bf16.gmra.mrb[0].mxu0 %v3537
  %v4854 = vpop.f32.mrb[0].mxu0
  %v4855 = vadd.f32 0.0, %v4854
  %v4856 = vpop.f32.mrb[0].mxu0
  %v4857 = vpop.f32.mrb[0].mxu0
  %v4858 = vadd.f32 0.0, %v4857
  %v4859 = vpop.f32.mrb[0].mxu0
  %4860 = vmatprep.mubr.bf16.mxu0 %v3981
  %4861 = vmatmul.mubr.bf16.gmra.mrb[0].mxu0 %v3539
  %v4862 = vpop.f32.mrb[0].mxu0
  %v4863 = vadd.f32 0.0, %v4862
  %v4864 = vpop.f32.mrb[0].mxu0
  %v4865 = vpop.f32.mrb[0].mxu0
  %v4866 = vadd.f32 0.0, %v4865
  %v4867 = vpop.f32.mrb[0].mxu0
  %4868 = vmatprep.mubr.bf16.mxu0 %v3984
  %4869 = vmatmul.mubr.bf16.gmra.mrb[0].mxu0 %v3541
  %v4870 = vpop.f32.mrb[0].mxu0
  %v4871 = vadd.f32 0.0, %v4870
  %v4872 = vpop.f32.mrb[0].mxu0
  %v4873 = vpop.f32.mrb[0].mxu0
  %v4874 = vadd.f32 0.0, %v4873
  %v4875 = vpop.f32.mrb[0].mxu0
  %4876 = vmatprep.mubr.bf16.mxu0 %v3987
  %4877 = vmatmul.mubr.bf16.gmra.mrb[0].mxu0 %v3543
  %v4878 = vpop.f32.mrb[0].mxu0
  %v4879 = vadd.f32 0.0, %v4878
  %v4880 = vpop.f32.mrb[0].mxu0
  %v4881 = vpop.f32.mrb[0].mxu0
  %v4882 = vadd.f32 0.0, %v4881
  %v4883 = vpop.f32.mrb[0].mxu0
  %4884 = vmatprep.mubr.bf16.mxu0 %v3990
  %4885 = vmatmul.mubr.bf16.gmra.mrb[0].mxu0 %v3545
  %v4886 = vpop.f32.mrb[0].mxu0
  %v4887 = vadd.f32 0.0, %v4886
  %v4888 = vpop.f32.mrb[0].mxu0
  %v4889 = vpop.f32.mrb[0].mxu0
  %v4890 = vadd.f32 0.0, %v4889
  %v4891 = vpop.f32.mrb[0].mxu0
  %4892 = vmatprep.mubr.bf16.mxu0 %v3993
  %4893 = vmatmul.mubr.bf16.gmra.mrb[0].mxu0 %v3547
  %v4894 = vpop.f32.mrb[0].mxu0
  %v4895 = vadd.f32 0.0, %v4894
  %v4896 = vpop.f32.mrb[0].mxu0
  %v4897 = vpop.f32.mrb[0].mxu0
  %v4898 = vadd.f32 0.0, %v4897
  %v4899 = vpop.f32.mrb[0].mxu0
  %4900 = vmatprep.mubr.bf16.mxu0 %v3996
  %4901 = vmatmul.mubr.bf16.gmra.mrb[0].mxu0 %v3549
  %v4902 = vpop.f32.mrb[0].mxu0
  %v4903 = vadd.f32 0.0, %v4902
  %v4904 = vpop.f32.mrb[0].mxu0
  %v4905 = vpop.f32.mrb[0].mxu0
  %v4906 = vadd.f32 0.0, %v4905
  %v4907 = vpop.f32.mrb[0].mxu0
  %4908 = vmatprep.mubr.bf16.mxu0 %v3999
  %4909 = vmatmul.mubr.bf16.gmra.mrb[0].mxu0 %v3551
  %v4910 = vpop.f32.mrb[0].mxu0
  %v4911 = vadd.f32 0.0, %v4910
  %v4912 = vpop.f32.mrb[0].mxu0
  %v4913 = vpop.f32.mrb[0].mxu0
  %v4914 = vadd.f32 0.0, %v4913
  %v4915 = vpop.f32.mrb[0].mxu0
  %4916 = vmatprep.mubr.bf16.mxu0 %v4002
  %4917 = vmatmul.mubr.bf16.gmra.mrb[0].mxu0 %v3553
  %v4918 = vpop.f32.mrb[0].mxu0
  %v4919 = vadd.f32 0.0, %v4918
  %v4920 = vpop.f32.mrb[0].mxu0
  %v4921 = vpop.f32.mrb[0].mxu0
  %v4922 = vadd.f32 0.0, %v4921
  %v4923 = vpop.f32.mrb[0].mxu0
  %4924 = vmatprep.mubr.bf16.mxu0 %v4005
  %4925 = vmatmul.mubr.bf16.gmra.mrb[0].mxu0 %v3555
  %v4926 = vpop.f32.mrb[0].mxu0
  %v4927 = vadd.f32 0.0, %v4926
  %v4928 = vpop.f32.mrb[0].mxu0
  %v4929 = vpop.f32.mrb[0].mxu0
  %v4930 = vadd.f32 0.0, %v4929
  %v4931 = vpop.f32.mrb[0].mxu0
  %4932 = vmatprep.mubr.bf16.mxu0 %v4008
  %4933 = vmatmul.mubr.bf16.gmra.mrb[0].mxu0 %v3557
  %v4934 = vpop.f32.mrb[0].mxu0
  %v4935 = vadd.f32 0.0, %v4934
  %v4936 = vpop.f32.mrb[0].mxu0
  %v4937 = vpop.f32.mrb[0].mxu0
  %v4938 = vadd.f32 0.0, %v4937
  %v4939 = vpop.f32.mrb[0].mxu0
  %4940 = vmatprep.mubr.bf16.mxu0 %v4011
  %4941 = vmatmul.mubr.bf16.gmra.mrb[0].mxu0 %v3559
  %v4942 = vpop.f32.mrb[0].mxu0
  %v4943 = vadd.f32 0.0, %v4942
  %v4944 = vpop.f32.mrb[0].mxu0
  %v4945 = vpop.f32.mrb[0].mxu0
  %v4946 = vadd.f32 0.0, %v4945
  %v4947 = vpop.f32.mrb[0].mxu0
  %4948 = vmatprep.mubr.bf16.mxu0 %v4014
  %4949 = vmatmul.mubr.bf16.gmra.mrb[0].mxu0 %v3561
  %v4950 = vpop.f32.mrb[0].mxu0
  %v4951 = vadd.f32 0.0, %v4950
  %v4952 = vpop.f32.mrb[0].mxu0
  %v4953 = vpop.f32.mrb[0].mxu0
  %v4954 = vadd.f32 0.0, %v4953
  %v4955 = vpop.f32.mrb[0].mxu0
  %4956 = vmatprep.mubr.bf16.mxu0 %v4017
  %4957 = vmatmul.mubr.bf16.gmra.mrb[0].mxu0 %v3563
  %v4958 = vpop.f32.mrb[0].mxu0
  %v4959 = vadd.f32 0.0, %v4958
  %v4960 = vpop.f32.mrb[0].mxu0
  %v4961 = vpop.f32.mrb[0].mxu0
  %v4962 = vadd.f32 0.0, %v4961
  %v4963 = vpop.f32.mrb[0].mxu0
  %4964 = vmatprep.mubr.bf16.mxu0 %v4020
  %4965 = vmatmul.mubr.bf16.gmra.mrb[0].mxu0 %v3565
  %v4966 = vpop.f32.mrb[0].mxu0
  %v4967 = vadd.f32 0.0, %v4966
  %v4968 = vpop.f32.mrb[0].mxu0
  %v4969 = vpop.f32.mrb[0].mxu0
  %v4970 = vadd.f32 0.0, %v4969
  %v4971 = vpop.f32.mrb[0].mxu0
  %4972 = vmatprep.mubr.bf16.mxu0 %v4023
  %4973 = vmatmul.mubr.bf16.gmra.mrb[0].mxu0 %v3567
  %v4974 = vpop.f32.mrb[0].mxu0
  %v4975 = vadd.f32 0.0, %v4974
  %v4976 = vpop.f32.mrb[0].mxu0
  %v4977 = vpop.f32.mrb[0].mxu0
  %v4978 = vadd.f32 0.0, %v4977
  %v4979 = vpop.f32.mrb[0].mxu0
  %4980 = vmatprep.mubr.bf16.mxu0 %v4026
  %4981 = vmatmul.mubr.bf16.gmra.mrb[0].mxu0 %v3569
  %v4982 = vpop.f32.mrb[0].mxu0
  %v4983 = vadd.f32 0.0, %v4982
  %v4984 = vpop.f32.mrb[0].mxu0
  %v4985 = vpop.f32.mrb[0].mxu0
  %v4986 = vadd.f32 0.0, %v4985
  %v4987 = vpop.f32.mrb[0].mxu0
  %4988 = vmatprep.mubr.bf16.mxu0 %v4029
  %4989 = vmatmul.mubr.bf16.gmra.mrb[0].mxu0 %v3571
  %v4990 = vpop.f32.mrb[0].mxu0
  %v4991 = vadd.f32 0.0, %v4990
  %v4992 = vpop.f32.mrb[0].mxu0
  %v4993 = vpop.f32.mrb[0].mxu0
  %v4994 = vadd.f32 0.0, %v4993
  %v4995 = vpop.f32.mrb[0].mxu0
  %4996 = vmatprep.mubr.bf16.mxu0 %v4032
  %4997 = vmatmul.mubr.bf16.gmra.mrb[0].mxu0 %v3573
  %v4998 = vpop.f32.mrb[0].mxu0
  %v4999 = vadd.f32 0.0, %v4998
  %v5000 = vpop.f32.mrb[0].mxu0
  %v5001 = vpop.f32.mrb[0].mxu0
  %v5002 = vadd.f32 0.0, %v5001
  %v5003 = vpop.f32.mrb[0].mxu0
  %5004 = vmatprep.mubr.bf16.mxu0 %v4035
  %5005 = vmatmul.mubr.bf16.gmra.mrb[0].mxu0 %v3575
  %v5006 = vpop.f32.mrb[0].mxu0
  %v5007 = vadd.f32 0.0, %v5006
  %v5008 = vpop.f32.mrb[0].mxu0
  %v5009 = vpop.f32.mrb[0].mxu0
  %v5010 = vadd.f32 0.0, %v5009
  %v5011 = vpop.f32.mrb[0].mxu0
  %5012 = vmatprep.mubr.bf16.mxu0 %v4038
  %5013 = vmatmul.mubr.bf16.gmra.mrb[0].mxu0 %v3577
  %v5014 = vpop.f32.mrb[0].mxu0
  %v5015 = vadd.f32 0.0, %v5014
  %v5016 = vpop.f32.mrb[0].mxu0
  %v5017 = vpop.f32.mrb[0].mxu0
  %v5018 = vadd.f32 0.0, %v5017
  %v5019 = vpop.f32.mrb[0].mxu0
  %5020 = vmatprep.mubr.bf16.mxu0 %v4041
  %5021 = vmatmul.mubr.bf16.gmra.mrb[0].mxu0 %v3579
  %v5022 = vpop.f32.mrb[0].mxu0
  %v5023 = vadd.f32 0.0, %v5022
  %v5024 = vpop.f32.mrb[0].mxu0
  %v5025 = vpop.f32.mrb[0].mxu0
  %v5026 = vadd.f32 0.0, %v5025
  %v5027 = vpop.f32.mrb[0].mxu0
  %5028 = vmatprep.mubr.bf16.mxu0 %v4044
  %5029 = vmatmul.mubr.bf16.gmra.mrb[0].mxu0 %v3581
  %v5030 = vpop.f32.mrb[0].mxu0
  %v5031 = vadd.f32 0.0, %v5030
  %v5032 = vpop.f32.mrb[0].mxu0
  %v5033 = vpop.f32.mrb[0].mxu0
  %v5034 = vadd.f32 0.0, %v5033
  %v5035 = vpop.f32.mrb[0].mxu0
  %5036 = vmatprep.mubr.bf16.mxu0 %v4047
  %5037 = vmatmul.mubr.bf16.gmra.mrb[0].mxu0 %v3583
  %v5038 = vpop.f32.mrb[0].mxu0
  %v5039 = vadd.f32 0.0, %v5038
  %v5040 = vpop.f32.mrb[0].mxu0
  %v5041 = vpop.f32.mrb[0].mxu0
  %v5042 = vadd.f32 0.0, %v5041
  %v5043 = vpop.f32.mrb[0].mxu0
  %5044 = vmatprep.mubr.bf16.mxu0 %v4050
  %5045 = vmatmul.mubr.bf16.gmra.mrb[0].mxu0 %v3585
  %v5046 = vpop.f32.mrb[0].mxu0
  %v5047 = vadd.f32 0.0, %v5046
  %v5048 = vpop.f32.mrb[0].mxu0
  %v5049 = vpop.f32.mrb[0].mxu0
  %v5050 = vadd.f32 0.0, %v5049
  %v5051 = vpop.f32.mrb[0].mxu0
  %5052 = vmatprep.mubr.bf16.mxu0 %v4053
  %5053 = vmatmul.mubr.bf16.gmra.mrb[0].mxu0 %v3587
  %v5054 = vpop.f32.mrb[0].mxu0
  %v5055 = vadd.f32 0.0, %v5054
  %v5056 = vpop.f32.mrb[0].mxu0
  %v5057 = vpop.f32.mrb[0].mxu0
  %v5058 = vadd.f32 0.0, %v5057
  %v5059 = vpop.f32.mrb[0].mxu0
  %5060 = vmatprep.mubr.bf16.mxu0 %v4056
  %5061 = vmatmul.mubr.bf16.gmra.mrb[0].mxu0 %v3589
  %v5062 = vpop.f32.mrb[0].mxu0
  %v5063 = vadd.f32 0.0, %v5062
  %v5064 = vpop.f32.mrb[0].mxu0
  %v5065 = vpop.f32.mrb[0].mxu0
  %v5066 = vadd.f32 0.0, %v5065
  %v5067 = vpop.f32.mrb[0].mxu0
  %5068 = vmatprep.mubr.bf16.mxu0 %v4059
  %5069 = vmatmul.mubr.bf16.gmra.mrb[0].mxu0 %v3591
  %v5070 = vpop.f32.mrb[0].mxu0
  %v5071 = vadd.f32 0.0, %v5070
  %v5072 = vpop.f32.mrb[0].mxu0
  %v5073 = vpop.f32.mrb[0].mxu0
  %v5074 = vadd.f32 0.0, %v5073
  %v5075 = vpop.f32.mrb[0].mxu0
  %5076 = vmatprep.mubr.bf16.mxu0 %v4062
  %5077 = vmatmul.mubr.bf16.gmra.mrb[0].mxu0 %v3593
  %v5078 = vpop.f32.mrb[0].mxu0
  %v5079 = vadd.f32 0.0, %v5078
  %v5080 = vpop.f32.mrb[0].mxu0
  %v5081 = vpop.f32.mrb[0].mxu0
  %v5082 = vadd.f32 0.0, %v5081
  %v5083 = vpop.f32.mrb[0].mxu0
  %5084 = vmatprep.mubr.bf16.mxu0 %v4065
  %5085 = vmatmul.mubr.bf16.gmra.mrb[0].mxu0 %v3595
  %v5086 = vpop.f32.mrb[0].mxu0
  %v5087 = vadd.f32 0.0, %v5086
  %v5088 = vpop.f32.mrb[0].mxu0
  %v5089 = vpop.f32.mrb[0].mxu0
  %v5090 = vadd.f32 0.0, %v5089
  %v5091 = vpop.f32.mrb[0].mxu0
  %5092 = vmatprep.mubr.bf16.mxu0 %v4068
  %5093 = vmatmul.mubr.bf16.gmra.mrb[0].mxu0 %v3597
  %v5094 = vpop.f32.mrb[0].mxu0
  %v5095 = vadd.f32 0.0, %v5094
  %v5096 = vpop.f32.mrb[0].mxu0
  %v5097 = vpop.f32.mrb[0].mxu0
  %v5098 = vadd.f32 0.0, %v5097
  %v5099 = vpop.f32.mrb[0].mxu0
  %5100 = vmatprep.mubr.bf16.mxu0 %v4071
  %5101 = vmatmul.mubr.bf16.gmra.mrb[0].mxu0 %v3599
  %v5102 = vpop.f32.mrb[0].mxu0
  %v5103 = vadd.f32 0.0, %v5102
  %v5104 = vpop.f32.mrb[0].mxu0
  %v5105 = vpop.f32.mrb[0].mxu0
  %v5106 = vadd.f32 0.0, %v5105
  %v5107 = vpop.f32.mrb[0].mxu0
  %5108 = vmatprep.mubr.bf16.mxu0 %v4074
  %5109 = vmatmul.mubr.bf16.gmra.mrb[0].mxu0 %v3601
  %v5110 = vpop.f32.mrb[0].mxu0
  %v5111 = vadd.f32 0.0, %v5110
  %v5112 = vpop.f32.mrb[0].mxu0
  %v5113 = vpop.f32.mrb[0].mxu0
  %v5114 = vadd.f32 0.0, %v5113
  %v5115 = vpop.f32.mrb[0].mxu0
  %5116 = vmatprep.mubr.bf16.mxu0 %v4077
  %5117 = vmatmul.mubr.bf16.gmra.mrb[0].mxu0 %v3603
  %v5118 = vpop.f32.mrb[0].mxu0
  %v5119 = vadd.f32 0.0, %v5118
  %v5120 = vpop.f32.mrb[0].mxu0
  %v5121 = vpop.f32.mrb[0].mxu0
  %v5122 = vadd.f32 0.0, %v5121
  %v5123 = vpop.f32.mrb[0].mxu0
  %5124 = vmatprep.mubr.bf16.mxu0 %v4080
  %5125 = vmatmul.mubr.bf16.gmra.mrb[0].mxu0 %v3605
  %v5126 = vpop.f32.mrb[0].mxu0
  %v5127 = vadd.f32 0.0, %v5126
  %v5128 = vpop.f32.mrb[0].mxu0
  %v5129 = vpop.f32.mrb[0].mxu0
  %v5130 = vadd.f32 0.0, %v5129
  %v5131 = vpop.f32.mrb[0].mxu0
  %5132 = vmatprep.mubr.bf16.mxu0 %v4083
  %5133 = vmatmul.mubr.bf16.gmra.mrb[0].mxu0 %v3607
  %v5134 = vpop.f32.mrb[0].mxu0
  %v5135 = vadd.f32 0.0, %v5134
  %v5136 = vpop.f32.mrb[0].mxu0
  %v5137 = vpop.f32.mrb[0].mxu0
  %v5138 = vadd.f32 0.0, %v5137
  %v5139 = vpop.f32.mrb[0].mxu0
  %5140 = vmatprep.mubr.bf16.mxu0 %v4086
  %5141 = vmatmul.mubr.bf16.gmra.mrb[0].mxu0 %v3609
  %v5142 = vpop.f32.mrb[0].mxu0
  %v5143 = vadd.f32 0.0, %v5142
  %v5144 = vpop.f32.mrb[0].mxu0
  %v5145 = vpop.f32.mrb[0].mxu0
  %v5146 = vadd.f32 0.0, %v5145
  %v5147 = vpop.f32.mrb[0].mxu0
  %5148 = vmatprep.mubr.bf16.mxu0 %v4089
  %5149 = vmatmul.mubr.bf16.gmra.mrb[0].mxu0 %v3611
  %v5150 = vpop.f32.mrb[0].mxu0
  %v5151 = vadd.f32 0.0, %v5150
  %v5152 = vpop.f32.mrb[0].mxu0
  %v5153 = vpop.f32.mrb[0].mxu0
  %v5154 = vadd.f32 0.0, %v5153
  %v5155 = vpop.f32.mrb[0].mxu0
  %5156 = vmatprep.mubr.bf16.mxu0 %v4092
  %5157 = vmatmul.mubr.bf16.gmra.mrb[0].mxu0 %v3613
  %v5158 = vpop.f32.mrb[0].mxu0
  %v5159 = vadd.f32 0.0, %v5158
  %v5160 = vpop.f32.mrb[0].mxu0
  %v5161 = vpop.f32.mrb[0].mxu0
  %v5162 = vadd.f32 0.0, %v5161
  %v5163 = vpop.f32.mrb[0].mxu0
  %5164 = vmatprep.mubr.bf16.mxu0 %v4095
  %5165 = vmatmul.mubr.bf16.gmra.mrb[0].mxu0 %v3615
  %v5166 = vpop.f32.mrb[0].mxu0
  %v5167 = vadd.f32 0.0, %v5166
  %v5168 = vpop.f32.mrb[0].mxu0
  %v5169 = vpop.f32.mrb[0].mxu0
  %v5170 = vadd.f32 0.0, %v5169
  %v5171 = vpop.f32.mrb[0].mxu0
  %5172 = vmatprep.mubr.bf16.mxu0 %v4098
  %5173 = vmatmul.mubr.bf16.gmra.mrb[0].mxu0 %v3617
  %v5174 = vpop.f32.mrb[0].mxu0
  %v5175 = vadd.f32 0.0, %v5174
  %v5176 = vpop.f32.mrb[0].mxu0
  %v5177 = vpop.f32.mrb[0].mxu0
  %v5178 = vadd.f32 0.0, %v5177
  %v5179 = vpop.f32.mrb[0].mxu0
  %5180 = vmatprep.mubr.bf16.mxu0 %v4101
  %5181 = vmatmul.mubr.bf16.gmra.mrb[0].mxu0 %v3619
  %v5182 = vpop.f32.mrb[0].mxu0
  %v5183 = vadd.f32 0.0, %v5182
  %v5184 = vpop.f32.mrb[0].mxu0
  %v5185 = vpop.f32.mrb[0].mxu0
  %v5186 = vadd.f32 0.0, %v5185
  %v5187 = vpop.f32.mrb[0].mxu0
  %5188 = vmatprep.mubr.bf16.mxu0 %v4104
  %5189 = vmatmul.mubr.bf16.gmra.mrb[0].mxu0 %v3621
  %v5190 = vpop.f32.mrb[0].mxu0
  %v5191 = vadd.f32 0.0, %v5190
  %v5192 = vpop.f32.mrb[0].mxu0
  %v5193 = vpop.f32.mrb[0].mxu0
  %v5194 = vadd.f32 0.0, %v5193
  %v5195 = vpop.f32.mrb[0].mxu0
  %5196 = vmatprep.mubr.bf16.mxu0 %v4107
  %5197 = vmatmul.mubr.bf16.gmra.mrb[0].mxu0 %v3623
  %v5198 = vpop.f32.mrb[0].mxu0
  %v5199 = vadd.f32 0.0, %v5198
  %v5200 = vpop.f32.mrb[0].mxu0
  %v5201 = vpop.f32.mrb[0].mxu0
  %v5202 = vadd.f32 0.0, %v5201
  %v5203 = vpop.f32.mrb[0].mxu0
  %5204 = vmatprep.mubr.bf16.mxu0 %v4110
  %5205 = vmatmul.mubr.bf16.gmra.mrb[0].mxu0 %v3625
  %v5206 = vpop.f32.mrb[0].mxu0
  %v5207 = vadd.f32 0.0, %v5206
  %v5208 = vpop.f32.mrb[0].mxu0
  %v5209 = vpop.f32.mrb[0].mxu0
  %v5210 = vadd.f32 0.0, %v5209
  %v5211 = vpop.f32.mrb[0].mxu0
  %5212 = vmatprep.mubr.bf16.mxu0 %v4113
  %5213 = vmatmul.mubr.bf16.gmra.mrb[0].mxu0 %v3627
  %v5214 = vpop.f32.mrb[0].mxu0
  %v5215 = vadd.f32 0.0, %v5214
  %v5216 = vpop.f32.mrb[0].mxu0
  %v5217 = vpop.f32.mrb[0].mxu0
  %v5218 = vadd.f32 0.0, %v5217
  %v5219 = vpop.f32.mrb[0].mxu0
  %5220 = vmatprep.mubr.bf16.mxu0 %v4116
  %5221 = vmatmul.mubr.bf16.gmra.mrb[0].mxu0 %v3629
  %v5222 = vpop.f32.mrb[0].mxu0
  %v5223 = vadd.f32 0.0, %v5222
  %v5224 = vpop.f32.mrb[0].mxu0
  %v5225 = vpop.f32.mrb[0].mxu0
  %v5226 = vadd.f32 0.0, %v5225
  %v5227 = vpop.f32.mrb[0].mxu0
  %5228 = vmatprep.mubr.bf16.mxu0 %v4119
  %5229 = vmatmul.mubr.bf16.gmra.mrb[0].mxu0 %v3631
  %v5230 = vpop.f32.mrb[0].mxu0
  %v5231 = vadd.f32 0.0, %v5230
  %v5232 = vpop.f32.mrb[0].mxu0
  %v5233 = vpop.f32.mrb[0].mxu0
  %v5234 = vadd.f32 0.0, %v5233
  %v5235 = vpop.f32.mrb[0].mxu0
  %5236 = vmatprep.mubr.bf16.mxu0 %v4122
  %5237 = vmatmul.mubr.bf16.gmra.mrb[0].mxu0 %v3633
  %v5238 = vpop.f32.mrb[0].mxu0
  %v5239 = vadd.f32 0.0, %v5238
  %v5240 = vpop.f32.mrb[0].mxu0
  %v5241 = vpop.f32.mrb[0].mxu0
  %v5242 = vadd.f32 0.0, %v5241
  %v5243 = vpop.f32.mrb[0].mxu0
  %5244 = vdwg.mxu0
  %v5245 = vsel %vm3715, %v4159, -inf
  %v5246 = vsel %vm3715, %v4223, -inf
  %v5247 = vmax.f32 %v5245, %v5246
  %v5248 = vsel %vm3715, %v4287, -inf
  %v5249 = vmax.f32 %v5247, %v5248
  %v5250 = vsel %vm3715, %v4351, -inf
  %v5251 = vmax.f32 %v5249, %v5250
  %v5252 = vsel %vm3715, %v4415, -inf
  %v5253 = vmax.f32 %v5251, %v5252
  %v5254 = vsel %vm3715, %v4479, -inf
  %v5255 = vmax.f32 %v5253, %v5254
  %v5256 = vsel %vm3715, %v4543, -inf
  %v5257 = vmax.f32 %v5255, %v5256
  %v5258 = vsel %vm3715, %v4607, -inf
  %v5259 = vmax.f32 %v5257, %v5258
  %v5260 = vsel %vm3715, %v4671, -inf
  %v5261 = vmax.f32 %v5259, %v5260
  %v5262 = vsel %vm3715, %v4735, -inf
  %v5263 = vmax.f32 %v5261, %v5262
  %v5264 = vsel %vm3715, %v4799, -inf
  %v5265 = vmax.f32 %v5263, %v5264
  %v5266 = vsel %vm3715, %v4863, -inf
  %v5267 = vmax.f32 %v5265, %v5266
  %v5268 = vsel %vm3715, %v4927, -inf
  %v5269 = vmax.f32 %v5267, %v5268
  %v5270 = vsel %vm3715, %v4991, -inf
  %v5271 = vmax.f32 %v5269, %v5270
  %v5272 = vsel %vm3715, %v5055, -inf
  %v5273 = vmax.f32 %v5271, %v5272
  %v5274 = vsel %vm3715, %v5119, -inf
  %v5275 = vmax.f32 %v5273, %v5274
  %v5276 = vsel %vm3715, %v5183, -inf
  %v5277 = vmax.f32 %v5275, %v5276
  %v5278 = vsel %vm3715, %v4162, -inf
  %v5279 = vsel %vm3715, %v4226, -inf
  %v5280 = vmax.f32 %v5278, %v5279
  %v5281 = vsel %vm3715, %v4290, -inf
  %v5282 = vmax.f32 %v5280, %v5281
  %v5283 = vsel %vm3715, %v4354, -inf
  %v5284 = vmax.f32 %v5282, %v5283
  %v5285 = vsel %vm3715, %v4418, -inf
  %v5286 = vmax.f32 %v5284, %v5285
  %v5287 = vsel %vm3715, %v4482, -inf
  %v5288 = vmax.f32 %v5286, %v5287
  %v5289 = vsel %vm3715, %v4546, -inf
  %v5290 = vmax.f32 %v5288, %v5289
  %v5291 = vsel %vm3715, %v4610, -inf
  %v5292 = vmax.f32 %v5290, %v5291
  %v5293 = vsel %vm3715, %v4674, -inf
  %v5294 = vmax.f32 %v5292, %v5293
  %v5295 = vsel %vm3715, %v4738, -inf
  %v5296 = vmax.f32 %v5294, %v5295
  %v5297 = vsel %vm3715, %v4802, -inf
  %v5298 = vmax.f32 %v5296, %v5297
  %v5299 = vsel %vm3715, %v4866, -inf
  %v5300 = vmax.f32 %v5298, %v5299
  %v5301 = vsel %vm3715, %v4930, -inf
  %v5302 = vmax.f32 %v5300, %v5301
  %v5303 = vsel %vm3715, %v4994, -inf
  %v5304 = vmax.f32 %v5302, %v5303
  %v5305 = vsel %vm3715, %v5058, -inf
  %v5306 = vmax.f32 %v5304, %v5305
  %v5307 = vsel %vm3715, %v5122, -inf
  %v5308 = vmax.f32 %v5306, %v5307
  %v5309 = vsel %vm3715, %v5186, -inf
  %v5310 = vmax.f32 %v5308, %v5309
  %v5311 = vsel %vm3715, %v4167, -inf
  %v5312 = vsel %vm3715, %v4231, -inf
  %v5313 = vmax.f32 %v5311, %v5312
  %v5314 = vsel %vm3715, %v4295, -inf
  %v5315 = vmax.f32 %v5313, %v5314
  %v5316 = vsel %vm3715, %v4359, -inf
  %v5317 = vmax.f32 %v5315, %v5316
  %v5318 = vsel %vm3715, %v4423, -inf
  %v5319 = vmax.f32 %v5317, %v5318
  %v5320 = vsel %vm3715, %v4487, -inf
  %v5321 = vmax.f32 %v5319, %v5320
  %v5322 = vsel %vm3715, %v4551, -inf
  %v5323 = vmax.f32 %v5321, %v5322
  %v5324 = vsel %vm3715, %v4615, -inf
  %v5325 = vmax.f32 %v5323, %v5324
  %v5326 = vsel %vm3715, %v4679, -inf
  %v5327 = vmax.f32 %v5325, %v5326
  %v5328 = vsel %vm3715, %v4743, -inf
  %v5329 = vmax.f32 %v5327, %v5328
  %v5330 = vsel %vm3715, %v4807, -inf
  %v5331 = vmax.f32 %v5329, %v5330
  %v5332 = vsel %vm3715, %v4871, -inf
  %v5333 = vmax.f32 %v5331, %v5332
  %v5334 = vsel %vm3715, %v4935, -inf
  %v5335 = vmax.f32 %v5333, %v5334
  %v5336 = vsel %vm3715, %v4999, -inf
  %v5337 = vmax.f32 %v5335, %v5336
  %v5338 = vsel %vm3715, %v5063, -inf
  %v5339 = vmax.f32 %v5337, %v5338
  %v5340 = vsel %vm3715, %v5127, -inf
  %v5341 = vmax.f32 %v5339, %v5340
  %v5342 = vsel %vm3715, %v5191, -inf
  %v5343 = vmax.f32 %v5341, %v5342
  %v5344 = vsel %vm3715, %v4170, -inf
  %v5345 = vsel %vm3715, %v4234, -inf
  %v5346 = vmax.f32 %v5344, %v5345
  %v5347 = vsel %vm3715, %v4298, -inf
  %v5348 = vmax.f32 %v5346, %v5347
  %v5349 = vsel %vm3715, %v4362, -inf
  %v5350 = vmax.f32 %v5348, %v5349
  %v5351 = vsel %vm3715, %v4426, -inf
  %v5352 = vmax.f32 %v5350, %v5351
  %v5353 = vsel %vm3715, %v4490, -inf
  %v5354 = vmax.f32 %v5352, %v5353
  %v5355 = vsel %vm3715, %v4554, -inf
  %v5356 = vmax.f32 %v5354, %v5355
  %v5357 = vsel %vm3715, %v4618, -inf
  %v5358 = vmax.f32 %v5356, %v5357
  %v5359 = vsel %vm3715, %v4682, -inf
  %v5360 = vmax.f32 %v5358, %v5359
  %v5361 = vsel %vm3715, %v4746, -inf
  %v5362 = vmax.f32 %v5360, %v5361
  %v5363 = vsel %vm3715, %v4810, -inf
  %v5364 = vmax.f32 %v5362, %v5363
  %v5365 = vsel %vm3715, %v4874, -inf
  %v5366 = vmax.f32 %v5364, %v5365
  %v5367 = vsel %vm3715, %v4938, -inf
  %v5368 = vmax.f32 %v5366, %v5367
  %v5369 = vsel %vm3715, %v5002, -inf
  %v5370 = vmax.f32 %v5368, %v5369
  %v5371 = vsel %vm3715, %v5066, -inf
  %v5372 = vmax.f32 %v5370, %v5371
  %v5373 = vsel %vm3715, %v5130, -inf
  %v5374 = vmax.f32 %v5372, %v5373
  %v5375 = vsel %vm3715, %v5194, -inf
  %v5376 = vmax.f32 %v5374, %v5375
  %v5377 = vsel %vm3715, %v4175, -inf
  %v5378 = vsel %vm3715, %v4239, -inf
  %v5379 = vmax.f32 %v5377, %v5378
  %v5380 = vsel %vm3715, %v4303, -inf
  %v5381 = vmax.f32 %v5379, %v5380
  %v5382 = vsel %vm3715, %v4367, -inf
  %v5383 = vmax.f32 %v5381, %v5382
  %v5384 = vsel %vm3715, %v4431, -inf
  %v5385 = vmax.f32 %v5383, %v5384
  %v5386 = vsel %vm3715, %v4495, -inf
  %v5387 = vmax.f32 %v5385, %v5386
  %v5388 = vsel %vm3715, %v4559, -inf
  %v5389 = vmax.f32 %v5387, %v5388
  %v5390 = vsel %vm3715, %v4623, -inf
  %v5391 = vmax.f32 %v5389, %v5390
  %v5392 = vsel %vm3715, %v4687, -inf
  %v5393 = vmax.f32 %v5391, %v5392
  %v5394 = vsel %vm3715, %v4751, -inf
  %v5395 = vmax.f32 %v5393, %v5394
  %v5396 = vsel %vm3715, %v4815, -inf
  %v5397 = vmax.f32 %v5395, %v5396
  %v5398 = vsel %vm3715, %v4879, -inf
  %v5399 = vmax.f32 %v5397, %v5398
  %v5400 = vsel %vm3715, %v4943, -inf
  %v5401 = vmax.f32 %v5399, %v5400
  %v5402 = vsel %vm3715, %v5007, -inf
  %v5403 = vmax.f32 %v5401, %v5402
  %v5404 = vsel %vm3715, %v5071, -inf
  %v5405 = vmax.f32 %v5403, %v5404
  %v5406 = vsel %vm3715, %v5135, -inf
  %v5407 = vmax.f32 %v5405, %v5406
  %v5408 = vsel %vm3715, %v5199, -inf
  %v5409 = vmax.f32 %v5407, %v5408
  %v5410 = vsel %vm3715, %v4178, -inf
  %v5411 = vsel %vm3715, %v4242, -inf
  %v5412 = vmax.f32 %v5410, %v5411
  %v5413 = vsel %vm3715, %v4306, -inf
  %v5414 = vmax.f32 %v5412, %v5413
  %v5415 = vsel %vm3715, %v4370, -inf
  %v5416 = vmax.f32 %v5414, %v5415
  %v5417 = vsel %vm3715, %v4434, -inf
  %v5418 = vmax.f32 %v5416, %v5417
  %v5419 = vsel %vm3715, %v4498, -inf
  %v5420 = vmax.f32 %v5418, %v5419
  %v5421 = vsel %vm3715, %v4562, -inf
  %v5422 = vmax.f32 %v5420, %v5421
  %v5423 = vsel %vm3715, %v4626, -inf
  %v5424 = vmax.f32 %v5422, %v5423
  %v5425 = vsel %vm3715, %v4690, -inf
  %v5426 = vmax.f32 %v5424, %v5425
  %v5427 = vsel %vm3715, %v4754, -inf
  %v5428 = vmax.f32 %v5426, %v5427
  %v5429 = vsel %vm3715, %v4818, -inf
  %v5430 = vmax.f32 %v5428, %v5429
  %v5431 = vsel %vm3715, %v4882, -inf
  %v5432 = vmax.f32 %v5430, %v5431
  %v5433 = vsel %vm3715, %v4946, -inf
  %v5434 = vmax.f32 %v5432, %v5433
  %v5435 = vsel %vm3715, %v5010, -inf
  %v5436 = vmax.f32 %v5434, %v5435
  %v5437 = vsel %vm3715, %v5074, -inf
  %v5438 = vmax.f32 %v5436, %v5437
  %v5439 = vsel %vm3715, %v5138, -inf
  %v5440 = vmax.f32 %v5438, %v5439
  %v5441 = vsel %vm3715, %v5202, -inf
  %v5442 = vmax.f32 %v5440, %v5441
  %v5443 = vsel %vm3715, %v4183, -inf
  %v5444 = vsel %vm3715, %v4247, -inf
  %v5445 = vmax.f32 %v5443, %v5444
  %v5446 = vsel %vm3715, %v4311, -inf
  %v5447 = vmax.f32 %v5445, %v5446
  %v5448 = vsel %vm3715, %v4375, -inf
  %v5449 = vmax.f32 %v5447, %v5448
  %v5450 = vsel %vm3715, %v4439, -inf
  %v5451 = vmax.f32 %v5449, %v5450
  %v5452 = vsel %vm3715, %v4503, -inf
  %v5453 = vmax.f32 %v5451, %v5452
  %v5454 = vsel %vm3715, %v4567, -inf
  %v5455 = vmax.f32 %v5453, %v5454
  %v5456 = vsel %vm3715, %v4631, -inf
  %v5457 = vmax.f32 %v5455, %v5456
  %v5458 = vsel %vm3715, %v4695, -inf
  %v5459 = vmax.f32 %v5457, %v5458
  %v5460 = vsel %vm3715, %v4759, -inf
  %v5461 = vmax.f32 %v5459, %v5460
  %v5462 = vsel %vm3715, %v4823, -inf
  %v5463 = vmax.f32 %v5461, %v5462
  %v5464 = vsel %vm3715, %v4887, -inf
  %v5465 = vmax.f32 %v5463, %v5464
  %v5466 = vsel %vm3715, %v4951, -inf
  %v5467 = vmax.f32 %v5465, %v5466
  %v5468 = vsel %vm3715, %v5015, -inf
  %v5469 = vmax.f32 %v5467, %v5468
  %v5470 = vsel %vm3715, %v5079, -inf
  %v5471 = vmax.f32 %v5469, %v5470
  %v5472 = vsel %vm3715, %v5143, -inf
  %v5473 = vmax.f32 %v5471, %v5472
  %v5474 = vsel %vm3715, %v5207, -inf
  %v5475 = vmax.f32 %v5473, %v5474
  %v5476 = vsel %vm3715, %v4186, -inf
  %v5477 = vsel %vm3715, %v4250, -inf
  %v5478 = vmax.f32 %v5476, %v5477
  %v5479 = vsel %vm3715, %v4314, -inf
  %v5480 = vmax.f32 %v5478, %v5479
  %v5481 = vsel %vm3715, %v4378, -inf
  %v5482 = vmax.f32 %v5480, %v5481
  %v5483 = vsel %vm3715, %v4442, -inf
  %v5484 = vmax.f32 %v5482, %v5483
  %v5485 = vsel %vm3715, %v4506, -inf
  %v5486 = vmax.f32 %v5484, %v5485
  %v5487 = vsel %vm3715, %v4570, -inf
  %v5488 = vmax.f32 %v5486, %v5487
  %v5489 = vsel %vm3715, %v4634, -inf
  %v5490 = vmax.f32 %v5488, %v5489
  %v5491 = vsel %vm3715, %v4698, -inf
  %v5492 = vmax.f32 %v5490, %v5491
  %v5493 = vsel %vm3715, %v4762, -inf
  %v5494 = vmax.f32 %v5492, %v5493
  %v5495 = vsel %vm3715, %v4826, -inf
  %v5496 = vmax.f32 %v5494, %v5495
  %v5497 = vsel %vm3715, %v4890, -inf
  %v5498 = vmax.f32 %v5496, %v5497
  %v5499 = vsel %vm3715, %v4954, -inf
  %v5500 = vmax.f32 %v5498, %v5499
  %v5501 = vsel %vm3715, %v5018, -inf
  %v5502 = vmax.f32 %v5500, %v5501
  %v5503 = vsel %vm3715, %v5082, -inf
  %v5504 = vmax.f32 %v5502, %v5503
  %v5505 = vsel %vm3715, %v5146, -inf
  %v5506 = vmax.f32 %v5504, %v5505
  %v5507 = vsel %vm3715, %v5210, -inf
  %v5508 = vmax.f32 %v5506, %v5507
  %v5509 = vsel %vm3715, %v4191, -inf
  %v5510 = vsel %vm3715, %v4255, -inf
  %v5511 = vmax.f32 %v5509, %v5510
  %v5512 = vsel %vm3715, %v4319, -inf
  %v5513 = vmax.f32 %v5511, %v5512
  %v5514 = vsel %vm3715, %v4383, -inf
  %v5515 = vmax.f32 %v5513, %v5514
  %v5516 = vsel %vm3715, %v4447, -inf
  %v5517 = vmax.f32 %v5515, %v5516
  %v5518 = vsel %vm3715, %v4511, -inf
  %v5519 = vmax.f32 %v5517, %v5518
  %v5520 = vsel %vm3715, %v4575, -inf
  %v5521 = vmax.f32 %v5519, %v5520
  %v5522 = vsel %vm3715, %v4639, -inf
  %v5523 = vmax.f32 %v5521, %v5522
  %v5524 = vsel %vm3715, %v4703, -inf
  %v5525 = vmax.f32 %v5523, %v5524
  %v5526 = vsel %vm3715, %v4767, -inf
  %v5527 = vmax.f32 %v5525, %v5526
  %v5528 = vsel %vm3715, %v4831, -inf
  %v5529 = vmax.f32 %v5527, %v5528
  %v5530 = vsel %vm3715, %v4895, -inf
  %v5531 = vmax.f32 %v5529, %v5530
  %v5532 = vsel %vm3715, %v4959, -inf
  %v5533 = vmax.f32 %v5531, %v5532
  %v5534 = vsel %vm3715, %v5023, -inf
  %v5535 = vmax.f32 %v5533, %v5534
  %v5536 = vsel %vm3715, %v5087, -inf
  %v5537 = vmax.f32 %v5535, %v5536
  %v5538 = vsel %vm3715, %v5151, -inf
  %v5539 = vmax.f32 %v5537, %v5538
  %v5540 = vsel %vm3715, %v5215, -inf
  %v5541 = vmax.f32 %v5539, %v5540
  %v5542 = vsel %vm3715, %v4194, -inf
  %v5543 = vsel %vm3715, %v4258, -inf
  %v5544 = vmax.f32 %v5542, %v5543
  %v5545 = vsel %vm3715, %v4322, -inf
  %v5546 = vmax.f32 %v5544, %v5545
  %v5547 = vsel %vm3715, %v4386, -inf
  %v5548 = vmax.f32 %v5546, %v5547
  %v5549 = vsel %vm3715, %v4450, -inf
  %v5550 = vmax.f32 %v5548, %v5549
  %v5551 = vsel %vm3715, %v4514, -inf
  %v5552 = vmax.f32 %v5550, %v5551
  %v5553 = vsel %vm3715, %v4578, -inf
  %v5554 = vmax.f32 %v5552, %v5553
  %v5555 = vsel %vm3715, %v4642, -inf
  %v5556 = vmax.f32 %v5554, %v5555
  %v5557 = vsel %vm3715, %v4706, -inf
  %v5558 = vmax.f32 %v5556, %v5557
  %v5559 = vsel %vm3715, %v4770, -inf
  %v5560 = vmax.f32 %v5558, %v5559
  %v5561 = vsel %vm3715, %v4834, -inf
  %v5562 = vmax.f32 %v5560, %v5561
  %v5563 = vsel %vm3715, %v4898, -inf
  %v5564 = vmax.f32 %v5562, %v5563
  %v5565 = vsel %vm3715, %v4962, -inf
  %v5566 = vmax.f32 %v5564, %v5565
  %v5567 = vsel %vm3715, %v5026, -inf
  %v5568 = vmax.f32 %v5566, %v5567
  %v5569 = vsel %vm3715, %v5090, -inf
  %v5570 = vmax.f32 %v5568, %v5569
  %v5571 = vsel %vm3715, %v5154, -inf
  %v5572 = vmax.f32 %v5570, %v5571
  %v5573 = vsel %vm3715, %v5218, -inf
  %v5574 = vmax.f32 %v5572, %v5573
  %v5575 = vsel %vm3715, %v4199, -inf
  %v5576 = vsel %vm3715, %v4263, -inf
  %v5577 = vmax.f32 %v5575, %v5576
  %v5578 = vsel %vm3715, %v4327, -inf
  %v5579 = vmax.f32 %v5577, %v5578
  %v5580 = vsel %vm3715, %v4391, -inf
  %v5581 = vmax.f32 %v5579, %v5580
  %v5582 = vsel %vm3715, %v4455, -inf
  %v5583 = vmax.f32 %v5581, %v5582
  %v5584 = vsel %vm3715, %v4519, -inf
  %v5585 = vmax.f32 %v5583, %v5584
  %v5586 = vsel %vm3715, %v4583, -inf
  %v5587 = vmax.f32 %v5585, %v5586
  %v5588 = vsel %vm3715, %v4647, -inf
  %v5589 = vmax.f32 %v5587, %v5588
  %v5590 = vsel %vm3715, %v4711, -inf
  %v5591 = vmax.f32 %v5589, %v5590
  %v5592 = vsel %vm3715, %v4775, -inf
  %v5593 = vmax.f32 %v5591, %v5592
  %v5594 = vsel %vm3715, %v4839, -inf
  %v5595 = vmax.f32 %v5593, %v5594
  %v5596 = vsel %vm3715, %v4903, -inf
  %v5597 = vmax.f32 %v5595, %v5596
  %v5598 = vsel %vm3715, %v4967, -inf
  %v5599 = vmax.f32 %v5597, %v5598
  %v5600 = vsel %vm3715, %v5031, -inf
  %v5601 = vmax.f32 %v5599, %v5600
  %v5602 = vsel %vm3715, %v5095, -inf
  %v5603 = vmax.f32 %v5601, %v5602
  %v5604 = vsel %vm3715, %v5159, -inf
  %v5605 = vmax.f32 %v5603, %v5604
  %v5606 = vsel %vm3715, %v5223, -inf
  %v5607 = vmax.f32 %v5605, %v5606
  %v5608 = vsel %vm3715, %v4202, -inf
  %v5609 = vsel %vm3715, %v4266, -inf
  %v5610 = vmax.f32 %v5608, %v5609
  %v5611 = vsel %vm3715, %v4330, -inf
  %v5612 = vmax.f32 %v5610, %v5611
  %v5613 = vsel %vm3715, %v4394, -inf
  %v5614 = vmax.f32 %v5612, %v5613
  %v5615 = vsel %vm3715, %v4458, -inf
  %v5616 = vmax.f32 %v5614, %v5615
  %v5617 = vsel %vm3715, %v4522, -inf
  %v5618 = vmax.f32 %v5616, %v5617
  %v5619 = vsel %vm3715, %v4586, -inf
  %v5620 = vmax.f32 %v5618, %v5619
  %v5621 = vsel %vm3715, %v4650, -inf
  %v5622 = vmax.f32 %v5620, %v5621
  %v5623 = vsel %vm3715, %v4714, -inf
  %v5624 = vmax.f32 %v5622, %v5623
  %v5625 = vsel %vm3715, %v4778, -inf
  %v5626 = vmax.f32 %v5624, %v5625
  %v5627 = vsel %vm3715, %v4842, -inf
  %v5628 = vmax.f32 %v5626, %v5627
  %v5629 = vsel %vm3715, %v4906, -inf
  %v5630 = vmax.f32 %v5628, %v5629
  %v5631 = vsel %vm3715, %v4970, -inf
  %v5632 = vmax.f32 %v5630, %v5631
  %v5633 = vsel %vm3715, %v5034, -inf
  %v5634 = vmax.f32 %v5632, %v5633
  %v5635 = vsel %vm3715, %v5098, -inf
  %v5636 = vmax.f32 %v5634, %v5635
  %v5637 = vsel %vm3715, %v5162, -inf
  %v5638 = vmax.f32 %v5636, %v5637
  %v5639 = vsel %vm3715, %v5226, -inf
  %v5640 = vmax.f32 %v5638, %v5639
  %v5641 = vsel %vm3715, %v4207, -inf
  %v5642 = vsel %vm3715, %v4271, -inf
  %v5643 = vmax.f32 %v5641, %v5642
  %v5644 = vsel %vm3715, %v4335, -inf
  %v5645 = vmax.f32 %v5643, %v5644
  %v5646 = vsel %vm3715, %v4399, -inf
  %v5647 = vmax.f32 %v5645, %v5646
  %v5648 = vsel %vm3715, %v4463, -inf
  %v5649 = vmax.f32 %v5647, %v5648
  %v5650 = vsel %vm3715, %v4527, -inf
  %v5651 = vmax.f32 %v5649, %v5650
  %v5652 = vsel %vm3715, %v4591, -inf
  %v5653 = vmax.f32 %v5651, %v5652
  %v5654 = vsel %vm3715, %v4655, -inf
  %v5655 = vmax.f32 %v5653, %v5654
  %v5656 = vsel %vm3715, %v4719, -inf
  %v5657 = vmax.f32 %v5655, %v5656
  %v5658 = vsel %vm3715, %v4783, -inf
  %v5659 = vmax.f32 %v5657, %v5658
  %v5660 = vsel %vm3715, %v4847, -inf
  %v5661 = vmax.f32 %v5659, %v5660
  %v5662 = vsel %vm3715, %v4911, -inf
  %v5663 = vmax.f32 %v5661, %v5662
  %v5664 = vsel %vm3715, %v4975, -inf
  %v5665 = vmax.f32 %v5663, %v5664
  %v5666 = vsel %vm3715, %v5039, -inf
  %v5667 = vmax.f32 %v5665, %v5666
  %v5668 = vsel %vm3715, %v5103, -inf
  %v5669 = vmax.f32 %v5667, %v5668
  %v5670 = vsel %vm3715, %v5167, -inf
  %v5671 = vmax.f32 %v5669, %v5670
  %v5672 = vsel %vm3715, %v5231, -inf
  %v5673 = vmax.f32 %v5671, %v5672
  %v5674 = vsel %vm3715, %v4210, -inf
  %v5675 = vsel %vm3715, %v4274, -inf
  %v5676 = vmax.f32 %v5674, %v5675
  %v5677 = vsel %vm3715, %v4338, -inf
  %v5678 = vmax.f32 %v5676, %v5677
  %v5679 = vsel %vm3715, %v4402, -inf
  %v5680 = vmax.f32 %v5678, %v5679
  %v5681 = vsel %vm3715, %v4466, -inf
  %v5682 = vmax.f32 %v5680, %v5681
  %v5683 = vsel %vm3715, %v4530, -inf
  %v5684 = vmax.f32 %v5682, %v5683
  %v5685 = vsel %vm3715, %v4594, -inf
  %v5686 = vmax.f32 %v5684, %v5685
  %v5687 = vsel %vm3715, %v4658, -inf
  %v5688 = vmax.f32 %v5686, %v5687
  %v5689 = vsel %vm3715, %v4722, -inf
  %v5690 = vmax.f32 %v5688, %v5689
  %v5691 = vsel %vm3715, %v4786, -inf
  %v5692 = vmax.f32 %v5690, %v5691
  %v5693 = vsel %vm3715, %v4850, -inf
  %v5694 = vmax.f32 %v5692, %v5693
  %v5695 = vsel %vm3715, %v4914, -inf
  %v5696 = vmax.f32 %v5694, %v5695
  %v5697 = vsel %vm3715, %v4978, -inf
  %v5698 = vmax.f32 %v5696, %v5697
  %v5699 = vsel %vm3715, %v5042, -inf
  %v5700 = vmax.f32 %v5698, %v5699
  %v5701 = vsel %vm3715, %v5106, -inf
  %v5702 = vmax.f32 %v5700, %v5701
  %v5703 = vsel %vm3715, %v5170, -inf
  %v5704 = vmax.f32 %v5702, %v5703
  %v5705 = vsel %vm3715, %v5234, -inf
  %v5706 = vmax.f32 %v5704, %v5705
  %v5707 = vsel %vm3715, %v4215, -inf
  %v5708 = vsel %vm3715, %v4279, -inf
  %v5709 = vmax.f32 %v5707, %v5708
  %v5710 = vsel %vm3715, %v4343, -inf
  %v5711 = vmax.f32 %v5709, %v5710
  %v5712 = vsel %vm3715, %v4407, -inf
  %v5713 = vmax.f32 %v5711, %v5712
  %v5714 = vsel %vm3715, %v4471, -inf
  %v5715 = vmax.f32 %v5713, %v5714
  %v5716 = vsel %vm3715, %v4535, -inf
  %v5717 = vmax.f32 %v5715, %v5716
  %v5718 = vsel %vm3715, %v4599, -inf
  %v5719 = vmax.f32 %v5717, %v5718
  %v5720 = vsel %vm3715, %v4663, -inf
  %v5721 = vmax.f32 %v5719, %v5720
  %v5722 = vsel %vm3715, %v4727, -inf
  %v5723 = vmax.f32 %v5721, %v5722
  %v5724 = vsel %vm3715, %v4791, -inf
  %v5725 = vmax.f32 %v5723, %v5724
  %v5726 = vsel %vm3715, %v4855, -inf
  %v5727 = vmax.f32 %v5725, %v5726
  %v5728 = vsel %vm3715, %v4919, -inf
  %v5729 = vmax.f32 %v5727, %v5728
  %v5730 = vsel %vm3715, %v4983, -inf
  %v5731 = vmax.f32 %v5729, %v5730
  %v5732 = vsel %vm3715, %v5047, -inf
  %v5733 = vmax.f32 %v5731, %v5732
  %v5734 = vsel %vm3715, %v5111, -inf
  %v5735 = vmax.f32 %v5733, %v5734
  %v5736 = vsel %vm3715, %v5175, -inf
  %v5737 = vmax.f32 %v5735, %v5736
  %v5738 = vsel %vm3715, %v5239, -inf
  %v5739 = vmax.f32 %v5737, %v5738
  %v5740 = vsel %vm3715, %v4218, -inf
  %v5741 = vsel %vm3715, %v4282, -inf
  %v5742 = vmax.f32 %v5740, %v5741
  %v5743 = vsel %vm3715, %v4346, -inf
  %v5744 = vmax.f32 %v5742, %v5743
  %v5745 = vsel %vm3715, %v4410, -inf
  %v5746 = vmax.f32 %v5744, %v5745
  %v5747 = vsel %vm3715, %v4474, -inf
  %v5748 = vmax.f32 %v5746, %v5747
  %v5749 = vsel %vm3715, %v4538, -inf
  %v5750 = vmax.f32 %v5748, %v5749
  %v5751 = vsel %vm3715, %v4602, -inf
  %v5752 = vmax.f32 %v5750, %v5751
  %v5753 = vsel %vm3715, %v4666, -inf
  %v5754 = vmax.f32 %v5752, %v5753
  %v5755 = vsel %vm3715, %v4730, -inf
  %v5756 = vmax.f32 %v5754, %v5755
  %v5757 = vsel %vm3715, %v4794, -inf
  %v5758 = vmax.f32 %v5756, %v5757
  %v5759 = vsel %vm3715, %v4858, -inf
  %v5760 = vmax.f32 %v5758, %v5759
  %v5761 = vsel %vm3715, %v4922, -inf
  %v5762 = vmax.f32 %v5760, %v5761
  %v5763 = vsel %vm3715, %v4986, -inf
  %v5764 = vmax.f32 %v5762, %v5763
  %v5765 = vsel %vm3715, %v5050, -inf
  %v5766 = vmax.f32 %v5764, %v5765
  %v5767 = vsel %vm3715, %v5114, -inf
  %v5768 = vmax.f32 %v5766, %v5767
  %v5769 = vsel %vm3715, %v5178, -inf
  %v5770 = vmax.f32 %v5768, %v5769
  %v5771 = vsel %vm3715, %v5242, -inf
  %v5772 = vmax.f32 %v5770, %v5771
  %v5773 = vld [vmem:[%s4] sm:$0x1]
  %v5775 = vlaneseq
  %v5776 = vshrl.u32 %v5775, 7
  %v5777 = vsub.s32 0, %v5776
  %v5778 = vrot.slane %v5773, %v5777
  %v5780 = vadd.f32 %v5277, %v5778
  %v5781 = vadd.f32 %v5310, %v5778
  %v5782 = vadd.f32 %v5343, %v5778
  %v5783 = vadd.f32 %v5376, %v5778
  %v5784 = vadd.f32 %v5409, %v5778
  %v5785 = vadd.f32 %v5442, %v5778
  %v5786 = vadd.f32 %v5475, %v5778
  %v5787 = vadd.f32 %v5508, %v5778
  %v5788 = vadd.f32 %v5541, %v5778
  %v5789 = vadd.f32 %v5574, %v5778
  %v5790 = vadd.f32 %v5607, %v5778
  %v5791 = vadd.f32 %v5640, %v5778
  %v5792 = vadd.f32 %v5673, %v5778
  %v5793 = vadd.f32 %v5706, %v5778
  %v5794 = vadd.f32 %v5739, %v5778
  %v5795 = vadd.f32 %v5772, %v5778
  %v5796 = vmax.f32 %v5780, 0.0
  %v5797 = vmax.f32 %v5781, 0.0
  %v5798 = vmax.f32 %v5782, 0.0
  %v5799 = vmax.f32 %v5783, 0.0
  %v5800 = vmax.f32 %v5784, 0.0
  %v5801 = vmax.f32 %v5785, 0.0
  %v5802 = vmax.f32 %v5786, 0.0
  %v5803 = vmax.f32 %v5787, 0.0
  %v5804 = vmax.f32 %v5788, 0.0
  %v5805 = vmax.f32 %v5789, 0.0
  %v5806 = vmax.f32 %v5790, 0.0
  %v5807 = vmax.f32 %v5791, 0.0
  %v5808 = vmax.f32 %v5792, 0.0
  %v5809 = vmax.f32 %v5793, 0.0
  %v5810 = vmax.f32 %v5794, 0.0
  %v5811 = vmax.f32 %v5795, 0.0
  %v5812 = vpack.c.bf16 %v5797, %v5796
  %v5813 = vpack.c.bf16 %v5799, %v5798
  %v5814 = vpack.c.bf16 %v5801, %v5800
  %v5815 = vpack.c.bf16 %v5803, %v5802
  %v5816 = vpack.c.bf16 %v5805, %v5804
  %v5817 = vpack.c.bf16 %v5807, %v5806
  %v5818 = vpack.c.bf16 %v5809, %v5808
  %v5819 = vpack.c.bf16 %v5811, %v5810
  %v5820 = vld [vmem:[%s5] sm:$0xf]
  %v5821 = vld [vmem:[%s5 + $0x4] sm:$0xf]
  %v5822 = vld [vmem:[%s5 + $0x8] sm:$0xf]
  %v5823 = vld [vmem:[%s5 + $0xc] sm:$0xf]
  %v5824 = vld [vmem:[%s6] sm:$0x1]
  %v5826 = vlaneseq
  %v5827 = vshrl.u32 %v5826, 7
  %v5828 = vsub.s32 0, %v5827
  %v5829 = vrot.slane %v5824, %v5828
  %v5835 = vunpack.c.l.b16 %v5820
  %v5836 = vunpack.c.l.b16 %v5821
  %v5837 = vunpack.c.l.b16 %v5822
  %v5838 = vunpack.c.l.b16 %v5823
  %v5839 = vpack.c.b16 %v5836, %v5835
  %v5840 = vpack.c.b16 %v5838, %v5837
  %v5844 = vsel %vm3715, %v5812, 0
  %v5847 = vsel %vm3715, %v5813, 0
  %v5850 = vsel %vm3715, %v5814, 0
  %v5853 = vsel %vm3715, %v5815, 0
  %v5856 = vsel %vm3715, %v5816, 0
  %v5859 = vsel %vm3715, %v5817, 0
  %v5862 = vsel %vm3715, %v5818, 0
  %v5865 = vsel %vm3715, %v5819, 0
  %5867 = vmatprep.subr.bf16.mxu0 0
  %5868 = vmatpush1.bf16.msra.mxu0 %v5839
  %5869 = vmatprep.subr.bf16.mxu0 0
  %5870 = vmatpush1.bf16.msra.mxu0 %v5840
  %5871 = vmatprep.subr.bf16.mxu0 0
  %5872 = vmatpush1.bf16.msra.mxu0 0
  %5873 = vmatprep.subr.bf16.mxu0 0
  %5874 = vmatpush1.bf16.msra.mxu0 0
  %5875 = vmatprep.subr.bf16.mxu0 0
  %5876 = vmatpush1.bf16.msra.mxu0 0
  %5877 = vmatprep.subr.bf16.mxu0 0
  %5878 = vmatpush1.bf16.msra.mxu0 0
  %5879 = vmatprep.subr.bf16.mxu0 0
  %5880 = vmatpush1.bf16.msra.mxu0 0
  %5881 = vmatprep.subr.bf16.mxu0 0
  %5882 = vmatpush1.bf16.msra.mxu0 0
  %5883 = vmatprep.subr.bf16.mxu0 0
  %5884 = vmatpush1.bf16.msra.mxu0 0
  %5885 = vmatprep.subr.bf16.mxu0 0
  %5886 = vmatpush1.bf16.msra.mxu0 0
  %5887 = vmatprep.subr.bf16.mxu0 0
  %5888 = vmatpush1.bf16.msra.mxu0 0
  %5889 = vmatprep.subr.bf16.mxu0 0
  %5890 = vmatpush1.bf16.msra.mxu0 0
  %5891 = vmatprep.subr.bf16.mxu0 0
  %5892 = vmatpush1.bf16.msra.mxu0 0
  %5893 = vmatprep.subr.bf16.mxu0 0
  %5894 = vmatpush1.bf16.msra.mxu0 0
  %5895 = vmatprep.subr.bf16.mxu0 0
  %5896 = vmatpush1.bf16.msra.mxu0 0
  %5897 = vmatprep.subr.bf16.mxu0 0
  %5898 = vmatpush1.bf16.msra.mxu0 0
  %5899 = vmatprep.mubr.bf16.mxu0 0
  %5900 = vmatmul.mubr.bf16.gmra.mrb[0].mxu0 %v5844
  %v5901 = vpop.f32.mrb[0].mxu0
  %v5902 = vadd.f32 %v5829, %v5901
  %v5903 = vpop.f32.mrb[0].mxu0
  %v5904 = vpop.f32.mrb[0].mxu0
  %v5905 = vadd.f32 %v5829, %v5904
  %v5906 = vpop.f32.mrb[0].mxu0
  %5907 = vmatprep.mubr.bf16.mxu0 0
  %5908 = vmatmul.mubr.bf16.gmra.mrb[0].mxu0 %v5847
  %v5909 = vpop.f32.mrb[0].mxu0
  %v5910 = vadd.f32 %v5829, %v5909
  %v5911 = vpop.f32.mrb[0].mxu0
  %v5912 = vpop.f32.mrb[0].mxu0
  %v5913 = vadd.f32 %v5829, %v5912
  %v5914 = vpop.f32.mrb[0].mxu0
  %5915 = vmatprep.mubr.bf16.mxu0 0
  %5916 = vmatmul.mubr.bf16.gmra.mrb[0].mxu0 %v5850
  %v5917 = vpop.f32.mrb[0].mxu0
  %v5918 = vadd.f32 %v5829, %v5917
  %v5919 = vpop.f32.mrb[0].mxu0
  %v5920 = vpop.f32.mrb[0].mxu0
  %v5921 = vadd.f32 %v5829, %v5920
  %v5922 = vpop.f32.mrb[0].mxu0
  %5923 = vmatprep.mubr.bf16.mxu0 0
  %5924 = vmatmul.mubr.bf16.gmra.mrb[0].mxu0 %v5853
  %v5925 = vpop.f32.mrb[0].mxu0
  %v5926 = vadd.f32 %v5829, %v5925
  %v5927 = vpop.f32.mrb[0].mxu0
  %v5928 = vpop.f32.mrb[0].mxu0
  %v5929 = vadd.f32 %v5829, %v5928
  %v5930 = vpop.f32.mrb[0].mxu0
  %5931 = vmatprep.mubr.bf16.mxu0 0
  %5932 = vmatmul.mubr.bf16.gmra.mrb[0].mxu0 %v5856
  %v5933 = vpop.f32.mrb[0].mxu0
  %v5934 = vadd.f32 %v5829, %v5933
  %v5935 = vpop.f32.mrb[0].mxu0
  %v5936 = vpop.f32.mrb[0].mxu0
  %v5937 = vadd.f32 %v5829, %v5936
  %v5938 = vpop.f32.mrb[0].mxu0
  %5939 = vmatprep.mubr.bf16.mxu0 0
  %5940 = vmatmul.mubr.bf16.gmra.mrb[0].mxu0 %v5859
  %v5941 = vpop.f32.mrb[0].mxu0
  %v5942 = vadd.f32 %v5829, %v5941
  %v5943 = vpop.f32.mrb[0].mxu0
  %v5944 = vpop.f32.mrb[0].mxu0
  %v5945 = vadd.f32 %v5829, %v5944
  %v5946 = vpop.f32.mrb[0].mxu0
  %5947 = vmatprep.mubr.bf16.mxu0 0
  %5948 = vmatmul.mubr.bf16.gmra.mrb[0].mxu0 %v5862
  %v5949 = vpop.f32.mrb[0].mxu0
  %v5950 = vadd.f32 %v5829, %v5949
  %v5951 = vpop.f32.mrb[0].mxu0
  %v5952 = vpop.f32.mrb[0].mxu0
  %v5953 = vadd.f32 %v5829, %v5952
  %v5954 = vpop.f32.mrb[0].mxu0
  %5955 = vmatprep.mubr.bf16.mxu0 0
  %5956 = vmatmul.mubr.bf16.gmra.mrb[0].mxu0 %v5865
  %v5957 = vpop.f32.mrb[0].mxu0
  %v5958 = vadd.f32 %v5829, %v5957
  %v5959 = vpop.f32.mrb[0].mxu0
  %v5960 = vpop.f32.mrb[0].mxu0
  %v5961 = vadd.f32 %v5829, %v5960
  %v5962 = vpop.f32.mrb[0].mxu0
  %5963 = vdwg.mxu0
  %v5964 = vmax.f32 %v5902, 0.0
  %v5965 = vmax.f32 %v5905, 0.0
  %v5966 = vmax.f32 %v5910, 0.0
  %v5967 = vmax.f32 %v5913, 0.0
  %v5968 = vmax.f32 %v5918, 0.0
  %v5969 = vmax.f32 %v5921, 0.0
  %v5970 = vmax.f32 %v5926, 0.0
  %v5971 = vmax.f32 %v5929, 0.0
  %v5972 = vmax.f32 %v5934, 0.0
  %v5973 = vmax.f32 %v5937, 0.0
  %v5974 = vmax.f32 %v5942, 0.0
  %v5975 = vmax.f32 %v5945, 0.0
  %v5976 = vmax.f32 %v5950, 0.0
  %v5977 = vmax.f32 %v5953, 0.0
  %v5978 = vmax.f32 %v5958, 0.0
  %v5979 = vmax.f32 %v5961, 0.0
  %v5980 = vxor.u32 %v5902, 2147483648
  %v5981 = vxor.u32 %v5905, 2147483648
  %v5982 = vxor.u32 %v5910, 2147483648
  %v5983 = vxor.u32 %v5913, 2147483648
  %v5984 = vxor.u32 %v5918, 2147483648
  %v5985 = vxor.u32 %v5921, 2147483648
  %v5986 = vxor.u32 %v5926, 2147483648
  %v5987 = vxor.u32 %v5929, 2147483648
  %v5988 = vxor.u32 %v5934, 2147483648
  %v5989 = vxor.u32 %v5937, 2147483648
  %v5990 = vxor.u32 %v5942, 2147483648
  %v5991 = vxor.u32 %v5945, 2147483648
  %v5992 = vxor.u32 %v5950, 2147483648
  %v5993 = vxor.u32 %v5953, 2147483648
  %v5994 = vxor.u32 %v5958, 2147483648
  %v5995 = vxor.u32 %v5961, 2147483648
  %v5996 = vmul.f32 %v5980, 1.442695
  %v5997 = vpow.pop %v5996
  %v5998 = vmul.f32 %v5981, 1.442695
  %v5999 = vpow.pop %v5998
  %v6000 = vmul.f32 %v5982, 1.442695
  %v6001 = vpow.pop %v6000
  %v6002 = vmul.f32 %v5983, 1.442695
  %v6003 = vpow.pop %v6002
  %v6004 = vmul.f32 %v5984, 1.442695
  %v6005 = vpow.pop %v6004
  %v6006 = vmul.f32 %v5985, 1.442695
  %v6007 = vpow.pop %v6006
  %v6008 = vmul.f32 %v5986, 1.442695
  %v6009 = vpow.pop %v6008
  %v6010 = vmul.f32 %v5987, 1.442695
  %v6011 = vpow.pop %v6010
  %v6012 = vmul.f32 %v5988, 1.442695
  %v6013 = vpow.pop %v6012
  %v6014 = vmul.f32 %v5989, 1.442695
  %v6015 = vpow.pop %v6014
  %v6016 = vmul.f32 %v5990, 1.442695
  %v6017 = vpow.pop %v6016
  %v6018 = vmul.f32 %v5991, 1.442695
  %v6019 = vpow.pop %v6018
  %v6020 = vmul.f32 %v5992, 1.442695
  %v6021 = vpow.pop %v6020
  %v6022 = vmul.f32 %v5993, 1.442695
  %v6023 = vpow.pop %v6022
  %v6024 = vmul.f32 %v5994, 1.442695
  %v6025 = vpow.pop %v6024
  %v6026 = vmul.f32 %v5995, 1.442695
  %v6027 = vpow.pop %v6026
  %v6028 = vadd.f32 %v5997, 1.0
  %v6029 = vadd.f32 %v5999, 1.0
  %v6030 = vadd.f32 %v6001, 1.0
  %v6031 = vadd.f32 %v6003, 1.0
  %v6032 = vadd.f32 %v6005, 1.0
  %v6033 = vadd.f32 %v6007, 1.0
  %v6034 = vadd.f32 %v6009, 1.0
  %v6035 = vadd.f32 %v6011, 1.0
  %v6036 = vadd.f32 %v6013, 1.0
  %v6037 = vadd.f32 %v6015, 1.0
  %v6038 = vadd.f32 %v6017, 1.0
  %v6039 = vadd.f32 %v6019, 1.0
  %v6040 = vadd.f32 %v6021, 1.0
  %v6041 = vadd.f32 %v6023, 1.0
  %v6042 = vadd.f32 %v6025, 1.0
  %v6043 = vadd.f32 %v6027, 1.0
  %v6044 = vrcp.pop %v6028
  %v6045 = vmul.f32 1.0, %v6044
  %v6046 = vrcp.pop %v6029
  %v6047 = vmul.f32 1.0, %v6046
  %v6048 = vrcp.pop %v6030
  %v6049 = vmul.f32 1.0, %v6048
  %v6050 = vrcp.pop %v6031
  %v6051 = vmul.f32 1.0, %v6050
  %v6052 = vrcp.pop %v6032
  %v6053 = vmul.f32 1.0, %v6052
  %v6054 = vrcp.pop %v6033
  %v6055 = vmul.f32 1.0, %v6054
  %v6056 = vrcp.pop %v6034
  %v6057 = vmul.f32 1.0, %v6056
  %v6058 = vrcp.pop %v6035
  %v6059 = vmul.f32 1.0, %v6058
  %v6060 = vrcp.pop %v6036
  %v6061 = vmul.f32 1.0, %v6060
  %v6062 = vrcp.pop %v6037
  %v6063 = vmul.f32 1.0, %v6062
  %v6064 = vrcp.pop %v6038
  %v6065 = vmul.f32 1.0, %v6064
  %v6066 = vrcp.pop %v6039
  %v6067 = vmul.f32 1.0, %v6066
  %v6068 = vrcp.pop %v6040
  %v6069 = vmul.f32 1.0, %v6068
  %v6070 = vrcp.pop %v6041
  %v6071 = vmul.f32 1.0, %v6070
  %v6072 = vrcp.pop %v6042
  %v6073 = vmul.f32 1.0, %v6072
  %v6074 = vrcp.pop %v6043
  %v6075 = vmul.f32 1.0, %v6074
  %6092 = vrot.lane.b32.xlu0 %v5964, 32
  %v6093 = vpop.permute.xlu0 %6092
  %6094 = vrot.lane.b32.xlu0 %v5965, 32
  %v6095 = vpop.permute.xlu0 %6094
  %6096 = vrot.lane.b32.xlu0 %v5966, 32
  %v6097 = vpop.permute.xlu0 %6096
  %6098 = vrot.lane.b32.xlu0 %v5967, 32
  %v6099 = vpop.permute.xlu0 %6098
  %6100 = vrot.lane.b32.xlu0 %v5968, 32
  %v6101 = vpop.permute.xlu0 %6100
  %6102 = vrot.lane.b32.xlu0 %v5969, 32
  %v6103 = vpop.permute.xlu0 %6102
  %6104 = vrot.lane.b32.xlu0 %v5970, 32
  %v6105 = vpop.permute.xlu0 %6104
  %6106 = vrot.lane.b32.xlu0 %v5971, 32
  %v6107 = vpop.permute.xlu0 %6106
  %6108 = vrot.lane.b32.xlu0 %v5972, 32
  %v6109 = vpop.permute.xlu0 %6108
  %6110 = vrot.lane.b32.xlu0 %v5973, 32
  %v6111 = vpop.permute.xlu0 %6110
  %6112 = vrot.lane.b32.xlu0 %v5974, 32
  %v6113 = vpop.permute.xlu0 %6112
  %6114 = vrot.lane.b32.xlu0 %v5975, 32
  %v6115 = vpop.permute.xlu0 %6114
  %6116 = vrot.lane.b32.xlu0 %v5976, 32
  %v6117 = vpop.permute.xlu0 %6116
  %6118 = vrot.lane.b32.xlu0 %v5977, 32
  %v6119 = vpop.permute.xlu0 %6118
  %6120 = vrot.lane.b32.xlu0 %v5978, 32
  %v6121 = vpop.permute.xlu0 %6120
  %6122 = vrot.lane.b32.xlu0 %v5979, 32
  %v6123 = vpop.permute.xlu0 %6122
  %v6140 = vmul.f32 %v6045, %v6093
  %v6141 = vmul.f32 %v6047, %v6095
  %v6142 = vmul.f32 %v6049, %v6097
  %v6143 = vmul.f32 %v6051, %v6099
  %v6144 = vmul.f32 %v6053, %v6101
  %v6145 = vmul.f32 %v6055, %v6103
  %v6146 = vmul.f32 %v6057, %v6105
  %v6147 = vmul.f32 %v6059, %v6107
  %v6148 = vmul.f32 %v6061, %v6109
  %v6149 = vmul.f32 %v6063, %v6111
  %v6150 = vmul.f32 %v6065, %v6113
  %v6151 = vmul.f32 %v6067, %v6115
  %v6152 = vmul.f32 %v6069, %v6117
  %v6153 = vmul.f32 %v6071, %v6119
  %v6154 = vmul.f32 %v6073, %v6121
  %v6155 = vmul.f32 %v6075, %v6123
  %v6156 = vsub.f32 1.0, %v6045
  %v6157 = vsub.f32 1.0, %v6047
  %v6158 = vsub.f32 1.0, %v6049
  %v6159 = vsub.f32 1.0, %v6051
  %v6160 = vsub.f32 1.0, %v6053
  %v6161 = vsub.f32 1.0, %v6055
  %v6162 = vsub.f32 1.0, %v6057
  %v6163 = vsub.f32 1.0, %v6059
  %v6164 = vsub.f32 1.0, %v6061
  %v6165 = vsub.f32 1.0, %v6063
  %v6166 = vsub.f32 1.0, %v6065
  %v6167 = vsub.f32 1.0, %v6067
  %v6168 = vsub.f32 1.0, %v6069
  %v6169 = vsub.f32 1.0, %v6071
  %v6170 = vsub.f32 1.0, %v6073
  %v6171 = vsub.f32 1.0, %v6075
  %6188 = vrot.lane.b32.xlu0 %v5796, 32
  %v6189 = vpop.permute.xlu0 %6188
  %6190 = vrot.lane.b32.xlu0 %v5797, 32
  %v6191 = vpop.permute.xlu0 %6190
  %6192 = vrot.lane.b32.xlu0 %v5798, 32
  %v6193 = vpop.permute.xlu0 %6192
  %6194 = vrot.lane.b32.xlu0 %v5799, 32
  %v6195 = vpop.permute.xlu0 %6194
  %6196 = vrot.lane.b32.xlu0 %v5800, 32
  %v6197 = vpop.permute.xlu0 %6196
  %6198 = vrot.lane.b32.xlu0 %v5801, 32
  %v6199 = vpop.permute.xlu0 %6198
  %6200 = vrot.lane.b32.xlu0 %v5802, 32
  %v6201 = vpop.permute.xlu0 %6200
  %6202 = vrot.lane.b32.xlu0 %v5803, 32
  %v6203 = vpop.permute.xlu0 %6202
  %6204 = vrot.lane.b32.xlu0 %v5804, 32
  %v6205 = vpop.permute.xlu0 %6204
  %6206 = vrot.lane.b32.xlu0 %v5805, 32
  %v6207 = vpop.permute.xlu0 %6206
  %6208 = vrot.lane.b32.xlu0 %v5806, 32
  %v6209 = vpop.permute.xlu0 %6208
  %6210 = vrot.lane.b32.xlu0 %v5807, 32
  %v6211 = vpop.permute.xlu0 %6210
  %6212 = vrot.lane.b32.xlu0 %v5808, 32
  %v6213 = vpop.permute.xlu0 %6212
  %6214 = vrot.lane.b32.xlu0 %v5809, 32
  %v6215 = vpop.permute.xlu0 %6214
  %6216 = vrot.lane.b32.xlu0 %v5810, 32
  %v6217 = vpop.permute.xlu0 %6216
  %6218 = vrot.lane.b32.xlu0 %v5811, 32
  %v6219 = vpop.permute.xlu0 %6218
  %v6236 = vmul.f32 %v6156, %v6189
  %v6237 = vmul.f32 %v6157, %v6191
  %v6238 = vmul.f32 %v6158, %v6193
  %v6239 = vmul.f32 %v6159, %v6195
  %v6240 = vmul.f32 %v6160, %v6197
  %v6241 = vmul.f32 %v6161, %v6199
  %v6242 = vmul.f32 %v6162, %v6201
  %v6243 = vmul.f32 %v6163, %v6203
  %v6244 = vmul.f32 %v6164, %v6205
  %v6245 = vmul.f32 %v6165, %v6207
  %v6246 = vmul.f32 %v6166, %v6209
  %v6247 = vmul.f32 %v6167, %v6211
  %v6248 = vmul.f32 %v6168, %v6213
  %v6249 = vmul.f32 %v6169, %v6215
  %v6250 = vmul.f32 %v6170, %v6217
  %v6251 = vmul.f32 %v6171, %v6219
  %v6252 = vadd.f32 %v6140, %v6236
  %v6253 = vadd.f32 %v6141, %v6237
  %v6254 = vadd.f32 %v6142, %v6238
  %v6255 = vadd.f32 %v6143, %v6239
  %v6256 = vadd.f32 %v6144, %v6240
  %v6257 = vadd.f32 %v6145, %v6241
  %v6258 = vadd.f32 %v6146, %v6242
  %v6259 = vadd.f32 %v6147, %v6243
  %v6260 = vadd.f32 %v6148, %v6244
  %v6261 = vadd.f32 %v6149, %v6245
  %v6262 = vadd.f32 %v6150, %v6246
  %v6263 = vadd.f32 %v6151, %v6247
  %v6264 = vadd.f32 %v6152, %v6248
  %v6265 = vadd.f32 %v6153, %v6249
  %v6266 = vadd.f32 %v6154, %v6250
  %v6267 = vadd.f32 %v6155, %v6251
  %6284 = vrot.lane.b32.xlu0 %v6252, 96
  %v6285 = vpop.permute.xlu0 %6284
  %6286 = vrot.lane.b32.xlu0 %v6253, 96
  %v6287 = vpop.permute.xlu0 %6286
  %6288 = vrot.lane.b32.xlu0 %v6254, 96
  %v6289 = vpop.permute.xlu0 %6288
  %6290 = vrot.lane.b32.xlu0 %v6255, 96
  %v6291 = vpop.permute.xlu0 %6290
  %6292 = vrot.lane.b32.xlu0 %v6256, 96
  %v6293 = vpop.permute.xlu0 %6292
  %6294 = vrot.lane.b32.xlu0 %v6257, 96
  %v6295 = vpop.permute.xlu0 %6294
  %6296 = vrot.lane.b32.xlu0 %v6258, 96
  %v6297 = vpop.permute.xlu0 %6296
  %6298 = vrot.lane.b32.xlu0 %v6259, 96
  %v6299 = vpop.permute.xlu0 %6298
  %6300 = vrot.lane.b32.xlu0 %v6260, 96
  %v6301 = vpop.permute.xlu0 %6300
  %6302 = vrot.lane.b32.xlu0 %v6261, 96
  %v6303 = vpop.permute.xlu0 %6302
  %6304 = vrot.lane.b32.xlu0 %v6262, 96
  %v6305 = vpop.permute.xlu0 %6304
  %6306 = vrot.lane.b32.xlu0 %v6263, 96
  %v6307 = vpop.permute.xlu0 %6306
  %6308 = vrot.lane.b32.xlu0 %v6264, 96
  %v6309 = vpop.permute.xlu0 %6308
  %6310 = vrot.lane.b32.xlu0 %v6265, 96
  %v6311 = vpop.permute.xlu0 %6310
  %6312 = vrot.lane.b32.xlu0 %v6266, 96
  %v6313 = vpop.permute.xlu0 %6312
  %6314 = vrot.lane.b32.xlu0 %v6267, 96
  %v6315 = vpop.permute.xlu0 %6314
  %6332 = vst.msk [vmem:[%s7] sm:$0xff] %vm3715, %v6285
  %6333 = vst.msk [vmem:[%s7 + $0x8] sm:$0xff] %vm3715, %v6287
  %6334 = vst.msk [vmem:[%s7 + $0x10] sm:$0xff] %vm3715, %v6289
  %6335 = vst.msk [vmem:[%s7 + $0x18] sm:$0xff] %vm3715, %v6291
  %6336 = vst.msk [vmem:[%s7 + $0x20] sm:$0xff] %vm3715, %v6293
  %6337 = vst.msk [vmem:[%s7 + $0x28] sm:$0xff] %vm3715, %v6295
  %6338 = vst.msk [vmem:[%s7 + $0x30] sm:$0xff] %vm3715, %v6297
  %6339 = vst.msk [vmem:[%s7 + $0x38] sm:$0xff] %vm3715, %v6299
  %6340 = vst.msk [vmem:[%s7 + $0x40] sm:$0xff] %vm3715, %v6301
  %6341 = vst.msk [vmem:[%s7 + $0x48] sm:$0xff] %vm3715, %v6303
  %6342 = vst.msk [vmem:[%s7 + $0x50] sm:$0xff] %vm3715, %v6305
  %6343 = vst.msk [vmem:[%s7 + $0x58] sm:$0xff] %vm3715, %v6307
  %6344 = vst.msk [vmem:[%s7 + $0x60] sm:$0xff] %vm3715, %v6309
  %6345 = vst.msk [vmem:[%s7 + $0x68] sm:$0xff] %vm3715, %v6311
  %6346 = vst.msk [vmem:[%s7 + $0x70] sm:$0xff] %vm3715, %v6313
  %6347 = vst.msk [vmem:[%s7 + $0x78] sm:$0xff] %vm3715, %v6315
  // Predicated region
  $region30: #{model_embeddings_forward.1} parent=0 // pred_check
    _
  $region31: #{model_embeddings_forward.1} parent=0 // pred_check_branch
    %6349 = sbr.rel (0) target = $region33
  $region32: #{model_embeddings_forward.1} parent=0 // pred_region
    _
  $region33: #{model_embeddings_forward.1} parent=0 // pred_fallthru
    _
  // Predicated region
  $region34: #{model_embeddings_forward.1} parent=0 // pred_check
    _
  $region35: #{model_embeddings_forward.1} parent=0 // pred_check_branch
    %6351 = sbr.rel (0) target = $region37
  $region36: #{model_embeddings_forward.1} parent=0 // pred_region
    _
  $region37: #{model_embeddings_forward.1} parent=0 // pred_fallthru
    _

</llo_original>
